<compile_context>
chip_gen: v5e
topology: v5e:2x2
jax: 0.10.0
libtpu: 0.0.40
codegen_flags: <defaults>
</compile_context>

<pallas_src>
import functools
import math

import jax
import jax.numpy as jnp
import numpy as np
from jax.experimental import pallas as pl
from jax.experimental.pallas import tpu as pltpu

EPS = 1e-6
NEG = -1e9


# ----------------------------- shared math -----------------------------------
def _recip(x, approx):
    if approx:
        return pl.reciprocal(x, approx=True)   # EUP slot, ~free next to exp
    return 1.0 / x


def _layernorm(x, a, b, *, approx):
    # torch semantics: std is unbiased (N-1 denom), eps added to std (not var)
    d = x.shape[-1]
    mean = jnp.mean(x, axis=-1, keepdims=True)
    var = jnp.sum((x - mean) ** 2, axis=-1, keepdims=True) * (1.0 / (d - 1))
    inv = _recip(jnp.sqrt(var) + EPS, approx)
    return a * (x - mean) * inv + b


def _mha(x, mask_bias, wq, bq, wk, bk, wv, bv, wo, bo, *, mm_dtype, approx):
    """Heads-batched multi-head self-attention.

    x: (S, D); wq/wk/wv: (h, D, d_k); bq/bk/bv: (h, 1, d_k);
    wo: (h, d_k, D); bo: (1, D); mask_bias: (S, S) additive (-1e9 / 0).
    All contractions are leading-batch-dim matmuls (no reshape/transpose of
    activations, no concat); accumulation is fp32.
    """
    h, _, d_k = wq.shape
    scale = 1.0 / math.sqrt(d_k)

    xm = x.astype(mm_dtype)
    xb = jnp.broadcast_to(xm[None], (h,) + xm.shape)          # (h, S, D)

    q = jnp.einsum('hsd,hdk->hsk', xb, wq.astype(mm_dtype),
                   preferred_element_type=jnp.float32) + bq    # (h, S, d_k)
    k = jnp.einsum('hsd,hdk->hsk', xb, wk.astype(mm_dtype),
                   preferred_element_type=jnp.float32) + bk
    v = jnp.einsum('hsd,hdk->hsk', xb, wv.astype(mm_dtype),
                   preferred_element_type=jnp.float32) + bv

    scores = jnp.einsum('hqd,hkd->hqk', q.astype(mm_dtype), k.astype(mm_dtype),
                        preferred_element_type=jnp.float32) * scale
    scores = scores + mask_bias[None]                          # hoisted mask
    scores = scores - jnp.max(scores, axis=-1, keepdims=True)
    p = jnp.exp(scores)
    p = p * _recip(jnp.sum(p, axis=-1, keepdims=True), approx)

    ctx = jnp.einsum('hqk,hkd->hqd', p.astype(mm_dtype), v.astype(mm_dtype),
                     preferred_element_type=jnp.float32)       # (h, S, d_k)

    # Output projection accumulated over heads (no lane-unaligned concat).
    out_h = jnp.einsum('hqd,hdm->hqm', ctx.astype(mm_dtype), wo.astype(mm_dtype),
                       preferred_element_type=jnp.float32)     # (h, S, D)
    return jnp.sum(out_h, axis=0) + bo


# ------------------------------- kernel ---------------------------------------
def decoder_layer_kernel(
    x_ref, src_mask_ref, tgt_mask_ref,
    # decoder self-attention (per-head weights)
    dwq, dbq, dwk, dbk, dwv, dbv, dwo, dbo,
    # "encoder" attention (self-attn over attn_out, as in the reference)
    ewq, ebq, ewk, ebk, ewv, ebv, ewo, ebo,
    # positionwise FFN (Conv1d k=1 as matmuls)
    w1, b1, w2, b2,
    # layer norms
    n1a, n1b, n2a, n2b, n3a, n3b,
    out_ref, *, mm_dtype, approx):
    x = x_ref[0]                                    # (S, D)
    # additive mask biases, computed once per block (not per head)
    tgt_bias = jnp.where(tgt_mask_ref[0] == 0.0, NEG, 0.0)
    src_bias = jnp.where(src_mask_ref[0] == 0.0, NEG, 0.0)

    # block 1: masked self-attention + residual
    n1x = _layernorm(x, n1a[...], n1b[...], approx=approx)
    attn_out = _mha(n1x, tgt_bias,
                    dwq[...], dbq[...], dwk[...], dbk[...], dwv[...], dbv[...],
                    dwo[...], dbo[...], mm_dtype=mm_dtype, approx=approx)
    # TODO(synk): dropout (stochastic) implemented as identity (eval semantics)
    attn_out = attn_out + x

    # block 2: "encoder" attention (self-attn on attn_out per reference) + residual
    n2x = _layernorm(attn_out, n2a[...], n2b[...], approx=approx)
    attn_in = _mha(n2x, src_bias,
                   ewq[...], ebq[...], ewk[...], ebk[...], ewv[...], ebv[...],
                   ewo[...], ebo[...], mm_dtype=mm_dtype, approx=approx)
    attn_in = attn_in + attn_out

    # block 3: positionwise feed-forward + residual
    n3x = _layernorm(attn_in, n3a[...], n3b[...], approx=approx)
    hidden = jnp.dot(n3x.astype(mm_dtype), w1[...].astype(mm_dtype),
                     preferred_element_type=jnp.float32) + b1[...]
    hidden = jnp.maximum(hidden, 0.0)
    ffn = jnp.dot(hidden.astype(mm_dtype), w2[...].astype(mm_dtype),
                  preferred_element_type=jnp.float32) + b2[...]
    out_ref[0] = (ffn + attn_in).astype(out_ref.dtype)


# ------------------------------- wrapper ---------------------------------------
def _split_w(w, h):
    d_in, d_out = w.shape
    d_k = d_out // h
    return w.reshape(d_in, h, d_k).transpose(1, 0, 2)       # (h, d_in, d_k)


def _split_b(b, h):
    d_out = b.shape[-1]
    d_k = d_out // h
    return b.reshape(1, h, d_k).transpose(1, 0, 2)           # (h, 1, d_k)


def decoder_layer(x, encoder_out, src_mask, tgt_mask, params, *, h,
                  mm_dtype=jnp.bfloat16, approx=True):
    """encoder_out is accepted for interface fidelity but (like the reference)
    is not used by the forward computation."""
    del encoder_out
    B, S, D = x.shape
    d_ff = params["w1"].shape[1]
    d_k = D // h

    cast = lambda w: w.astype(mm_dtype)   # matmul weights shipped in mm_dtype
    pvals = []
    for prefix in ("d", "e"):
        pvals += [
            cast(_split_w(params[f"{prefix}wq"], h)), _split_b(params[f"{prefix}bq"], h),
            cast(_split_w(params[f"{prefix}wk"], h)), _split_b(params[f"{prefix}bk"], h),
            cast(_split_w(params[f"{prefix}wv"], h)), _split_b(params[f"{prefix}bv"], h),
            cast(params[f"{prefix}wo"].reshape(h, d_k, D)), params[f"{prefix}bo"],
        ]
    pvals += [cast(params["w1"]), params["b1"], cast(params["w2"]), params["b2"]]
    pvals += [params[n] for n in ("n1a", "n1b", "n2a", "n2b", "n3a", "n3b")]

    in_specs = [
        pl.BlockSpec((1, S, D), lambda b: (b, 0, 0)),
        pl.BlockSpec((1, S, S), lambda b: (b, 0, 0)),
        pl.BlockSpec((1, S, S), lambda b: (b, 0, 0)),
    ] + [pl.BlockSpec(p.shape, lambda b, n=p.ndim: (0,) * n) for p in pvals]

    # advisory cost hint for XLA scheduling around the custom call
    flops = B * (16 * S * D * D + 8 * S * S * D + 4 * S * D * d_ff)
    transcendentals = B * (2 * h * S * S + 8 * S)
    bytes_accessed = (2 * B * S * D * 4 + 2 * B * S * S * 4
                      + sum(int(p.size) * p.dtype.itemsize for p in pvals))
    cost = pl.CostEstimate(flops=flops, transcendentals=transcendentals,
                           bytes_accessed=bytes_accessed)

    kernel = functools.partial(decoder_layer_kernel, mm_dtype=mm_dtype, approx=approx)
    return pl.pallas_call(
        kernel,
        out_shape=jax.ShapeDtypeStruct((B, S, D), jnp.float32),
        grid=(B,),
        in_specs=in_specs,
        out_specs=pl.BlockSpec((1, S, D), lambda b: (b, 0, 0)),
        compiler_params=pltpu.CompilerParams(
            dimension_semantics=("parallel",)),   # batches are independent
        cost_estimate=cost,
    )(x, src_mask, tgt_mask, *pvals)


# --------------------------- pure-JAX reference --------------------------------
def decoder_layer_ref(x, src_mask, tgt_mask, p, h, mm_dtype=jnp.float32):
    """Independent, per-head / masked_fill-style reference (PyTorch semantics)."""
    def mm(a, b):
        return jnp.dot(a.astype(mm_dtype), b.astype(mm_dtype),
                       preferred_element_type=jnp.float32)

    def ln(xb, a, b):
        d = xb.shape[-1]
        mean = jnp.mean(xb, -1, keepdims=True)
        std = jnp.sqrt(jnp.sum((xb - mean) ** 2, -1, keepdims=True) / (d - 1))
        return a * (xb - mean) / (std + EPS) + b

    def mha(xb, mask, wq, bq, wk, bk, wv, bv, wo, bo):
        d_model = xb.shape[-1]
        d_k = d_model // h
        q = mm(xb, wq) + bq
        k = mm(xb, wk) + bk
        v = mm(xb, wv) + bv
        outs = []
        for hi in range(h):
            sl = slice(hi * d_k, (hi + 1) * d_k)
            sc = mm(q[:, sl], k[:, sl].T) / math.sqrt(d_k)
            sc = jnp.where(mask == 0.0, NEG, sc)
            sc = sc - jnp.max(sc, -1, keepdims=True)
            pr = jnp.exp(sc)
            pr = pr / jnp.sum(pr, -1, keepdims=True)
            outs.append(mm(pr, v[:, sl]))
        o = jnp.concatenate(outs, axis=-1)
        return mm(o, wo) + bo

    def one(xb, sm, tm):
        a = mha(ln(xb, p["n1a"], p["n1b"]), tm,
                p["dwq"], p["dbq"], p["dwk"], p["dbk"],
                p["dwv"], p["dbv"], p["dwo"], p["dbo"]) + xb
        ai = mha(ln(a, p["n2a"], p["n2b"]), sm,
                 p["ewq"], p["ebq"], p["ewk"], p["ebk"],
                 p["ewv"], p["ebv"], p["ewo"], p["ebo"]) + a
        n3x = ln(ai, p["n3a"], p["n3b"])
        hidden = jnp.maximum(mm(n3x, p["w1"]) + p["b1"], 0.0)
        return mm(hidden, p["w2"]) + p["b2"] + ai

    return jax.vmap(one)(x, src_mask, tgt_mask)


# ------------------------------ param init -------------------------------------
def init_params(key, d_model, d_ff):
    keys = jax.random.split(key, 32)
    it = iter(keys)
    sc_d = 1.0 / math.sqrt(d_model)
    sc_f = 1.0 / math.sqrt(d_ff)
    p = {}
    for prefix in ("d", "e"):
        for name in ("q", "k", "v", "o"):
            p[f"{prefix}w{name}"] = sc_d * jax.random.normal(
                next(it), (d_model, d_model), jnp.float32)
            p[f"{prefix}b{name}"] = 0.01 * jax.random.normal(
                next(it), (1, d_model), jnp.float32)
    # Conv1d(k=1) weights, stored pre-transposed for (S,D) @ (D,d_ff) matmuls
    p["w1"] = sc_d * jax.random.normal(next(it), (d_model, d_ff), jnp.float32)
    p["b1"] = 0.01 * jax.random.normal(next(it), (1, d_ff), jnp.float32)
    p["w2"] = sc_f * jax.random.normal(next(it), (d_ff, d_model), jnp.float32)
    p["b2"] = 0.01 * jax.random.normal(next(it), (1, d_model), jnp.float32)
    # LayerNorm: a2 = ones, b2 = zeros (as in the module __init__)
    for n in ("n1", "n2", "n3"):
        p[f"{n}a"] = jnp.ones((1, d_model), jnp.float32)
        p[f"{n}b"] = jnp.zeros((1, d_model), jnp.float32)
    return p


# --------------------------------- main -----------------------------------------
if __name__ == "__main__":
    B, S, D, H, D_FF = 2, 8, 32, 4, 64

    key = jax.random.PRNGKey(0)
    kx, kenc, kparams = jax.random.split(key, 3)

    x = jax.random.normal(kx, (B, S, D), jnp.float32)
    encoder_out = jax.random.normal(kenc, (B, S, D), jnp.float32)  # unused by forward
    tgt_mask = jnp.broadcast_to(
        jnp.tril(jnp.ones((S, S), jnp.float32)), (B, S, S))
    src_mask = jnp.broadcast_to(
        jnp.concatenate([jnp.ones((S, S - 2)), jnp.zeros((S, 2))],
                        axis=-1).astype(jnp.float32), (B, S, S))

    params = init_params(kparams, D, D_FF)

    # 1) strict fp32 config: validates semantic fidelity to the PyTorch module
    out_f32 = decoder_layer(x, encoder_out, src_mask, tgt_mask, params, h=H,
                            mm_dtype=jnp.float32, approx=False)
    out_f32 = jax.block_until_ready(out_f32)
    ref_f32 = jax.block_until_ready(decoder_layer_ref(x, src_mask, tgt_mask, params, H))
    np.testing.assert_allclose(np.asarray(out_f32), np.asarray(ref_f32),
                               rtol=2e-3, atol=2e-3)

    # 2) performance config: bf16 MXU operands (fp32 accumulation) + approx recip
    out_bf16 = decoder_layer(x, encoder_out, src_mask, tgt_mask, params, h=H,
                             mm_dtype=jnp.bfloat16, approx=True)
    out_bf16 = jax.block_until_ready(out_bf16)
    ref_bf16 = jax.block_until_ready(
        decoder_layer_ref(x, src_mask, tgt_mask, params, H, mm_dtype=jnp.bfloat16))
    np.testing.assert_allclose(np.asarray(out_bf16), np.asarray(ref_bf16),
                               rtol=3e-2, atol=3e-2)

    assert out_f32.shape == (B, S, D) and out_bf16.shape == (B, S, D)
    print("KERNEL_OK")
</pallas_src>

<mosaic_0001>
module attributes {stable_mosaic.version = 11 : i64} {
  func.func @decoder_layer_kernel(%arg0: i32, %arg1: memref<1x8x32xf32, #tpu.memory_space<vmem>>, %arg2: memref<1x8x8xf32, #tpu.memory_space<vmem>>, %arg3: memref<1x8x8xf32, #tpu.memory_space<vmem>>, %arg4: memref<4x32x8xf32, #tpu.memory_space<vmem>>, %arg5: memref<4x1x8xf32, #tpu.memory_space<vmem>>, %arg6: memref<4x32x8xf32, #tpu.memory_space<vmem>>, %arg7: memref<4x1x8xf32, #tpu.memory_space<vmem>>, %arg8: memref<4x32x8xf32, #tpu.memory_space<vmem>>, %arg9: memref<4x1x8xf32, #tpu.memory_space<vmem>>, %arg10: memref<4x8x32xf32, #tpu.memory_space<vmem>>, %arg11: memref<1x32xf32, #tpu.memory_space<vmem>>, %arg12: memref<4x32x8xf32, #tpu.memory_space<vmem>>, %arg13: memref<4x1x8xf32, #tpu.memory_space<vmem>>, %arg14: memref<4x32x8xf32, #tpu.memory_space<vmem>>, %arg15: memref<4x1x8xf32, #tpu.memory_space<vmem>>, %arg16: memref<4x32x8xf32, #tpu.memory_space<vmem>>, %arg17: memref<4x1x8xf32, #tpu.memory_space<vmem>>, %arg18: memref<4x8x32xf32, #tpu.memory_space<vmem>>, %arg19: memref<1x32xf32, #tpu.memory_space<vmem>>, %arg20: memref<32x64xf32, #tpu.memory_space<vmem>>, %arg21: memref<1x64xf32, #tpu.memory_space<vmem>>, %arg22: memref<64x32xf32, #tpu.memory_space<vmem>>, %arg23: memref<1x32xf32, #tpu.memory_space<vmem>>, %arg24: memref<1x32xf32, #tpu.memory_space<vmem>>, %arg25: memref<1x32xf32, #tpu.memory_space<vmem>>, %arg26: memref<1x32xf32, #tpu.memory_space<vmem>>, %arg27: memref<1x32xf32, #tpu.memory_space<vmem>>, %arg28: memref<1x32xf32, #tpu.memory_space<vmem>>, %arg29: memref<1x32xf32, #tpu.memory_space<vmem>>, %arg30: memref<1x8x32xf32, #tpu.memory_space<vmem>>) attributes {dimension_semantics = [#tpu.dimension_semantics<parallel>], iteration_bounds = array<i64: 2>, scalar_prefetch = 0 : i64, scratch_operands = 0 : i64, tpu.core_type = #tpu.core_type<tc>, window_params = [{transform_indices = @transform_0, window_bounds = array<i64: 1, 8, 32>}, {transform_indices = @transform_1, window_bounds = array<i64: 1, 8, 8>}, {transform_indices = @transform_2, window_bounds = array<i64: 1, 8, 8>}, {pipeline_mode = #tpu.pipeline_mode<synchronous>, transform_indices = @transform_3, window_bounds = array<i64: 4, 32, 8>}, {pipeline_mode = #tpu.pipeline_mode<synchronous>, transform_indices = @transform_4, window_bounds = array<i64: 4, 1, 8>}, {pipeline_mode = #tpu.pipeline_mode<synchronous>, transform_indices = @transform_5, window_bounds = array<i64: 4, 32, 8>}, {pipeline_mode = #tpu.pipeline_mode<synchronous>, transform_indices = @transform_6, window_bounds = array<i64: 4, 1, 8>}, {pipeline_mode = #tpu.pipeline_mode<synchronous>, transform_indices = @transform_7, window_bounds = array<i64: 4, 32, 8>}, {pipeline_mode = #tpu.pipeline_mode<synchronous>, transform_indices = @transform_8, window_bounds = array<i64: 4, 1, 8>}, {pipeline_mode = #tpu.pipeline_mode<synchronous>, transform_indices = @transform_9, window_bounds = array<i64: 4, 8, 32>}, {pipeline_mode = #tpu.pipeline_mode<synchronous>, transform_indices = @transform_10, window_bounds = array<i64: 1, 32>}, {pipeline_mode = #tpu.pipeline_mode<synchronous>, transform_indices = @transform_11, window_bounds = array<i64: 4, 32, 8>}, {pipeline_mode = #tpu.pipeline_mode<synchronous>, transform_indices = @transform_12, window_bounds = array<i64: 4, 1, 8>}, {pipeline_mode = #tpu.pipeline_mode<synchronous>, transform_indices = @transform_13, window_bounds = array<i64: 4, 32, 8>}, {pipeline_mode = #tpu.pipeline_mode<synchronous>, transform_indices = @transform_14, window_bounds = array<i64: 4, 1, 8>}, {pipeline_mode = #tpu.pipeline_mode<synchronous>, transform_indices = @transform_15, window_bounds = array<i64: 4, 32, 8>}, {pipeline_mode = #tpu.pipeline_mode<synchronous>, transform_indices = @transform_16, window_bounds = array<i64: 4, 1, 8>}, {pipeline_mode = #tpu.pipeline_mode<synchronous>, transform_indices = @transform_17, window_bounds = array<i64: 4, 8, 32>}, {pipeline_mode = #tpu.pipeline_mode<synchronous>, transform_indices = @transform_18, window_bounds = array<i64: 1, 32>}, {pipeline_mode = #tpu.pipeline_mode<synchronous>, transform_indices = @transform_19, window_bounds = array<i64: 32, 64>}, {pipeline_mode = #tpu.pipeline_mode<synchronous>, transform_indices = @transform_20, window_bounds = array<i64: 1, 64>}, {pipeline_mode = #tpu.pipeline_mode<synchronous>, transform_indices = @transform_21, window_bounds = array<i64: 64, 32>}, {pipeline_mode = #tpu.pipeline_mode<synchronous>, transform_indices = @transform_22, window_bounds = array<i64: 1, 32>}, {pipeline_mode = #tpu.pipeline_mode<synchronous>, transform_indices = @transform_23, window_bounds = array<i64: 1, 32>}, {pipeline_mode = #tpu.pipeline_mode<synchronous>, transform_indices = @transform_24, window_bounds = array<i64: 1, 32>}, {pipeline_mode = #tpu.pipeline_mode<synchronous>, transform_indices = @transform_25, window_bounds = array<i64: 1, 32>}, {pipeline_mode = #tpu.pipeline_mode<synchronous>, transform_indices = @transform_26, window_bounds = array<i64: 1, 32>}, {pipeline_mode = #tpu.pipeline_mode<synchronous>, transform_indices = @transform_27, window_bounds = array<i64: 1, 32>}, {pipeline_mode = #tpu.pipeline_mode<synchronous>, transform_indices = @transform_28, window_bounds = array<i64: 1, 32>}, {transform_indices = @transform_29, window_bounds = array<i64: 1, 8, 32>}]} {
    %c0 = arith.constant 0 : index
    %c0_0 = arith.constant 0 : index
    %c0_1 = arith.constant 0 : index
    %0 = vector.load %arg1[%c0, %c0_0, %c0_1] : memref<1x8x32xf32, #tpu.memory_space<vmem>>, vector<1x8x32xf32>
    %1 = vector.shape_cast %0 : vector<1x8x32xf32> to vector<8x32xf32>
    %c0_2 = arith.constant 0 : index
    %c0_3 = arith.constant 0 : index
    %c0_4 = arith.constant 0 : index
    %2 = vector.load %arg3[%c0_2, %c0_3, %c0_4] : memref<1x8x8xf32, #tpu.memory_space<vmem>>, vector<1x8x8xf32>
    %3 = vector.shape_cast %2 : vector<1x8x8xf32> to vector<8x8xf32>
    %cst = arith.constant 0.000000e+00 : f32
    %4 = vector.broadcast %cst : f32 to vector<8x8xf32>
    %5 = arith.cmpf oeq, %3, %4 : vector<8x8xf32>
    %cst_5 = arith.constant -1.000000e+09 : f32
    %cst_6 = arith.constant 0.000000e+00 : f32
    %6 = vector.broadcast %cst_5 : f32 to vector<8x8xf32>
    %7 = vector.broadcast %cst_6 : f32 to vector<8x8xf32>
    %8 = arith.select %5, %6, %7 : vector<8x8xi1>, vector<8x8xf32>
    %c0_7 = arith.constant 0 : index
    %c0_8 = arith.constant 0 : index
    %c0_9 = arith.constant 0 : index
    %9 = vector.load %arg2[%c0_7, %c0_8, %c0_9] : memref<1x8x8xf32, #tpu.memory_space<vmem>>, vector<1x8x8xf32>
    %10 = vector.shape_cast %9 : vector<1x8x8xf32> to vector<8x8xf32>
    %cst_10 = arith.constant 0.000000e+00 : f32
    %11 = vector.broadcast %cst_10 : f32 to vector<8x8xf32>
    %12 = arith.cmpf oeq, %10, %11 : vector<8x8xf32>
    %cst_11 = arith.constant -1.000000e+09 : f32
    %cst_12 = arith.constant 0.000000e+00 : f32
    %13 = vector.broadcast %cst_11 : f32 to vector<8x8xf32>
    %14 = vector.broadcast %cst_12 : f32 to vector<8x8xf32>
    %15 = arith.select %12, %13, %14 : vector<8x8xi1>, vector<8x8xf32>
    %c0_13 = arith.constant 0 : index
    %c0_14 = arith.constant 0 : index
    %16 = vector.load %arg24[%c0_13, %c0_14] : memref<1x32xf32, #tpu.memory_space<vmem>>, vector<1x32xf32>
    %c0_15 = arith.constant 0 : index
    %c0_16 = arith.constant 0 : index
    %17 = vector.load %arg25[%c0_15, %c0_16] : memref<1x32xf32, #tpu.memory_space<vmem>>, vector<1x32xf32>
    %cst_17 = arith.constant dense<0.000000e+00> : vector<8xf32>
    %18 = vector.multi_reduction <add>, %1, %cst_17 [1] : vector<8x32xf32> to vector<8xf32>
    %19 = vector.shape_cast %18 : vector<8xf32> to vector<8x1xf32>
    %cst_18 = arith.constant 3.200000e+01 : f32
    %20 = vector.broadcast %cst_18 : f32 to vector<8x1xf32>
    %21 = arith.divf %19, %20 : vector<8x1xf32>
    %22 = vector.broadcast %21 : vector<8x1xf32> to vector<8x32xf32>
    %23 = arith.subf %1, %22 : vector<8x32xf32>
    %24 = arith.mulf %23, %23 : vector<8x32xf32>
    %cst_19 = arith.constant dense<0.000000e+00> : vector<8xf32>
    %25 = vector.multi_reduction <add>, %24, %cst_19 [1] : vector<8x32xf32> to vector<8xf32>
    %26 = vector.shape_cast %25 : vector<8xf32> to vector<8x1xf32>
    %cst_20 = arith.constant 0.0322580636 : f32
    %27 = vector.broadcast %cst_20 : f32 to vector<8x1xf32>
    %28 = arith.mulf %26, %27 : vector<8x1xf32>
    %29 = math.sqrt %28 : vector<8x1xf32>
    %cst_21 = arith.constant 9.99999997E-7 : f32
    %30 = vector.broadcast %cst_21 : f32 to vector<8x1xf32>
    %31 = arith.addf %29, %30 : vector<8x1xf32>
    %cst_22 = arith.constant 1.000000e+00 : f32
    %32 = vector.broadcast %cst_22 : f32 to vector<8x1xf32>
    %33 = arith.divf %32, %31 : vector<8x1xf32>
    %34 = vector.broadcast %21 : vector<8x1xf32> to vector<8x32xf32>
    %35 = arith.subf %1, %34 : vector<8x32xf32>
    %36 = vector.broadcast %16 : vector<1x32xf32> to vector<8x32xf32>
    %37 = arith.mulf %36, %35 : vector<8x32xf32>
    %38 = vector.broadcast %33 : vector<8x1xf32> to vector<8x32xf32>
    %39 = arith.mulf %37, %38 : vector<8x32xf32>
    %40 = vector.broadcast %17 : vector<1x32xf32> to vector<8x32xf32>
    %41 = arith.addf %39, %40 : vector<8x32xf32>
    %c0_23 = arith.constant 0 : index
    %c0_24 = arith.constant 0 : index
    %c0_25 = arith.constant 0 : index
    %42 = vector.load %arg4[%c0_23, %c0_24, %c0_25] : memref<4x32x8xf32, #tpu.memory_space<vmem>>, vector<4x32x8xf32>
    %c0_26 = arith.constant 0 : index
    %c0_27 = arith.constant 0 : index
    %c0_28 = arith.constant 0 : index
    %43 = vector.load %arg5[%c0_26, %c0_27, %c0_28] : memref<4x1x8xf32, #tpu.memory_space<vmem>>, vector<4x1x8xf32>
    %c0_29 = arith.constant 0 : index
    %c0_30 = arith.constant 0 : index
    %c0_31 = arith.constant 0 : index
    %44 = vector.load %arg6[%c0_29, %c0_30, %c0_31] : memref<4x32x8xf32, #tpu.memory_space<vmem>>, vector<4x32x8xf32>
    %c0_32 = arith.constant 0 : index
    %c0_33 = arith.constant 0 : index
    %c0_34 = arith.constant 0 : index
    %45 = vector.load %arg7[%c0_32, %c0_33, %c0_34] : memref<4x1x8xf32, #tpu.memory_space<vmem>>, vector<4x1x8xf32>
    %c0_35 = arith.constant 0 : index
    %c0_36 = arith.constant 0 : index
    %c0_37 = arith.constant 0 : index
    %46 = vector.load %arg8[%c0_35, %c0_36, %c0_37] : memref<4x32x8xf32, #tpu.memory_space<vmem>>, vector<4x32x8xf32>
    %c0_38 = arith.constant 0 : index
    %c0_39 = arith.constant 0 : index
    %c0_40 = arith.constant 0 : index
    %47 = vector.load %arg9[%c0_38, %c0_39, %c0_40] : memref<4x1x8xf32, #tpu.memory_space<vmem>>, vector<4x1x8xf32>
    %c0_41 = arith.constant 0 : index
    %c0_42 = arith.constant 0 : index
    %c0_43 = arith.constant 0 : index
    %48 = vector.load %arg10[%c0_41, %c0_42, %c0_43] : memref<4x8x32xf32, #tpu.memory_space<vmem>>, vector<4x8x32xf32>
    %c0_44 = arith.constant 0 : index
    %c0_45 = arith.constant 0 : index
    %49 = vector.load %arg11[%c0_44, %c0_45] : memref<1x32xf32, #tpu.memory_space<vmem>>, vector<1x32xf32>
    %50 = vector.shape_cast %41 : vector<8x32xf32> to vector<1x8x32xf32>
    %51 = vector.shape_cast %50 : vector<1x8x32xf32> to vector<1x8x32xf32>
    %52 = vector.broadcast %51 : vector<1x8x32xf32> to vector<4x8x32xf32>
    "tpu.trace_start"() <{level = 10 : i32, message = "hsd,hdk->hsk"}> : () -> ()
    %cst_46 = arith.constant dense<0.000000e+00> : vector<4x8x8xf32>
    %53 = tpu.matmul %52, %42, %cst_46 {dimension_numbers = #tpu.dot_dimension_numbers<[2], [1], [1], [2], [0, 0, 0, 1, 1, 2], [0], [0]>} : vector<4x8x32xf32>, vector<4x32x8xf32>, vector<4x8x8xf32> -> vector<4x8x8xf32>
    "tpu.trace_stop"() : () -> ()
    %54 = vector.broadcast %43 : vector<4x1x8xf32> to vector<4x8x8xf32>
    %55 = arith.addf %53, %54 : vector<4x8x8xf32>
    "tpu.trace_start"() <{level = 10 : i32, message = "hsd,hdk->hsk"}> : () -> ()
    %cst_47 = arith.constant dense<0.000000e+00> : vector<4x8x8xf32>
    %56 = tpu.matmul %52, %44, %cst_47 {dimension_numbers = #tpu.dot_dimension_numbers<[2], [1], [1], [2], [0, 0, 0, 1, 1, 2], [0], [0]>} : vector<4x8x32xf32>, vector<4x32x8xf32>, vector<4x8x8xf32> -> vector<4x8x8xf32>
    "tpu.trace_stop"() : () -> ()
    %57 = vector.broadcast %45 : vector<4x1x8xf32> to vector<4x8x8xf32>
    %58 = arith.addf %56, %57 : vector<4x8x8xf32>
    "tpu.trace_start"() <{level = 10 : i32, message = "hsd,hdk->hsk"}> : () -> ()
    %cst_48 = arith.constant dense<0.000000e+00> : vector<4x8x8xf32>
    %59 = tpu.matmul %52, %46, %cst_48 {dimension_numbers = #tpu.dot_dimension_numbers<[2], [1], [1], [2], [0, 0, 0, 1, 1, 2], [0], [0]>} : vector<4x8x32xf32>, vector<4x32x8xf32>, vector<4x8x8xf32> -> vector<4x8x8xf32>
    "tpu.trace_stop"() : () -> ()
    %60 = vector.broadcast %47 : vector<4x1x8xf32> to vector<4x8x8xf32>
    %61 = arith.addf %59, %60 : vector<4x8x8xf32>
    "tpu.trace_start"() <{level = 10 : i32, message = "hqd,hkd->hqk"}> : () -> ()
    %cst_49 = arith.constant dense<0.000000e+00> : vector<4x8x8xf32>
    %62 = tpu.matmul %55, %58, %cst_49 {dimension_numbers = #tpu.dot_dimension_numbers<[2], [2], [1], [1], [0, 0, 0, 1, 1, 1], [0], [0]>} : vector<4x8x8xf32>, vector<4x8x8xf32>, vector<4x8x8xf32> -> vector<4x8x8xf32>
    "tpu.trace_stop"() : () -> ()
    %cst_50 = arith.constant 0.353553385 : f32
    %63 = vector.broadcast %cst_50 : f32 to vector<4x8x8xf32>
    %64 = arith.mulf %62, %63 : vector<4x8x8xf32>
    %65 = vector.shape_cast %8 : vector<8x8xf32> to vector<1x8x8xf32>
    %66 = vector.broadcast %65 : vector<1x8x8xf32> to vector<4x8x8xf32>
    %67 = arith.addf %64, %66 : vector<4x8x8xf32>
    %cst_51 = arith.constant dense<0xFF800000> : vector<4x8xf32>
    %68 = vector.multi_reduction <maximumf>, %67, %cst_51 [2] : vector<4x8x8xf32> to vector<4x8xf32>
    %69 = vector.shape_cast %68 : vector<4x8xf32> to vector<4x8x1xf32>
    %70 = vector.broadcast %69 : vector<4x8x1xf32> to vector<4x8x8xf32>
    %71 = arith.subf %67, %70 : vector<4x8x8xf32>
    %72 = math.exp %71 : vector<4x8x8xf32>
    %cst_52 = arith.constant dense<0.000000e+00> : vector<4x8xf32>
    %73 = vector.multi_reduction <add>, %72, %cst_52 [2] : vector<4x8x8xf32> to vector<4x8xf32>
    %74 = vector.shape_cast %73 : vector<4x8xf32> to vector<4x8x1xf32>
    %cst_53 = arith.constant 1.000000e+00 : f32
    %75 = vector.broadcast %cst_53 : f32 to vector<4x8x1xf32>
    %76 = arith.divf %75, %74 : vector<4x8x1xf32>
    %77 = vector.broadcast %76 : vector<4x8x1xf32> to vector<4x8x8xf32>
    %78 = arith.mulf %72, %77 : vector<4x8x8xf32>
    "tpu.trace_start"() <{level = 10 : i32, message = "hqk,hkd->hqd"}> : () -> ()
    %cst_54 = arith.constant dense<0.000000e+00> : vector<4x8x8xf32>
    %79 = tpu.matmul %78, %61, %cst_54 {dimension_numbers = #tpu.dot_dimension_numbers<[2], [1], [1], [2], [0, 0, 0, 1, 1, 2], [0], [0]>} : vector<4x8x8xf32>, vector<4x8x8xf32>, vector<4x8x8xf32> -> vector<4x8x8xf32>
    "tpu.trace_stop"() : () -> ()
    "tpu.trace_start"() <{level = 10 : i32, message = "hqd,hdm->hqm"}> : () -> ()
    %cst_55 = arith.constant dense<0.000000e+00> : vector<4x8x32xf32>
    %80 = tpu.matmul %79, %48, %cst_55 {dimension_numbers = #tpu.dot_dimension_numbers<[2], [1], [1], [2], [0, 0, 0, 1, 1, 2], [0], [0]>} : vector<4x8x8xf32>, vector<4x8x32xf32>, vector<4x8x32xf32> -> vector<4x8x32xf32>
    "tpu.trace_stop"() : () -> ()
    %cst_56 = arith.constant dense<0.000000e+00> : vector<8x32xf32>
    %81 = vector.multi_reduction <add>, %80, %cst_56 [0] : vector<4x8x32xf32> to vector<8x32xf32>
    %82 = vector.broadcast %49 : vector<1x32xf32> to vector<8x32xf32>
    %83 = arith.addf %81, %82 : vector<8x32xf32>
    %84 = arith.addf %83, %1 : vector<8x32xf32>
    %c0_57 = arith.constant 0 : index
    %c0_58 = arith.constant 0 : index
    %85 = vector.load %arg26[%c0_57, %c0_58] : memref<1x32xf32, #tpu.memory_space<vmem>>, vector<1x32xf32>
    %c0_59 = arith.constant 0 : index
    %c0_60 = arith.constant 0 : index
    %86 = vector.load %arg27[%c0_59, %c0_60] : memref<1x32xf32, #tpu.memory_space<vmem>>, vector<1x32xf32>
    %cst_61 = arith.constant dense<0.000000e+00> : vector<8xf32>
    %87 = vector.multi_reduction <add>, %84, %cst_61 [1] : vector<8x32xf32> to vector<8xf32>
    %88 = vector.shape_cast %87 : vector<8xf32> to vector<8x1xf32>
    %cst_62 = arith.constant 3.200000e+01 : f32
    %89 = vector.broadcast %cst_62 : f32 to vector<8x1xf32>
    %90 = arith.divf %88, %89 : vector<8x1xf32>
    %91 = vector.broadcast %90 : vector<8x1xf32> to vector<8x32xf32>
    %92 = arith.subf %84, %91 : vector<8x32xf32>
    %93 = arith.mulf %92, %92 : vector<8x32xf32>
    %cst_63 = arith.constant dense<0.000000e+00> : vector<8xf32>
    %94 = vector.multi_reduction <add>, %93, %cst_63 [1] : vector<8x32xf32> to vector<8xf32>
    %95 = vector.shape_cast %94 : vector<8xf32> to vector<8x1xf32>
    %cst_64 = arith.constant 0.0322580636 : f32
    %96 = vector.broadcast %cst_64 : f32 to vector<8x1xf32>
    %97 = arith.mulf %95, %96 : vector<8x1xf32>
    %98 = math.sqrt %97 : vector<8x1xf32>
    %cst_65 = arith.constant 9.99999997E-7 : f32
    %99 = vector.broadcast %cst_65 : f32 to vector<8x1xf32>
    %100 = arith.addf %98, %99 : vector<8x1xf32>
    %cst_66 = arith.constant 1.000000e+00 : f32
    %101 = vector.broadcast %cst_66 : f32 to vector<8x1xf32>
    %102 = arith.divf %101, %100 : vector<8x1xf32>
    %103 = vector.broadcast %90 : vector<8x1xf32> to vector<8x32xf32>
    %104 = arith.subf %84, %103 : vector<8x32xf32>
    %105 = vector.broadcast %85 : vector<1x32xf32> to vector<8x32xf32>
    %106 = arith.mulf %105, %104 : vector<8x32xf32>
    %107 = vector.broadcast %102 : vector<8x1xf32> to vector<8x32xf32>
    %108 = arith.mulf %106, %107 : vector<8x32xf32>
    %109 = vector.broadcast %86 : vector<1x32xf32> to vector<8x32xf32>
    %110 = arith.addf %108, %109 : vector<8x32xf32>
    %c0_67 = arith.constant 0 : index
    %c0_68 = arith.constant 0 : index
    %c0_69 = arith.constant 0 : index
    %111 = vector.load %arg12[%c0_67, %c0_68, %c0_69] : memref<4x32x8xf32, #tpu.memory_space<vmem>>, vector<4x32x8xf32>
    %c0_70 = arith.constant 0 : index
    %c0_71 = arith.constant 0 : index
    %c0_72 = arith.constant 0 : index
    %112 = vector.load %arg13[%c0_70, %c0_71, %c0_72] : memref<4x1x8xf32, #tpu.memory_space<vmem>>, vector<4x1x8xf32>
    %c0_73 = arith.constant 0 : index
    %c0_74 = arith.constant 0 : index
    %c0_75 = arith.constant 0 : index
    %113 = vector.load %arg14[%c0_73, %c0_74, %c0_75] : memref<4x32x8xf32, #tpu.memory_space<vmem>>, vector<4x32x8xf32>
    %c0_76 = arith.constant 0 : index
    %c0_77 = arith.constant 0 : index
    %c0_78 = arith.constant 0 : index
    %114 = vector.load %arg15[%c0_76, %c0_77, %c0_78] : memref<4x1x8xf32, #tpu.memory_space<vmem>>, vector<4x1x8xf32>
    %c0_79 = arith.constant 0 : index
    %c0_80 = arith.constant 0 : index
    %c0_81 = arith.constant 0 : index
    %115 = vector.load %arg16[%c0_79, %c0_80, %c0_81] : memref<4x32x8xf32, #tpu.memory_space<vmem>>, vector<4x32x8xf32>
    %c0_82 = arith.constant 0 : index
    %c0_83 = arith.constant 0 : index
    %c0_84 = arith.constant 0 : index
    %116 = vector.load %arg17[%c0_82, %c0_83, %c0_84] : memref<4x1x8xf32, #tpu.memory_space<vmem>>, vector<4x1x8xf32>
    %c0_85 = arith.constant 0 : index
    %c0_86 = arith.constant 0 : index
    %c0_87 = arith.constant 0 : index
    %117 = vector.load %arg18[%c0_85, %c0_86, %c0_87] : memref<4x8x32xf32, #tpu.memory_space<vmem>>, vector<4x8x32xf32>
    %c0_88 = arith.constant 0 : index
    %c0_89 = arith.constant 0 : index
    %118 = vector.load %arg19[%c0_88, %c0_89] : memref<1x32xf32, #tpu.memory_space<vmem>>, vector<1x32xf32>
    %119 = vector.shape_cast %110 : vector<8x32xf32> to vector<1x8x32xf32>
    %120 = vector.shape_cast %119 : vector<1x8x32xf32> to vector<1x8x32xf32>
    %121 = vector.broadcast %120 : vector<1x8x32xf32> to vector<4x8x32xf32>
    "tpu.trace_start"() <{level = 10 : i32, message = "hsd,hdk->hsk"}> : () -> ()
    %cst_90 = arith.constant dense<0.000000e+00> : vector<4x8x8xf32>
    %122 = tpu.matmul %121, %111, %cst_90 {dimension_numbers = #tpu.dot_dimension_numbers<[2], [1], [1], [2], [0, 0, 0, 1, 1, 2], [0], [0]>} : vector<4x8x32xf32>, vector<4x32x8xf32>, vector<4x8x8xf32> -> vector<4x8x8xf32>
    "tpu.trace_stop"() : () -> ()
    %123 = vector.broadcast %112 : vector<4x1x8xf32> to vector<4x8x8xf32>
    %124 = arith.addf %122, %123 : vector<4x8x8xf32>
    "tpu.trace_start"() <{level = 10 : i32, message = "hsd,hdk->hsk"}> : () -> ()
    %cst_91 = arith.constant dense<0.000000e+00> : vector<4x8x8xf32>
    %125 = tpu.matmul %121, %113, %cst_91 {dimension_numbers = #tpu.dot_dimension_numbers<[2], [1], [1], [2], [0, 0, 0, 1, 1, 2], [0], [0]>} : vector<4x8x32xf32>, vector<4x32x8xf32>, vector<4x8x8xf32> -> vector<4x8x8xf32>
    "tpu.trace_stop"() : () -> ()
    %126 = vector.broadcast %114 : vector<4x1x8xf32> to vector<4x8x8xf32>
    %127 = arith.addf %125, %126 : vector<4x8x8xf32>
    "tpu.trace_start"() <{level = 10 : i32, message = "hsd,hdk->hsk"}> : () -> ()
    %cst_92 = arith.constant dense<0.000000e+00> : vector<4x8x8xf32>
    %128 = tpu.matmul %121, %115, %cst_92 {dimension_numbers = #tpu.dot_dimension_numbers<[2], [1], [1], [2], [0, 0, 0, 1, 1, 2], [0], [0]>} : vector<4x8x32xf32>, vector<4x32x8xf32>, vector<4x8x8xf32> -> vector<4x8x8xf32>
    "tpu.trace_stop"() : () -> ()
    %129 = vector.broadcast %116 : vector<4x1x8xf32> to vector<4x8x8xf32>
    %130 = arith.addf %128, %129 : vector<4x8x8xf32>
    "tpu.trace_start"() <{level = 10 : i32, message = "hqd,hkd->hqk"}> : () -> ()
    %cst_93 = arith.constant dense<0.000000e+00> : vector<4x8x8xf32>
    %131 = tpu.matmul %124, %127, %cst_93 {dimension_numbers = #tpu.dot_dimension_numbers<[2], [2], [1], [1], [0, 0, 0, 1, 1, 1], [0], [0]>} : vector<4x8x8xf32>, vector<4x8x8xf32>, vector<4x8x8xf32> -> vector<4x8x8xf32>
    "tpu.trace_stop"() : () -> ()
    %cst_94 = arith.constant 0.353553385 : f32
    %132 = vector.broadcast %cst_94 : f32 to vector<4x8x8xf32>
    %133 = arith.mulf %131, %132 : vector<4x8x8xf32>
    %134 = vector.shape_cast %15 : vector<8x8xf32> to vector<1x8x8xf32>
    %135 = vector.broadcast %134 : vector<1x8x8xf32> to vector<4x8x8xf32>
    %136 = arith.addf %133, %135 : vector<4x8x8xf32>
    %cst_95 = arith.constant dense<0xFF800000> : vector<4x8xf32>
    %137 = vector.multi_reduction <maximumf>, %136, %cst_95 [2] : vector<4x8x8xf32> to vector<4x8xf32>
    %138 = vector.shape_cast %137 : vector<4x8xf32> to vector<4x8x1xf32>
    %139 = vector.broadcast %138 : vector<4x8x1xf32> to vector<4x8x8xf32>
    %140 = arith.subf %136, %139 : vector<4x8x8xf32>
    %141 = math.exp %140 : vector<4x8x8xf32>
    %cst_96 = arith.constant dense<0.000000e+00> : vector<4x8xf32>
    %142 = vector.multi_reduction <add>, %141, %cst_96 [2] : vector<4x8x8xf32> to vector<4x8xf32>
    %143 = vector.shape_cast %142 : vector<4x8xf32> to vector<4x8x1xf32>
    %cst_97 = arith.constant 1.000000e+00 : f32
    %144 = vector.broadcast %cst_97 : f32 to vector<4x8x1xf32>
    %145 = arith.divf %144, %143 : vector<4x8x1xf32>
    %146 = vector.broadcast %145 : vector<4x8x1xf32> to vector<4x8x8xf32>
    %147 = arith.mulf %141, %146 : vector<4x8x8xf32>
    "tpu.trace_start"() <{level = 10 : i32, message = "hqk,hkd->hqd"}> : () -> ()
    %cst_98 = arith.constant dense<0.000000e+00> : vector<4x8x8xf32>
    %148 = tpu.matmul %147, %130, %cst_98 {dimension_numbers = #tpu.dot_dimension_numbers<[2], [1], [1], [2], [0, 0, 0, 1, 1, 2], [0], [0]>} : vector<4x8x8xf32>, vector<4x8x8xf32>, vector<4x8x8xf32> -> vector<4x8x8xf32>
    "tpu.trace_stop"() : () -> ()
    "tpu.trace_start"() <{level = 10 : i32, message = "hqd,hdm->hqm"}> : () -> ()
    %cst_99 = arith.constant dense<0.000000e+00> : vector<4x8x32xf32>
    %149 = tpu.matmul %148, %117, %cst_99 {dimension_numbers = #tpu.dot_dimension_numbers<[2], [1], [1], [2], [0, 0, 0, 1, 1, 2], [0], [0]>} : vector<4x8x8xf32>, vector<4x8x32xf32>, vector<4x8x32xf32> -> vector<4x8x32xf32>
    "tpu.trace_stop"() : () -> ()
    %cst_100 = arith.constant dense<0.000000e+00> : vector<8x32xf32>
    %150 = vector.multi_reduction <add>, %149, %cst_100 [0] : vector<4x8x32xf32> to vector<8x32xf32>
    %151 = vector.broadcast %118 : vector<1x32xf32> to vector<8x32xf32>
    %152 = arith.addf %150, %151 : vector<8x32xf32>
    %153 = arith.addf %152, %84 : vector<8x32xf32>
    %c0_101 = arith.constant 0 : index
    %c0_102 = arith.constant 0 : index
    %154 = vector.load %arg28[%c0_101, %c0_102] : memref<1x32xf32, #tpu.memory_space<vmem>>, vector<1x32xf32>
    %c0_103 = arith.constant 0 : index
    %c0_104 = arith.constant 0 : index
    %155 = vector.load %arg29[%c0_103, %c0_104] : memref<1x32xf32, #tpu.memory_space<vmem>>, vector<1x32xf32>
    %cst_105 = arith.constant dense<0.000000e+00> : vector<8xf32>
    %156 = vector.multi_reduction <add>, %153, %cst_105 [1] : vector<8x32xf32> to vector<8xf32>
    %157 = vector.shape_cast %156 : vector<8xf32> to vector<8x1xf32>
    %cst_106 = arith.constant 3.200000e+01 : f32
    %158 = vector.broadcast %cst_106 : f32 to vector<8x1xf32>
    %159 = arith.divf %157, %158 : vector<8x1xf32>
    %160 = vector.broadcast %159 : vector<8x1xf32> to vector<8x32xf32>
    %161 = arith.subf %153, %160 : vector<8x32xf32>
    %162 = arith.mulf %161, %161 : vector<8x32xf32>
    %cst_107 = arith.constant dense<0.000000e+00> : vector<8xf32>
    %163 = vector.multi_reduction <add>, %162, %cst_107 [1] : vector<8x32xf32> to vector<8xf32>
    %164 = vector.shape_cast %163 : vector<8xf32> to vector<8x1xf32>
    %cst_108 = arith.constant 0.0322580636 : f32
    %165 = vector.broadcast %cst_108 : f32 to vector<8x1xf32>
    %166 = arith.mulf %164, %165 : vector<8x1xf32>
    %167 = math.sqrt %166 : vector<8x1xf32>
    %cst_109 = arith.constant 9.99999997E-7 : f32
    %168 = vector.broadcast %cst_109 : f32 to vector<8x1xf32>
    %169 = arith.addf %167, %168 : vector<8x1xf32>
    %cst_110 = arith.constant 1.000000e+00 : f32
    %170 = vector.broadcast %cst_110 : f32 to vector<8x1xf32>
    %171 = arith.divf %170, %169 : vector<8x1xf32>
    %172 = vector.broadcast %159 : vector<8x1xf32> to vector<8x32xf32>
    %173 = arith.subf %153, %172 : vector<8x32xf32>
    %174 = vector.broadcast %154 : vector<1x32xf32> to vector<8x32xf32>
    %175 = arith.mulf %174, %173 : vector<8x32xf32>
    %176 = vector.broadcast %171 : vector<8x1xf32> to vector<8x32xf32>
    %177 = arith.mulf %175, %176 : vector<8x32xf32>
    %178 = vector.broadcast %155 : vector<1x32xf32> to vector<8x32xf32>
    %179 = arith.addf %177, %178 : vector<8x32xf32>
    %c0_111 = arith.constant 0 : index
    %c0_112 = arith.constant 0 : index
    %180 = vector.load %arg20[%c0_111, %c0_112] : memref<32x64xf32, #tpu.memory_space<vmem>>, vector<32x64xf32>
    %cst_113 = arith.constant dense<0.000000e+00> : vector<8x64xf32>
    %181 = tpu.matmul %179, %180, %cst_113 {dimension_numbers = #tpu.dot_dimension_numbers<[1], [0], [0], [1], [0, 0, 1, 1], [], []>} : vector<8x32xf32>, vector<32x64xf32>, vector<8x64xf32> -> vector<8x64xf32>
    %c0_114 = arith.constant 0 : index
    %c0_115 = arith.constant 0 : index
    %182 = vector.load %arg21[%c0_114, %c0_115] : memref<1x64xf32, #tpu.memory_space<vmem>>, vector<1x64xf32>
    %183 = vector.broadcast %182 : vector<1x64xf32> to vector<8x64xf32>
    %184 = arith.addf %181, %183 : vector<8x64xf32>
    %cst_116 = arith.constant 0.000000e+00 : f32
    %185 = vector.broadcast %cst_116 : f32 to vector<8x64xf32>
    %186 = arith.maximumf %184, %185 : vector<8x64xf32>
    %c0_117 = arith.constant 0 : index
    %c0_118 = arith.constant 0 : index
    %187 = vector.load %arg22[%c0_117, %c0_118] : memref<64x32xf32, #tpu.memory_space<vmem>>, vector<64x32xf32>
    %cst_119 = arith.constant dense<0.000000e+00> : vector<8x32xf32>
    %188 = tpu.matmul %186, %187, %cst_119 {dimension_numbers = #tpu.dot_dimension_numbers<[1], [0], [0], [1], [0, 0, 1, 1], [], []>} : vector<8x64xf32>, vector<64x32xf32>, vector<8x32xf32> -> vector<8x32xf32>
    %c0_120 = arith.constant 0 : index
    %c0_121 = arith.constant 0 : index
    %189 = vector.load %arg23[%c0_120, %c0_121] : memref<1x32xf32, #tpu.memory_space<vmem>>, vector<1x32xf32>
    %190 = vector.broadcast %189 : vector<1x32xf32> to vector<8x32xf32>
    %191 = arith.addf %188, %190 : vector<8x32xf32>
    %192 = arith.addf %191, %153 : vector<8x32xf32>
    %c0_122 = arith.constant 0 : index
    %c0_123 = arith.constant 0 : index
    %c0_124 = arith.constant 0 : index
    %193 = vector.load %arg30[%c0_122, %c0_123, %c0_124] : memref<1x8x32xf32, #tpu.memory_space<vmem>>, vector<1x8x32xf32>
    %194 = vector.shape_cast %193 : vector<1x8x32xf32> to vector<8x32xf32>
    %195 = vector.shape_cast %192 : vector<8x32xf32> to vector<1x8x32xf32>
    tpu.vector_store %arg30[%c0_122, %c0_123, %c0_124], %195 {strides = array<i32>} : memref<1x8x32xf32, #tpu.memory_space<vmem>>, vector<1x8x32xf32>,
    return
  }
  func.func @transform_0(%arg0: i32) -> (i32, i32, i32) {
    %c0_i32 = arith.constant 0 : i32
    %c0_i32_0 = arith.constant 0 : i32
    %c0_i32_1 = arith.constant 0 : i32
    return %arg0, %c0_i32, %c0_i32_0 : i32, i32, i32
  }
  func.func @transform_1(%arg0: i32) -> (i32, i32, i32) {
    %c0_i32 = arith.constant 0 : i32
    %c0_i32_0 = arith.constant 0 : i32
    %c0_i32_1 = arith.constant 0 : i32
    return %arg0, %c0_i32, %c0_i32_0 : i32, i32, i32
  }
  func.func @transform_2(%arg0: i32) -> (i32, i32, i32) {
    %c0_i32 = arith.constant 0 : i32
    %c0_i32_0 = arith.constant 0 : i32
    %c0_i32_1 = arith.constant 0 : i32
    return %arg0, %c0_i32, %c0_i32_0 : i32, i32, i32
  }
  func.func @transform_3(%arg0: i32) -> (i32, i32, i32) {
    %c0_i32 = arith.constant 0 : i32
    %c0_i32_0 = arith.constant 0 : i32
    %c0_i32_1 = arith.constant 0 : i32
    %c0_i32_2 = arith.constant 0 : i32
    return %c0_i32, %c0_i32_0, %c0_i32_1 : i32, i32, i32
  }
  func.func @transform_4(%arg0: i32) -> (i32, i32, i32) {
    %c0_i32 = arith.constant 0 : i32
    %c0_i32_0 = arith.constant 0 : i32
    %c0_i32_1 = arith.constant 0 : i32
    %c0_i32_2 = arith.constant 0 : i32
    return %c0_i32, %c0_i32_0, %c0_i32_1 : i32, i32, i32
  }
  func.func @transform_5(%arg0: i32) -> (i32, i32, i32) {
    %c0_i32 = arith.constant 0 : i32
    %c0_i32_0 = arith.constant 0 : i32
    %c0_i32_1 = arith.constant 0 : i32
    %c0_i32_2 = arith.constant 0 : i32
    return %c0_i32, %c0_i32_0, %c0_i32_1 : i32, i32, i32
  }
  func.func @transform_6(%arg0: i32) -> (i32, i32, i32) {
    %c0_i32 = arith.constant 0 : i32
    %c0_i32_0 = arith.constant 0 : i32
    %c0_i32_1 = arith.constant 0 : i32
    %c0_i32_2 = arith.constant 0 : i32
    return %c0_i32, %c0_i32_0, %c0_i32_1 : i32, i32, i32
  }
  func.func @transform_7(%arg0: i32) -> (i32, i32, i32) {
    %c0_i32 = arith.constant 0 : i32
    %c0_i32_0 = arith.constant 0 : i32
    %c0_i32_1 = arith.constant 0 : i32
    %c0_i32_2 = arith.constant 0 : i32
    return %c0_i32, %c0_i32_0, %c0_i32_1 : i32, i32, i32
  }
  func.func @transform_8(%arg0: i32) -> (i32, i32, i32) {
    %c0_i32 = arith.constant 0 : i32
    %c0_i32_0 = arith.constant 0 : i32
    %c0_i32_1 = arith.constant 0 : i32
    %c0_i32_2 = arith.constant 0 : i32
    return %c0_i32, %c0_i32_0, %c0_i32_1 : i32, i32, i32
  }
  func.func @transform_9(%arg0: i32) -> (i32, i32, i32) {
    %c0_i32 = arith.constant 0 : i32
    %c0_i32_0 = arith.constant 0 : i32
    %c0_i32_1 = arith.constant 0 : i32
    %c0_i32_2 = arith.constant 0 : i32
    return %c0_i32, %c0_i32_0, %c0_i32_1 : i32, i32, i32
  }
  func.func @transform_10(%arg0: i32) -> (i32, i32) {
    %c0_i32 = arith.constant 0 : i32
    %c0_i32_0 = arith.constant 0 : i32
    %c0_i32_1 = arith.constant 0 : i32
    return %c0_i32, %c0_i32_0 : i32, i32
  }
  func.func @transform_11(%arg0: i32) -> (i32, i32, i32) {
    %c0_i32 = arith.constant 0 : i32
    %c0_i32_0 = arith.constant 0 : i32
    %c0_i32_1 = arith.constant 0 : i32
    %c0_i32_2 = arith.constant 0 : i32
    return %c0_i32, %c0_i32_0, %c0_i32_1 : i32, i32, i32
  }
  func.func @transform_12(%arg0: i32) -> (i32, i32, i32) {
    %c0_i32 = arith.constant 0 : i32
    %c0_i32_0 = arith.constant 0 : i32
    %c0_i32_1 = arith.constant 0 : i32
    %c0_i32_2 = arith.constant 0 : i32
    return %c0_i32, %c0_i32_0, %c0_i32_1 : i32, i32, i32
  }
  func.func @transform_13(%arg0: i32) -> (i32, i32, i32) {
    %c0_i32 = arith.constant 0 : i32
    %c0_i32_0 = arith.constant 0 : i32
    %c0_i32_1 = arith.constant 0 : i32
    %c0_i32_2 = arith.constant 0 : i32
    return %c0_i32, %c0_i32_0, %c0_i32_1 : i32, i32, i32
  }
  func.func @transform_14(%arg0: i32) -> (i32, i32, i32) {
    %c0_i32 = arith.constant 0 : i32
    %c0_i32_0 = arith.constant 0 : i32
    %c0_i32_1 = arith.constant 0 : i32
    %c0_i32_2 = arith.constant 0 : i32
    return %c0_i32, %c0_i32_0, %c0_i32_1 : i32, i32, i32
  }
  func.func @transform_15(%arg0: i32) -> (i32, i32, i32) {
    %c0_i32 = arith.constant 0 : i32
    %c0_i32_0 = arith.constant 0 : i32
    %c0_i32_1 = arith.constant 0 : i32
    %c0_i32_2 = arith.constant 0 : i32
    return %c0_i32, %c0_i32_0, %c0_i32_1 : i32, i32, i32
  }
  func.func @transform_16(%arg0: i32) -> (i32, i32, i32) {
    %c0_i32 = arith.constant 0 : i32
    %c0_i32_0 = arith.constant 0 : i32
    %c0_i32_1 = arith.constant 0 : i32
    %c0_i32_2 = arith.constant 0 : i32
    return %c0_i32, %c0_i32_0, %c0_i32_1 : i32, i32, i32
  }
  func.func @transform_17(%arg0: i32) -> (i32, i32, i32) {
    %c0_i32 = arith.constant 0 : i32
    %c0_i32_0 = arith.constant 0 : i32
    %c0_i32_1 = arith.constant 0 : i32
    %c0_i32_2 = arith.constant 0 : i32
    return %c0_i32, %c0_i32_0, %c0_i32_1 : i32, i32, i32
  }
  func.func @transform_18(%arg0: i32) -> (i32, i32) {
    %c0_i32 = arith.constant 0 : i32
    %c0_i32_0 = arith.constant 0 : i32
    %c0_i32_1 = arith.constant 0 : i32
    return %c0_i32, %c0_i32_0 : i32, i32
  }
  func.func @transform_19(%arg0: i32) -> (i32, i32) {
    %c0_i32 = arith.constant 0 : i32
    %c0_i32_0 = arith.constant 0 : i32
    %c0_i32_1 = arith.constant 0 : i32
    return %c0_i32, %c0_i32_0 : i32, i32
  }
  func.func @transform_20(%arg0: i32) -> (i32, i32) {
    %c0_i32 = arith.constant 0 : i32
    %c0_i32_0 = arith.constant 0 : i32
    %c0_i32_1 = arith.constant 0 : i32
    return %c0_i32, %c0_i32_0 : i32, i32
  }
  func.func @transform_21(%arg0: i32) -> (i32, i32) {
    %c0_i32 = arith.constant 0 : i32
    %c0_i32_0 = arith.constant 0 : i32
    %c0_i32_1 = arith.constant 0 : i32
    return %c0_i32, %c0_i32_0 : i32, i32
  }
  func.func @transform_22(%arg0: i32) -> (i32, i32) {
    %c0_i32 = arith.constant 0 : i32
    %c0_i32_0 = arith.constant 0 : i32
    %c0_i32_1 = arith.constant 0 : i32
    return %c0_i32, %c0_i32_0 : i32, i32
  }
  func.func @transform_23(%arg0: i32) -> (i32, i32) {
    %c0_i32 = arith.constant 0 : i32
    %c0_i32_0 = arith.constant 0 : i32
    %c0_i32_1 = arith.constant 0 : i32
    return %c0_i32, %c0_i32_0 : i32, i32
  }
  func.func @transform_24(%arg0: i32) -> (i32, i32) {
    %c0_i32 = arith.constant 0 : i32
    %c0_i32_0 = arith.constant 0 : i32
    %c0_i32_1 = arith.constant 0 : i32
    return %c0_i32, %c0_i32_0 : i32, i32
  }
  func.func @transform_25(%arg0: i32) -> (i32, i32) {
    %c0_i32 = arith.constant 0 : i32
    %c0_i32_0 = arith.constant 0 : i32
    %c0_i32_1 = arith.constant 0 : i32
    return %c0_i32, %c0_i32_0 : i32, i32
  }
  func.func @transform_26(%arg0: i32) -> (i32, i32) {
    %c0_i32 = arith.constant 0 : i32
    %c0_i32_0 = arith.constant 0 : i32
    %c0_i32_1 = arith.constant 0 : i32
    return %c0_i32, %c0_i32_0 : i32, i32
  }
  func.func @transform_27(%arg0: i32) -> (i32, i32) {
    %c0_i32 = arith.constant 0 : i32
    %c0_i32_0 = arith.constant 0 : i32
    %c0_i32_1 = arith.constant 0 : i32
    return %c0_i32, %c0_i32_0 : i32, i32
  }
  func.func @transform_28(%arg0: i32) -> (i32, i32) {
    %c0_i32 = arith.constant 0 : i32
    %c0_i32_0 = arith.constant 0 : i32
    %c0_i32_1 = arith.constant 0 : i32
    return %c0_i32, %c0_i32_0 : i32, i32
  }
  func.func @transform_29(%arg0: i32) -> (i32, i32, i32) {
    %c0_i32 = arith.constant 0 : i32
    %c0_i32_0 = arith.constant 0 : i32
    %c0_i32_1 = arith.constant 0 : i32
    return %arg0, %c0_i32, %c0_i32_0 : i32, i32, i32
  }
}

</mosaic_0001>

<llo_original>
// kernel: tpu_custom_call.1
$region0: #{tpu_custom_call.1}
  #allocation0 [shape = 'u32[]', space=smem, size = 0x4, offset = 0x4, fixed_abs, tag = 'smem constant byte address 0x4 - core index']
  #allocation1 [shape = 'u32[72,128]{1,0:T(1,128)}', space=vmem, size = 0x9000, scoped, tag = 'internal scratch']
  %s0 = inlined_call_operand.smem [shape: u32[30], index: -1, kind: input, shape index: {}]
  %s1 = sld [smem:[%s0]]
  %s2 = scalar_lea.smem %s0, 1
  %s3 = sld [smem:[%s2]]
  %s4 = scalar_lea.smem %s0, 2
  %s5 = sld [smem:[%s4]]
  %s6 = scalar_lea.smem %s0, 3
  %s7 = sld [smem:[%s6]]
  %s8 = scalar_lea.smem %s0, 4
  %s9 = sld [smem:[%s8]]
  %s10 = scalar_lea.smem %s0, 5
  %s11 = sld [smem:[%s10]]
  %s12 = scalar_lea.smem %s0, 6
  %s13 = sld [smem:[%s12]]
  %s14 = scalar_lea.smem %s0, 7
  %s15 = sld [smem:[%s14]]
  %s16 = scalar_lea.smem %s0, 8
  %s17 = sld [smem:[%s16]]
  %s18 = scalar_lea.smem %s0, 9
  %s19 = sld [smem:[%s18]]
  %s20 = scalar_lea.smem %s0, 10
  %s21 = sld [smem:[%s20]]
  %s22 = scalar_lea.smem %s0, 11
  %s23 = sld [smem:[%s22]]
  %s24 = scalar_lea.smem %s0, 12
  %s25 = sld [smem:[%s24]]
  %s26 = scalar_lea.smem %s0, 13
  %s27 = sld [smem:[%s26]]
  %s28 = scalar_lea.smem %s0, 14
  %s29 = sld [smem:[%s28]]
  %s30 = scalar_lea.smem %s0, 15
  %s31 = sld [smem:[%s30]]
  %s32 = scalar_lea.smem %s0, 16
  %s33 = sld [smem:[%s32]]
  %s34 = scalar_lea.smem %s0, 17
  %s35 = sld [smem:[%s34]]
  %s36 = scalar_lea.smem %s0, 18
  %s37 = sld [smem:[%s36]]
  %s38 = scalar_lea.smem %s0, 19
  %s39 = sld [smem:[%s38]]
  %s40 = scalar_lea.smem %s0, 20
  %s41 = sld [smem:[%s40]]
  %s42 = scalar_lea.smem %s0, 21
  %s43 = sld [smem:[%s42]]
  %s44 = scalar_lea.smem %s0, 22
  %s45 = sld [smem:[%s44]]
  %s46 = scalar_lea.smem %s0, 23
  %s47 = sld [smem:[%s46]]
  %s48 = scalar_lea.smem %s0, 24
  %s49 = sld [smem:[%s48]]
  %s50 = scalar_lea.smem %s0, 25
  %s51 = sld [smem:[%s50]]
  %s52 = scalar_lea.smem %s0, 26
  %s53 = sld [smem:[%s52]]
  %s54 = scalar_lea.smem %s0, 27
  %s55 = sld [smem:[%s54]]
  %s56 = scalar_lea.smem %s0, 28
  %s57 = sld [smem:[%s56]]
  %s58 = scalar_lea.smem %s0, 29
  %s59 = sld [smem:[%s58]]
  %s60 = sld [smem:[#allocation0]]
  $region149: #{tpu_custom_call.1} parent=0
    _
  %s62 = ssub.s32 1, %s60
  %s63 = scalar_select 0, %s62, %s60
  $region1: #{tpu_custom_call.1} parent=0
    #allocation2 [shape = 'u8[8192]{0}', space=vmem, size = 0x2000, scoped, tag = 'output window, operand 0']
    #allocation3 [shape = 's32[2]{0}', space=sflag, size = 0x8, scoped, tag = 'scoped memory for tpu_custom_call.1']
    %64 = vsyncpa [#allocation3], 0
    %s65 = scalar_lea.sflag [#allocation3], 1
    %66 = vsyncpa %s65, 0
    loop: start=0, step=1, limit=4
    $region2: #{tpu_custom_call.1} parent=1 // loop_pre_header
      _
    $region3: #{tpu_custom_call.1} parent=1 // loop_header
      %s68 = sphi 0, %s72
      %p69 = scmp.ge.s32.totalorder %s68, 4
      %s78 = sphi 0, %s80
      %s81 = sphi 0, %s78
      %s82 = sphi 0, %s81
      %s98 = sphi 0, %s82
      %s104 = sphi 0, %s106
      %s107 = sphi 0, %s104
      %s108 = sphi 0, %s107
      %s124 = sphi 0, %s108
      %s130 = sphi 0, %s132
      %s133 = sphi 0, %s130
      %s134 = sphi 0, %s133
      %s150 = sphi 0, %s134
      %s154 = sphi 0, %s154
      %s156 = sphi 0, %s154
      %s157 = sphi 0, %s156
      %s171 = sphi 0, %s157
      %s175 = sphi 0, %s175
      %s177 = sphi 0, %s175
      %s178 = sphi 0, %s177
      %s192 = sphi 0, %s178
      %s196 = sphi 0, %s196
      %s198 = sphi 0, %s196
      %s199 = sphi 0, %s198
      %s213 = sphi 0, %s199
      %s217 = sphi 0, %s217
      %s219 = sphi 0, %s217
      %s220 = sphi 0, %s219
      %s234 = sphi 0, %s220
      %s238 = sphi 0, %s238
      %s240 = sphi 0, %s238
      %s241 = sphi 0, %s240
      %s255 = sphi 0, %s241
      %s259 = sphi 0, %s259
      %s261 = sphi 0, %s259
      %s262 = sphi 0, %s261
      %s276 = sphi 0, %s262
      %s280 = sphi 0, %s280
      %s282 = sphi 0, %s280
      %s283 = sphi 0, %s282
      %s297 = sphi 0, %s283
      %s301 = sphi 0, %s301
      %s303 = sphi 0, %s301
      %s304 = sphi 0, %s303
      %s318 = sphi 0, %s304
      %s322 = sphi 0, %s322
      %s324 = sphi 0, %s322
      %s325 = sphi 0, %s324
      %s339 = sphi 0, %s325
      %s343 = sphi 0, %s343
      %s345 = sphi 0, %s343
      %s346 = sphi 0, %s345
      %s360 = sphi 0, %s346
      %s364 = sphi 0, %s364
      %s366 = sphi 0, %s364
      %s367 = sphi 0, %s366
      %s381 = sphi 0, %s367
      %s385 = sphi 0, %s385
      %s387 = sphi 0, %s385
      %s388 = sphi 0, %s387
      %s402 = sphi 0, %s388
      %s406 = sphi 0, %s406
      %s408 = sphi 0, %s406
      %s409 = sphi 0, %s408
      %s423 = sphi 0, %s409
      %s427 = sphi 0, %s427
      %s429 = sphi 0, %s427
      %s430 = sphi 0, %s429
      %s444 = sphi 0, %s430
      %s448 = sphi 0, %s448
      %s450 = sphi 0, %s448
      %s451 = sphi 0, %s450
      %s465 = sphi 0, %s451
      %s469 = sphi 0, %s469
      %s471 = sphi 0, %s469
      %s472 = sphi 0, %s471
      %s486 = sphi 0, %s472
      %s490 = sphi 0, %s490
      %s492 = sphi 0, %s490
      %s493 = sphi 0, %s492
      %s507 = sphi 0, %s493
      %s511 = sphi 0, %s511
      %s513 = sphi 0, %s511
      %s514 = sphi 0, %s513
      %s528 = sphi 0, %s514
      %s532 = sphi 0, %s532
      %s534 = sphi 0, %s532
      %s535 = sphi 0, %s534
      %s549 = sphi 0, %s535
      %s553 = sphi 0, %s553
      %s555 = sphi 0, %s553
      %s556 = sphi 0, %s555
      %s570 = sphi 0, %s556
      %s574 = sphi 0, %s574
      %s576 = sphi 0, %s574
      %s577 = sphi 0, %s576
      %s591 = sphi 0, %s577
      %s595 = sphi 0, %s595
      %s597 = sphi 0, %s595
      %s598 = sphi 0, %s597
      %s612 = sphi 0, %s598
      %s616 = sphi 0, %s616
      %s618 = sphi 0, %s616
      %s619 = sphi 0, %s618
      %s633 = sphi 0, %s619
      %s637 = sphi 0, %s637
      %s639 = sphi 0, %s637
      %s640 = sphi 0, %s639
      %s654 = sphi 0, %s640
      %s658 = sphi 0, %s658
      %s660 = sphi 0, %s658
      %s661 = sphi 0, %s660
      %s675 = sphi 0, %s661
      %s679 = sphi 0, %s679
      %s681 = sphi 0, %s679
      %s682 = sphi 0, %s681
      %s696 = sphi 0, %s682
      %s702 = sphi 0, %s704
      %s705 = sphi 0, %s702
      %s706 = sphi 0, %s705
      %s722 = sphi 0, %s706
    $region4: #{tpu_custom_call.1} parent=1 // loop_header_branch
      %71 = sbr.rel (%p69) target = $region8
    $region5: #{tpu_custom_call.1} parent=1 // loop_body
      %s73 = ssub.s32 %s68, 1
      %s74 = ssub.s32 %s68, 2
      %s75 = sadd.s32 %s68, 1
      %s76 = ssub.s32 %s68, %s75
      %p77 = scmp.eq.s32.totalorder %s76, 0
      %s79 = sadd.s32 %s78, 1
      %s80 = scalar_select %p77, %s78, %s79
      %p83 = pneg %p77
      %p84 = scmp.eq.s32.totalorder %s68, 1
      %p85 = por %p83, %p84
      %p86 = scmp.ne.s32.totalorder %s78, %s81
      %p87 = scmp.eq.s32.totalorder %s68, 0
      %p88 = por %p86, %p87
      %p89 = scmp.ne.s32.totalorder %s78, %s81
      %p90 = scmp.eq.s32.totalorder %s73, 1
      %p91 = por %p89, %p90
      %p92 = scmp.ne.s32.totalorder %s81, %s82
      %p93 = scmp.eq.s32.totalorder %s73, 0
      %p94 = por %p92, %p93
      %p95 = scmp.ne.s32.totalorder %s81, %s82
      %p96 = scmp.eq.s32.totalorder %s74, 1
      %p97 = por %p95, %p96
      %p99 = scmp.ne.s32.totalorder %s82, %s98
      %p100 = scmp.eq.s32.totalorder %s74, 0
      %p101 = por %p99, %p100
      %s102 = ssub.s32 %s68, %s75
      %p103 = scmp.eq.s32.totalorder %s102, 0
      %s105 = sadd.s32 %s104, 1
      %s106 = scalar_select %p103, %s104, %s105
      %p109 = pneg %p103
      %p110 = scmp.eq.s32.totalorder %s68, 1
      %p111 = por %p109, %p110
      %p112 = scmp.ne.s32.totalorder %s104, %s107
      %p113 = scmp.eq.s32.totalorder %s68, 0
      %p114 = por %p112, %p113
      %p115 = scmp.ne.s32.totalorder %s104, %s107
      %p116 = scmp.eq.s32.totalorder %s73, 1
      %p117 = por %p115, %p116
      %p118 = scmp.ne.s32.totalorder %s107, %s108
      %p119 = scmp.eq.s32.totalorder %s73, 0
      %p120 = por %p118, %p119
      %p121 = scmp.ne.s32.totalorder %s107, %s108
      %p122 = scmp.eq.s32.totalorder %s74, 1
      %p123 = por %p121, %p122
      %p125 = scmp.ne.s32.totalorder %s108, %s124
      %p126 = scmp.eq.s32.totalorder %s74, 0
      %p127 = por %p125, %p126
      %s128 = ssub.s32 %s68, %s75
      %p129 = scmp.eq.s32.totalorder %s128, 0
      %s131 = sadd.s32 %s130, 1
      %s132 = scalar_select %p129, %s130, %s131
      %p135 = pneg %p129
      %p136 = scmp.eq.s32.totalorder %s68, 1
      %p137 = por %p135, %p136
      %p138 = scmp.ne.s32.totalorder %s130, %s133
      %p139 = scmp.eq.s32.totalorder %s68, 0
      %p140 = por %p138, %p139
      %p141 = scmp.ne.s32.totalorder %s130, %s133
      %p142 = scmp.eq.s32.totalorder %s73, 1
      %p143 = por %p141, %p142
      %p144 = scmp.ne.s32.totalorder %s133, %s134
      %p145 = scmp.eq.s32.totalorder %s73, 0
      %p146 = por %p144, %p145
      %p147 = scmp.ne.s32.totalorder %s133, %s134
      %p148 = scmp.eq.s32.totalorder %s74, 1
      %p149 = por %p147, %p148
      %p151 = scmp.ne.s32.totalorder %s134, %s150
      %p152 = scmp.eq.s32.totalorder %s74, 0
      %p153 = por %p151, %p152
      %s155 = sadd.s32 %s154, 1
      %p158 = scmp.eq.s32.totalorder %s68, 1
      %p159 = scmp.ne.s32.totalorder %s154, %s156
      %p160 = scmp.eq.s32.totalorder %s68, 0
      %p161 = por %p159, %p160
      %p162 = scmp.ne.s32.totalorder %s154, %s156
      %p163 = scmp.eq.s32.totalorder %s73, 1
      %p164 = por %p162, %p163
      %p165 = scmp.ne.s32.totalorder %s156, %s157
      %p166 = scmp.eq.s32.totalorder %s73, 0
      %p167 = por %p165, %p166
      %p168 = scmp.ne.s32.totalorder %s156, %s157
      %p169 = scmp.eq.s32.totalorder %s74, 1
      %p170 = por %p168, %p169
      %p172 = scmp.ne.s32.totalorder %s157, %s171
      %p173 = scmp.eq.s32.totalorder %s74, 0
      %p174 = por %p172, %p173
      %s176 = sadd.s32 %s175, 1
      %p179 = scmp.eq.s32.totalorder %s68, 1
      %p180 = scmp.ne.s32.totalorder %s175, %s177
      %p181 = scmp.eq.s32.totalorder %s68, 0
      %p182 = por %p180, %p181
      %p183 = scmp.ne.s32.totalorder %s175, %s177
      %p184 = scmp.eq.s32.totalorder %s73, 1
      %p185 = por %p183, %p184
      %p186 = scmp.ne.s32.totalorder %s177, %s178
      %p187 = scmp.eq.s32.totalorder %s73, 0
      %p188 = por %p186, %p187
      %p189 = scmp.ne.s32.totalorder %s177, %s178
      %p190 = scmp.eq.s32.totalorder %s74, 1
      %p191 = por %p189, %p190
      %p193 = scmp.ne.s32.totalorder %s178, %s192
      %p194 = scmp.eq.s32.totalorder %s74, 0
      %p195 = por %p193, %p194
      %s197 = sadd.s32 %s196, 1
      %p200 = scmp.eq.s32.totalorder %s68, 1
      %p201 = scmp.ne.s32.totalorder %s196, %s198
      %p202 = scmp.eq.s32.totalorder %s68, 0
      %p203 = por %p201, %p202
      %p204 = scmp.ne.s32.totalorder %s196, %s198
      %p205 = scmp.eq.s32.totalorder %s73, 1
      %p206 = por %p204, %p205
      %p207 = scmp.ne.s32.totalorder %s198, %s199
      %p208 = scmp.eq.s32.totalorder %s73, 0
      %p209 = por %p207, %p208
      %p210 = scmp.ne.s32.totalorder %s198, %s199
      %p211 = scmp.eq.s32.totalorder %s74, 1
      %p212 = por %p210, %p211
      %p214 = scmp.ne.s32.totalorder %s199, %s213
      %p215 = scmp.eq.s32.totalorder %s74, 0
      %p216 = por %p214, %p215
      %s218 = sadd.s32 %s217, 1
      %p221 = scmp.eq.s32.totalorder %s68, 1
      %p222 = scmp.ne.s32.totalorder %s217, %s219
      %p223 = scmp.eq.s32.totalorder %s68, 0
      %p224 = por %p222, %p223
      %p225 = scmp.ne.s32.totalorder %s217, %s219
      %p226 = scmp.eq.s32.totalorder %s73, 1
      %p227 = por %p225, %p226
      %p228 = scmp.ne.s32.totalorder %s219, %s220
      %p229 = scmp.eq.s32.totalorder %s73, 0
      %p230 = por %p228, %p229
      %p231 = scmp.ne.s32.totalorder %s219, %s220
      %p232 = scmp.eq.s32.totalorder %s74, 1
      %p233 = por %p231, %p232
      %p235 = scmp.ne.s32.totalorder %s220, %s234
      %p236 = scmp.eq.s32.totalorder %s74, 0
      %p237 = por %p235, %p236
      %s239 = sadd.s32 %s238, 1
      %p242 = scmp.eq.s32.totalorder %s68, 1
      %p243 = scmp.ne.s32.totalorder %s238, %s240
      %p244 = scmp.eq.s32.totalorder %s68, 0
      %p245 = por %p243, %p244
      %p246 = scmp.ne.s32.totalorder %s238, %s240
      %p247 = scmp.eq.s32.totalorder %s73, 1
      %p248 = por %p246, %p247
      %p249 = scmp.ne.s32.totalorder %s240, %s241
      %p250 = scmp.eq.s32.totalorder %s73, 0
      %p251 = por %p249, %p250
      %p252 = scmp.ne.s32.totalorder %s240, %s241
      %p253 = scmp.eq.s32.totalorder %s74, 1
      %p254 = por %p252, %p253
      %p256 = scmp.ne.s32.totalorder %s241, %s255
      %p257 = scmp.eq.s32.totalorder %s74, 0
      %p258 = por %p256, %p257
      %s260 = sadd.s32 %s259, 1
      %p263 = scmp.eq.s32.totalorder %s68, 1
      %p264 = scmp.ne.s32.totalorder %s259, %s261
      %p265 = scmp.eq.s32.totalorder %s68, 0
      %p266 = por %p264, %p265
      %p267 = scmp.ne.s32.totalorder %s259, %s261
      %p268 = scmp.eq.s32.totalorder %s73, 1
      %p269 = por %p267, %p268
      %p270 = scmp.ne.s32.totalorder %s261, %s262
      %p271 = scmp.eq.s32.totalorder %s73, 0
      %p272 = por %p270, %p271
      %p273 = scmp.ne.s32.totalorder %s261, %s262
      %p274 = scmp.eq.s32.totalorder %s74, 1
      %p275 = por %p273, %p274
      %p277 = scmp.ne.s32.totalorder %s262, %s276
      %p278 = scmp.eq.s32.totalorder %s74, 0
      %p279 = por %p277, %p278
      %s281 = sadd.s32 %s280, 1
      %p284 = scmp.eq.s32.totalorder %s68, 1
      %p285 = scmp.ne.s32.totalorder %s280, %s282
      %p286 = scmp.eq.s32.totalorder %s68, 0
      %p287 = por %p285, %p286
      %p288 = scmp.ne.s32.totalorder %s280, %s282
      %p289 = scmp.eq.s32.totalorder %s73, 1
      %p290 = por %p288, %p289
      %p291 = scmp.ne.s32.totalorder %s282, %s283
      %p292 = scmp.eq.s32.totalorder %s73, 0
      %p293 = por %p291, %p292
      %p294 = scmp.ne.s32.totalorder %s282, %s283
      %p295 = scmp.eq.s32.totalorder %s74, 1
      %p296 = por %p294, %p295
      %p298 = scmp.ne.s32.totalorder %s283, %s297
      %p299 = scmp.eq.s32.totalorder %s74, 0
      %p300 = por %p298, %p299
      %s302 = sadd.s32 %s301, 1
      %p305 = scmp.eq.s32.totalorder %s68, 1
      %p306 = scmp.ne.s32.totalorder %s301, %s303
      %p307 = scmp.eq.s32.totalorder %s68, 0
      %p308 = por %p306, %p307
      %p309 = scmp.ne.s32.totalorder %s301, %s303
      %p310 = scmp.eq.s32.totalorder %s73, 1
      %p311 = por %p309, %p310
      %p312 = scmp.ne.s32.totalorder %s303, %s304
      %p313 = scmp.eq.s32.totalorder %s73, 0
      %p314 = por %p312, %p313
      %p315 = scmp.ne.s32.totalorder %s303, %s304
      %p316 = scmp.eq.s32.totalorder %s74, 1
      %p317 = por %p315, %p316
      %p319 = scmp.ne.s32.totalorder %s304, %s318
      %p320 = scmp.eq.s32.totalorder %s74, 0
      %p321 = por %p319, %p320
      %s323 = sadd.s32 %s322, 1
      %p326 = scmp.eq.s32.totalorder %s68, 1
      %p327 = scmp.ne.s32.totalorder %s322, %s324
      %p328 = scmp.eq.s32.totalorder %s68, 0
      %p329 = por %p327, %p328
      %p330 = scmp.ne.s32.totalorder %s322, %s324
      %p331 = scmp.eq.s32.totalorder %s73, 1
      %p332 = por %p330, %p331
      %p333 = scmp.ne.s32.totalorder %s324, %s325
      %p334 = scmp.eq.s32.totalorder %s73, 0
      %p335 = por %p333, %p334
      %p336 = scmp.ne.s32.totalorder %s324, %s325
      %p337 = scmp.eq.s32.totalorder %s74, 1
      %p338 = por %p336, %p337
      %p340 = scmp.ne.s32.totalorder %s325, %s339
      %p341 = scmp.eq.s32.totalorder %s74, 0
      %p342 = por %p340, %p341
      %s344 = sadd.s32 %s343, 1
      %p347 = scmp.eq.s32.totalorder %s68, 1
      %p348 = scmp.ne.s32.totalorder %s343, %s345
      %p349 = scmp.eq.s32.totalorder %s68, 0
      %p350 = por %p348, %p349
      %p351 = scmp.ne.s32.totalorder %s343, %s345
      %p352 = scmp.eq.s32.totalorder %s73, 1
      %p353 = por %p351, %p352
      %p354 = scmp.ne.s32.totalorder %s345, %s346
      %p355 = scmp.eq.s32.totalorder %s73, 0
      %p356 = por %p354, %p355
      %p357 = scmp.ne.s32.totalorder %s345, %s346
      %p358 = scmp.eq.s32.totalorder %s74, 1
      %p359 = por %p357, %p358
      %p361 = scmp.ne.s32.totalorder %s346, %s360
      %p362 = scmp.eq.s32.totalorder %s74, 0
      %p363 = por %p361, %p362
      %s365 = sadd.s32 %s364, 1
      %p368 = scmp.eq.s32.totalorder %s68, 1
      %p369 = scmp.ne.s32.totalorder %s364, %s366
      %p370 = scmp.eq.s32.totalorder %s68, 0
      %p371 = por %p369, %p370
      %p372 = scmp.ne.s32.totalorder %s364, %s366
      %p373 = scmp.eq.s32.totalorder %s73, 1
      %p374 = por %p372, %p373
      %p375 = scmp.ne.s32.totalorder %s366, %s367
      %p376 = scmp.eq.s32.totalorder %s73, 0
      %p377 = por %p375, %p376
      %p378 = scmp.ne.s32.totalorder %s366, %s367
      %p379 = scmp.eq.s32.totalorder %s74, 1
      %p380 = por %p378, %p379
      %p382 = scmp.ne.s32.totalorder %s367, %s381
      %p383 = scmp.eq.s32.totalorder %s74, 0
      %p384 = por %p382, %p383
      %s386 = sadd.s32 %s385, 1
      %p389 = scmp.eq.s32.totalorder %s68, 1
      %p390 = scmp.ne.s32.totalorder %s385, %s387
      %p391 = scmp.eq.s32.totalorder %s68, 0
      %p392 = por %p390, %p391
      %p393 = scmp.ne.s32.totalorder %s385, %s387
      %p394 = scmp.eq.s32.totalorder %s73, 1
      %p395 = por %p393, %p394
      %p396 = scmp.ne.s32.totalorder %s387, %s388
      %p397 = scmp.eq.s32.totalorder %s73, 0
      %p398 = por %p396, %p397
      %p399 = scmp.ne.s32.totalorder %s387, %s388
      %p400 = scmp.eq.s32.totalorder %s74, 1
      %p401 = por %p399, %p400
      %p403 = scmp.ne.s32.totalorder %s388, %s402
      %p404 = scmp.eq.s32.totalorder %s74, 0
      %p405 = por %p403, %p404
      %s407 = sadd.s32 %s406, 1
      %p410 = scmp.eq.s32.totalorder %s68, 1
      %p411 = scmp.ne.s32.totalorder %s406, %s408
      %p412 = scmp.eq.s32.totalorder %s68, 0
      %p413 = por %p411, %p412
      %p414 = scmp.ne.s32.totalorder %s406, %s408
      %p415 = scmp.eq.s32.totalorder %s73, 1
      %p416 = por %p414, %p415
      %p417 = scmp.ne.s32.totalorder %s408, %s409
      %p418 = scmp.eq.s32.totalorder %s73, 0
      %p419 = por %p417, %p418
      %p420 = scmp.ne.s32.totalorder %s408, %s409
      %p421 = scmp.eq.s32.totalorder %s74, 1
      %p422 = por %p420, %p421
      %p424 = scmp.ne.s32.totalorder %s409, %s423
      %p425 = scmp.eq.s32.totalorder %s74, 0
      %p426 = por %p424, %p425
      %s428 = sadd.s32 %s427, 1
      %p431 = scmp.eq.s32.totalorder %s68, 1
      %p432 = scmp.ne.s32.totalorder %s427, %s429
      %p433 = scmp.eq.s32.totalorder %s68, 0
      %p434 = por %p432, %p433
      %p435 = scmp.ne.s32.totalorder %s427, %s429
      %p436 = scmp.eq.s32.totalorder %s73, 1
      %p437 = por %p435, %p436
      %p438 = scmp.ne.s32.totalorder %s429, %s430
      %p439 = scmp.eq.s32.totalorder %s73, 0
      %p440 = por %p438, %p439
      %p441 = scmp.ne.s32.totalorder %s429, %s430
      %p442 = scmp.eq.s32.totalorder %s74, 1
      %p443 = por %p441, %p442
      %p445 = scmp.ne.s32.totalorder %s430, %s444
      %p446 = scmp.eq.s32.totalorder %s74, 0
      %p447 = por %p445, %p446
      %s449 = sadd.s32 %s448, 1
      %p452 = scmp.eq.s32.totalorder %s68, 1
      %p453 = scmp.ne.s32.totalorder %s448, %s450
      %p454 = scmp.eq.s32.totalorder %s68, 0
      %p455 = por %p453, %p454
      %p456 = scmp.ne.s32.totalorder %s448, %s450
      %p457 = scmp.eq.s32.totalorder %s73, 1
      %p458 = por %p456, %p457
      %p459 = scmp.ne.s32.totalorder %s450, %s451
      %p460 = scmp.eq.s32.totalorder %s73, 0
      %p461 = por %p459, %p460
      %p462 = scmp.ne.s32.totalorder %s450, %s451
      %p463 = scmp.eq.s32.totalorder %s74, 1
      %p464 = por %p462, %p463
      %p466 = scmp.ne.s32.totalorder %s451, %s465
      %p467 = scmp.eq.s32.totalorder %s74, 0
      %p468 = por %p466, %p467
      %s470 = sadd.s32 %s469, 1
      %p473 = scmp.eq.s32.totalorder %s68, 1
      %p474 = scmp.ne.s32.totalorder %s469, %s471
      %p475 = scmp.eq.s32.totalorder %s68, 0
      %p476 = por %p474, %p475
      %p477 = scmp.ne.s32.totalorder %s469, %s471
      %p478 = scmp.eq.s32.totalorder %s73, 1
      %p479 = por %p477, %p478
      %p480 = scmp.ne.s32.totalorder %s471, %s472
      %p481 = scmp.eq.s32.totalorder %s73, 0
      %p482 = por %p480, %p481
      %p483 = scmp.ne.s32.totalorder %s471, %s472
      %p484 = scmp.eq.s32.totalorder %s74, 1
      %p485 = por %p483, %p484
      %p487 = scmp.ne.s32.totalorder %s472, %s486
      %p488 = scmp.eq.s32.totalorder %s74, 0
      %p489 = por %p487, %p488
      %s491 = sadd.s32 %s490, 1
      %p494 = scmp.eq.s32.totalorder %s68, 1
      %p495 = scmp.ne.s32.totalorder %s490, %s492
      %p496 = scmp.eq.s32.totalorder %s68, 0
      %p497 = por %p495, %p496
      %p498 = scmp.ne.s32.totalorder %s490, %s492
      %p499 = scmp.eq.s32.totalorder %s73, 1
      %p500 = por %p498, %p499
      %p501 = scmp.ne.s32.totalorder %s492, %s493
      %p502 = scmp.eq.s32.totalorder %s73, 0
      %p503 = por %p501, %p502
      %p504 = scmp.ne.s32.totalorder %s492, %s493
      %p505 = scmp.eq.s32.totalorder %s74, 1
      %p506 = por %p504, %p505
      %p508 = scmp.ne.s32.totalorder %s493, %s507
      %p509 = scmp.eq.s32.totalorder %s74, 0
      %p510 = por %p508, %p509
      %s512 = sadd.s32 %s511, 1
      %p515 = scmp.eq.s32.totalorder %s68, 1
      %p516 = scmp.ne.s32.totalorder %s511, %s513
      %p517 = scmp.eq.s32.totalorder %s68, 0
      %p518 = por %p516, %p517
      %p519 = scmp.ne.s32.totalorder %s511, %s513
      %p520 = scmp.eq.s32.totalorder %s73, 1
      %p521 = por %p519, %p520
      %p522 = scmp.ne.s32.totalorder %s513, %s514
      %p523 = scmp.eq.s32.totalorder %s73, 0
      %p524 = por %p522, %p523
      %p525 = scmp.ne.s32.totalorder %s513, %s514
      %p526 = scmp.eq.s32.totalorder %s74, 1
      %p527 = por %p525, %p526
      %p529 = scmp.ne.s32.totalorder %s514, %s528
      %p530 = scmp.eq.s32.totalorder %s74, 0
      %p531 = por %p529, %p530
      %s533 = sadd.s32 %s532, 1
      %p536 = scmp.eq.s32.totalorder %s68, 1
      %p537 = scmp.ne.s32.totalorder %s532, %s534
      %p538 = scmp.eq.s32.totalorder %s68, 0
      %p539 = por %p537, %p538
      %p540 = scmp.ne.s32.totalorder %s532, %s534
      %p541 = scmp.eq.s32.totalorder %s73, 1
      %p542 = por %p540, %p541
      %p543 = scmp.ne.s32.totalorder %s534, %s535
      %p544 = scmp.eq.s32.totalorder %s73, 0
      %p545 = por %p543, %p544
      %p546 = scmp.ne.s32.totalorder %s534, %s535
      %p547 = scmp.eq.s32.totalorder %s74, 1
      %p548 = por %p546, %p547
      %p550 = scmp.ne.s32.totalorder %s535, %s549
      %p551 = scmp.eq.s32.totalorder %s74, 0
      %p552 = por %p550, %p551
      %s554 = sadd.s32 %s553, 1
      %p557 = scmp.eq.s32.totalorder %s68, 1
      %p558 = scmp.ne.s32.totalorder %s553, %s555
      %p559 = scmp.eq.s32.totalorder %s68, 0
      %p560 = por %p558, %p559
      %p561 = scmp.ne.s32.totalorder %s553, %s555
      %p562 = scmp.eq.s32.totalorder %s73, 1
      %p563 = por %p561, %p562
      %p564 = scmp.ne.s32.totalorder %s555, %s556
      %p565 = scmp.eq.s32.totalorder %s73, 0
      %p566 = por %p564, %p565
      %p567 = scmp.ne.s32.totalorder %s555, %s556
      %p568 = scmp.eq.s32.totalorder %s74, 1
      %p569 = por %p567, %p568
      %p571 = scmp.ne.s32.totalorder %s556, %s570
      %p572 = scmp.eq.s32.totalorder %s74, 0
      %p573 = por %p571, %p572
      %s575 = sadd.s32 %s574, 1
      %p578 = scmp.eq.s32.totalorder %s68, 1
      %p579 = scmp.ne.s32.totalorder %s574, %s576
      %p580 = scmp.eq.s32.totalorder %s68, 0
      %p581 = por %p579, %p580
      %p582 = scmp.ne.s32.totalorder %s574, %s576
      %p583 = scmp.eq.s32.totalorder %s73, 1
      %p584 = por %p582, %p583
      %p585 = scmp.ne.s32.totalorder %s576, %s577
      %p586 = scmp.eq.s32.totalorder %s73, 0
      %p587 = por %p585, %p586
      %p588 = scmp.ne.s32.totalorder %s576, %s577
      %p589 = scmp.eq.s32.totalorder %s74, 1
      %p590 = por %p588, %p589
      %p592 = scmp.ne.s32.totalorder %s577, %s591
      %p593 = scmp.eq.s32.totalorder %s74, 0
      %p594 = por %p592, %p593
      %s596 = sadd.s32 %s595, 1
      %p599 = scmp.eq.s32.totalorder %s68, 1
      %p600 = scmp.ne.s32.totalorder %s595, %s597
      %p601 = scmp.eq.s32.totalorder %s68, 0
      %p602 = por %p600, %p601
      %p603 = scmp.ne.s32.totalorder %s595, %s597
      %p604 = scmp.eq.s32.totalorder %s73, 1
      %p605 = por %p603, %p604
      %p606 = scmp.ne.s32.totalorder %s597, %s598
      %p607 = scmp.eq.s32.totalorder %s73, 0
      %p608 = por %p606, %p607
      %p609 = scmp.ne.s32.totalorder %s597, %s598
      %p610 = scmp.eq.s32.totalorder %s74, 1
      %p611 = por %p609, %p610
      %p613 = scmp.ne.s32.totalorder %s598, %s612
      %p614 = scmp.eq.s32.totalorder %s74, 0
      %p615 = por %p613, %p614
      %s617 = sadd.s32 %s616, 1
      %p620 = scmp.eq.s32.totalorder %s68, 1
      %p621 = scmp.ne.s32.totalorder %s616, %s618
      %p622 = scmp.eq.s32.totalorder %s68, 0
      %p623 = por %p621, %p622
      %p624 = scmp.ne.s32.totalorder %s616, %s618
      %p625 = scmp.eq.s32.totalorder %s73, 1
      %p626 = por %p624, %p625
      %p627 = scmp.ne.s32.totalorder %s618, %s619
      %p628 = scmp.eq.s32.totalorder %s73, 0
      %p629 = por %p627, %p628
      %p630 = scmp.ne.s32.totalorder %s618, %s619
      %p631 = scmp.eq.s32.totalorder %s74, 1
      %p632 = por %p630, %p631
      %p634 = scmp.ne.s32.totalorder %s619, %s633
      %p635 = scmp.eq.s32.totalorder %s74, 0
      %p636 = por %p634, %p635
      %s638 = sadd.s32 %s637, 1
      %p641 = scmp.eq.s32.totalorder %s68, 1
      %p642 = scmp.ne.s32.totalorder %s637, %s639
      %p643 = scmp.eq.s32.totalorder %s68, 0
      %p644 = por %p642, %p643
      %p645 = scmp.ne.s32.totalorder %s637, %s639
      %p646 = scmp.eq.s32.totalorder %s73, 1
      %p647 = por %p645, %p646
      %p648 = scmp.ne.s32.totalorder %s639, %s640
      %p649 = scmp.eq.s32.totalorder %s73, 0
      %p650 = por %p648, %p649
      %p651 = scmp.ne.s32.totalorder %s639, %s640
      %p652 = scmp.eq.s32.totalorder %s74, 1
      %p653 = por %p651, %p652
      %p655 = scmp.ne.s32.totalorder %s640, %s654
      %p656 = scmp.eq.s32.totalorder %s74, 0
      %p657 = por %p655, %p656
      %s659 = sadd.s32 %s658, 1
      %p662 = scmp.eq.s32.totalorder %s68, 1
      %p663 = scmp.ne.s32.totalorder %s658, %s660
      %p664 = scmp.eq.s32.totalorder %s68, 0
      %p665 = por %p663, %p664
      %p666 = scmp.ne.s32.totalorder %s658, %s660
      %p667 = scmp.eq.s32.totalorder %s73, 1
      %p668 = por %p666, %p667
      %p669 = scmp.ne.s32.totalorder %s660, %s661
      %p670 = scmp.eq.s32.totalorder %s73, 0
      %p671 = por %p669, %p670
      %p672 = scmp.ne.s32.totalorder %s660, %s661
      %p673 = scmp.eq.s32.totalorder %s74, 1
      %p674 = por %p672, %p673
      %p676 = scmp.ne.s32.totalorder %s661, %s675
      %p677 = scmp.eq.s32.totalorder %s74, 0
      %p678 = por %p676, %p677
      %s680 = sadd.s32 %s679, 1
      %p683 = scmp.eq.s32.totalorder %s68, 1
      %p684 = scmp.ne.s32.totalorder %s679, %s681
      %p685 = scmp.eq.s32.totalorder %s68, 0
      %p686 = por %p684, %p685
      %p687 = scmp.ne.s32.totalorder %s679, %s681
      %p688 = scmp.eq.s32.totalorder %s73, 1
      %p689 = por %p687, %p688
      %p690 = scmp.ne.s32.totalorder %s681, %s682
      %p691 = scmp.eq.s32.totalorder %s73, 0
      %p692 = por %p690, %p691
      %p693 = scmp.ne.s32.totalorder %s681, %s682
      %p694 = scmp.eq.s32.totalorder %s74, 1
      %p695 = por %p693, %p694
      %p697 = scmp.ne.s32.totalorder %s682, %s696
      %p698 = scmp.eq.s32.totalorder %s74, 0
      %p699 = por %p697, %p698
      %s700 = ssub.s32 %s68, %s75
      %p701 = scmp.eq.s32.totalorder %s700, 0
      %s703 = sadd.s32 %s702, 1
      %s704 = scalar_select %p701, %s702, %s703
      %p707 = pneg %p701
      %p708 = scmp.eq.s32.totalorder %s68, 1
      %p709 = por %p707, %p708
      %p710 = scmp.ne.s32.totalorder %s702, %s705
      %p711 = scmp.eq.s32.totalorder %s68, 0
      %p712 = por %p710, %p711
      %p713 = scmp.ne.s32.totalorder %s702, %s705
      %p714 = scmp.eq.s32.totalorder %s73, 1
      %p715 = por %p713, %p714
      %p716 = scmp.ne.s32.totalorder %s705, %s706
      %p717 = scmp.eq.s32.totalorder %s73, 0
      %p718 = por %p716, %p717
      %p719 = scmp.ne.s32.totalorder %s705, %s706
      %p720 = scmp.eq.s32.totalorder %s74, 1
      %p721 = por %p719, %p720
      %p723 = scmp.ne.s32.totalorder %s706, %s722
      %p724 = scmp.eq.s32.totalorder %s74, 0
      %p725 = por %p723, %p724
      %p726 = scmp.le.s32.totalorder 1, %s68
      %p727 = scmp.lt.s32.totalorder %s68, 3
      %p728 = pnand %p726, %p727
      %p729 = pneg %p728
      // Predicated region
      $region9: #{tpu_custom_call.1} parent=5 // pred_check
        _
      $region10: #{tpu_custom_call.1} parent=5 // pred_check_branch
        %731 = sbr.rel (%p728) target = $region12
      $region11: #{tpu_custom_call.1} parent=5 // pred_region
        %s732 = ssub.s32 %s68, 1
        // Predicated region
        $region13: #{tpu_custom_call.1} parent=11 // pred_check
          %p733 = pneg %p167
        $region14: #{tpu_custom_call.1} parent=11 // pred_check_branch
          %735 = sbr.rel (%p733) target = $region16
        $region15: #{tpu_custom_call.1} parent=11 // pred_region
          _
        $region16: #{tpu_custom_call.1} parent=11 // pred_fallthru
          _
        // Predicated region
        $region17: #{tpu_custom_call.1} parent=11 // pred_check
          %p736 = pneg %p188
        $region18: #{tpu_custom_call.1} parent=11 // pred_check_branch
          %738 = sbr.rel (%p736) target = $region20
        $region19: #{tpu_custom_call.1} parent=11 // pred_region
          _
        $region20: #{tpu_custom_call.1} parent=11 // pred_fallthru
          _
        // Predicated region
        $region21: #{tpu_custom_call.1} parent=11 // pred_check
          %p739 = pneg %p209
        $region22: #{tpu_custom_call.1} parent=11 // pred_check_branch
          %741 = sbr.rel (%p739) target = $region24
        $region23: #{tpu_custom_call.1} parent=11 // pred_region
          _
        $region24: #{tpu_custom_call.1} parent=11 // pred_fallthru
          _
        // Predicated region
        $region25: #{tpu_custom_call.1} parent=11 // pred_check
          %p742 = pneg %p230
        $region26: #{tpu_custom_call.1} parent=11 // pred_check_branch
          %744 = sbr.rel (%p742) target = $region28
        $region27: #{tpu_custom_call.1} parent=11 // pred_region
          _
        $region28: #{tpu_custom_call.1} parent=11 // pred_fallthru
          _
        // Predicated region
        $region29: #{tpu_custom_call.1} parent=11 // pred_check
          %p745 = pneg %p251
        $region30: #{tpu_custom_call.1} parent=11 // pred_check_branch
          %747 = sbr.rel (%p745) target = $region32
        $region31: #{tpu_custom_call.1} parent=11 // pred_region
          _
        $region32: #{tpu_custom_call.1} parent=11 // pred_fallthru
          _
        // Predicated region
        $region33: #{tpu_custom_call.1} parent=11 // pred_check
          %p748 = pneg %p272
        $region34: #{tpu_custom_call.1} parent=11 // pred_check_branch
          %750 = sbr.rel (%p748) target = $region36
        $region35: #{tpu_custom_call.1} parent=11 // pred_region
          _
        $region36: #{tpu_custom_call.1} parent=11 // pred_fallthru
          _
        // Predicated region
        $region37: #{tpu_custom_call.1} parent=11 // pred_check
          %p751 = pneg %p293
        $region38: #{tpu_custom_call.1} parent=11 // pred_check_branch
          %753 = sbr.rel (%p751) target = $region40
        $region39: #{tpu_custom_call.1} parent=11 // pred_region
          _
        $region40: #{tpu_custom_call.1} parent=11 // pred_fallthru
          _
        // Predicated region
        $region41: #{tpu_custom_call.1} parent=11 // pred_check
          %p754 = pneg %p314
        $region42: #{tpu_custom_call.1} parent=11 // pred_check_branch
          %756 = sbr.rel (%p754) target = $region44
        $region43: #{tpu_custom_call.1} parent=11 // pred_region
          _
        $region44: #{tpu_custom_call.1} parent=11 // pred_fallthru
          _
        // Predicated region
        $region45: #{tpu_custom_call.1} parent=11 // pred_check
          %p757 = pneg %p335
        $region46: #{tpu_custom_call.1} parent=11 // pred_check_branch
          %759 = sbr.rel (%p757) target = $region48
        $region47: #{tpu_custom_call.1} parent=11 // pred_region
          _
        $region48: #{tpu_custom_call.1} parent=11 // pred_fallthru
          _
        // Predicated region
        $region49: #{tpu_custom_call.1} parent=11 // pred_check
          %p760 = pneg %p356
        $region50: #{tpu_custom_call.1} parent=11 // pred_check_branch
          %762 = sbr.rel (%p760) target = $region52
        $region51: #{tpu_custom_call.1} parent=11 // pred_region
          _
        $region52: #{tpu_custom_call.1} parent=11 // pred_fallthru
          _
        // Predicated region
        $region53: #{tpu_custom_call.1} parent=11 // pred_check
          %p763 = pneg %p377
        $region54: #{tpu_custom_call.1} parent=11 // pred_check_branch
          %765 = sbr.rel (%p763) target = $region56
        $region55: #{tpu_custom_call.1} parent=11 // pred_region
          _
        $region56: #{tpu_custom_call.1} parent=11 // pred_fallthru
          _
        // Predicated region
        $region57: #{tpu_custom_call.1} parent=11 // pred_check
          %p766 = pneg %p398
        $region58: #{tpu_custom_call.1} parent=11 // pred_check_branch
          %768 = sbr.rel (%p766) target = $region60
        $region59: #{tpu_custom_call.1} parent=11 // pred_region
          _
        $region60: #{tpu_custom_call.1} parent=11 // pred_fallthru
          _
        // Predicated region
        $region61: #{tpu_custom_call.1} parent=11 // pred_check
          %p769 = pneg %p419
        $region62: #{tpu_custom_call.1} parent=11 // pred_check_branch
          %771 = sbr.rel (%p769) target = $region64
        $region63: #{tpu_custom_call.1} parent=11 // pred_region
          _
        $region64: #{tpu_custom_call.1} parent=11 // pred_fallthru
          _
        // Predicated region
        $region65: #{tpu_custom_call.1} parent=11 // pred_check
          %p772 = pneg %p440
        $region66: #{tpu_custom_call.1} parent=11 // pred_check_branch
          %774 = sbr.rel (%p772) target = $region68
        $region67: #{tpu_custom_call.1} parent=11 // pred_region
          _
        $region68: #{tpu_custom_call.1} parent=11 // pred_fallthru
          _
        // Predicated region
        $region69: #{tpu_custom_call.1} parent=11 // pred_check
          %p775 = pneg %p461
        $region70: #{tpu_custom_call.1} parent=11 // pred_check_branch
          %777 = sbr.rel (%p775) target = $region72
        $region71: #{tpu_custom_call.1} parent=11 // pred_region
          _
        $region72: #{tpu_custom_call.1} parent=11 // pred_fallthru
          _
        // Predicated region
        $region73: #{tpu_custom_call.1} parent=11 // pred_check
          %p778 = pneg %p482
        $region74: #{tpu_custom_call.1} parent=11 // pred_check_branch
          %780 = sbr.rel (%p778) target = $region76
        $region75: #{tpu_custom_call.1} parent=11 // pred_region
          _
        $region76: #{tpu_custom_call.1} parent=11 // pred_fallthru
          _
        // Predicated region
        $region77: #{tpu_custom_call.1} parent=11 // pred_check
          %p781 = pneg %p503
        $region78: #{tpu_custom_call.1} parent=11 // pred_check_branch
          %783 = sbr.rel (%p781) target = $region80
        $region79: #{tpu_custom_call.1} parent=11 // pred_region
          _
        $region80: #{tpu_custom_call.1} parent=11 // pred_fallthru
          _
        // Predicated region
        $region81: #{tpu_custom_call.1} parent=11 // pred_check
          %p784 = pneg %p524
        $region82: #{tpu_custom_call.1} parent=11 // pred_check_branch
          %786 = sbr.rel (%p784) target = $region84
        $region83: #{tpu_custom_call.1} parent=11 // pred_region
          _
        $region84: #{tpu_custom_call.1} parent=11 // pred_fallthru
          _
        // Predicated region
        $region85: #{tpu_custom_call.1} parent=11 // pred_check
          %p787 = pneg %p545
        $region86: #{tpu_custom_call.1} parent=11 // pred_check_branch
          %789 = sbr.rel (%p787) target = $region88
        $region87: #{tpu_custom_call.1} parent=11 // pred_region
          _
        $region88: #{tpu_custom_call.1} parent=11 // pred_fallthru
          _
        // Predicated region
        $region89: #{tpu_custom_call.1} parent=11 // pred_check
          %p790 = pneg %p566
        $region90: #{tpu_custom_call.1} parent=11 // pred_check_branch
          %792 = sbr.rel (%p790) target = $region92
        $region91: #{tpu_custom_call.1} parent=11 // pred_region
          _
        $region92: #{tpu_custom_call.1} parent=11 // pred_fallthru
          _
        // Predicated region
        $region93: #{tpu_custom_call.1} parent=11 // pred_check
          %p793 = pneg %p587
        $region94: #{tpu_custom_call.1} parent=11 // pred_check_branch
          %795 = sbr.rel (%p793) target = $region96
        $region95: #{tpu_custom_call.1} parent=11 // pred_region
          _
        $region96: #{tpu_custom_call.1} parent=11 // pred_fallthru
          _
        // Predicated region
        $region97: #{tpu_custom_call.1} parent=11 // pred_check
          %p796 = pneg %p608
        $region98: #{tpu_custom_call.1} parent=11 // pred_check_branch
          %798 = sbr.rel (%p796) target = $region100
        $region99: #{tpu_custom_call.1} parent=11 // pred_region
          _
        $region100: #{tpu_custom_call.1} parent=11 // pred_fallthru
          _
        // Predicated region
        $region101: #{tpu_custom_call.1} parent=11 // pred_check
          %p799 = pneg %p629
        $region102: #{tpu_custom_call.1} parent=11 // pred_check_branch
          %801 = sbr.rel (%p799) target = $region104
        $region103: #{tpu_custom_call.1} parent=11 // pred_region
          _
        $region104: #{tpu_custom_call.1} parent=11 // pred_fallthru
          _
        // Predicated region
        $region105: #{tpu_custom_call.1} parent=11 // pred_check
          %p802 = pneg %p650
        $region106: #{tpu_custom_call.1} parent=11 // pred_check_branch
          %804 = sbr.rel (%p802) target = $region108
        $region107: #{tpu_custom_call.1} parent=11 // pred_region
          _
        $region108: #{tpu_custom_call.1} parent=11 // pred_fallthru
          _
        // Predicated region
        $region109: #{tpu_custom_call.1} parent=11 // pred_check
          %p805 = pneg %p671
        $region110: #{tpu_custom_call.1} parent=11 // pred_check_branch
          %807 = sbr.rel (%p805) target = $region112
        $region111: #{tpu_custom_call.1} parent=11 // pred_region
          _
        $region112: #{tpu_custom_call.1} parent=11 // pred_fallthru
          _
        // Predicated region
        $region113: #{tpu_custom_call.1} parent=11 // pred_check
          %p808 = pneg %p692
        $region114: #{tpu_custom_call.1} parent=11 // pred_check_branch
          %810 = sbr.rel (%p808) target = $region116
        $region115: #{tpu_custom_call.1} parent=11 // pred_region
          _
        $region116: #{tpu_custom_call.1} parent=11 // pred_fallthru
          _
      $region12: #{tpu_custom_call.1} parent=5 // pred_fallthru
        _
      %p811 = scmp.lt.s32.totalorder %s68, 2
      // Predicated region
      $region117: #{tpu_custom_call.1} parent=5 // pred_check
        %p812 = pneg %p811
      $region118: #{tpu_custom_call.1} parent=5 // pred_check_branch
        %814 = sbr.rel (%p812) target = $region120
      $region119: #{tpu_custom_call.1} parent=5 // pred_region
        // Predicated region
        $region121: #{tpu_custom_call.1} parent=119 // pred_check
          %p815 = pneg %p88
        $region122: #{tpu_custom_call.1} parent=119 // pred_check_branch
          %817 = sbr.rel (%p815) target = $region124
        $region123: #{tpu_custom_call.1} parent=119 // pred_region
          %p818 = scmp.lt.s32.totalorder %s68, 1
          %s819 = scalar_select %p818, %s68, 1
          %s820 = smul.addr %s819, 8
          %s821 = scalar_lea.vmem %s1, %s820
        $region124: #{tpu_custom_call.1} parent=119 // pred_fallthru
          _
        // Predicated region
        $region125: #{tpu_custom_call.1} parent=119 // pred_check
          %p822 = pneg %p114
        $region126: #{tpu_custom_call.1} parent=119 // pred_check_branch
          %824 = sbr.rel (%p822) target = $region128
        $region127: #{tpu_custom_call.1} parent=119 // pred_region
          %p825 = scmp.lt.s32.totalorder %s68, 1
          %s826 = scalar_select %p825, %s68, 1
          %s827 = smul.addr %s826, 8
          %s828 = scalar_lea.vmem %s3, %s827
        $region128: #{tpu_custom_call.1} parent=119 // pred_fallthru
          _
        // Predicated region
        $region129: #{tpu_custom_call.1} parent=119 // pred_check
          %p829 = pneg %p140
        $region130: #{tpu_custom_call.1} parent=119 // pred_check_branch
          %831 = sbr.rel (%p829) target = $region132
        $region131: #{tpu_custom_call.1} parent=119 // pred_region
          %p832 = scmp.lt.s32.totalorder %s68, 1
          %s833 = scalar_select %p832, %s68, 1
          %s834 = smul.addr %s833, 8
          %s835 = scalar_lea.vmem %s5, %s834
        $region132: #{tpu_custom_call.1} parent=119 // pred_fallthru
          _
      $region120: #{tpu_custom_call.1} parent=5 // pred_fallthru
        _
      %p836 = scmp.le.s32.totalorder 1, %s68
      %p837 = scmp.lt.s32.totalorder %s68, 3
      %p838 = pnand %p836, %p837
      %p839 = pneg %p838
      // Predicated region
      $region133: #{tpu_custom_call.1} parent=5 // pred_check
        _
      $region134: #{tpu_custom_call.1} parent=5 // pred_check_branch
        %841 = sbr.rel (%p838) target = $region136
      $region135: #{tpu_custom_call.1} parent=5 // pred_region
        %s842 = ssub.s32 %s68, 1
        %p843 = scmp.lt.s32.totalorder %s73, 1
        %s844 = scalar_select %p843, %s73, 1
        %s845 = smul.addr %s844, 8
        %s846 = scalar_lea.vmem %s1, %s845
        %p847 = pneg %p94
        %p848 = pneg %p91
        %p849 = scmp.lt.s32.totalorder %s73, 1
        %s850 = scalar_select %p849, %s73, 1
        %s851 = smul.addr %s850, 8
        %s852 = scalar_lea.vmem %s3, %s851
        %p853 = pneg %p120
        %p854 = pneg %p117
        %p855 = scmp.lt.s32.totalorder %s73, 1
        %s856 = scalar_select %p855, %s73, 1
        %s857 = smul.addr %s856, 8
        %s858 = scalar_lea.vmem %s5, %s857
        %p859 = pneg %p146
        %p860 = pneg %p143
        %p861 = pneg %p167
        %p862 = pneg %p164
        %p863 = pneg %p188
        %p864 = pneg %p185
        %p865 = pneg %p209
        %p866 = pneg %p206
        %p867 = pneg %p230
        %p868 = pneg %p227
        %p869 = pneg %p251
        %p870 = pneg %p248
        %p871 = pneg %p272
        %p872 = pneg %p269
        %p873 = pneg %p293
        %p874 = pneg %p290
        %p875 = pneg %p314
        %p876 = pneg %p311
        %p877 = pneg %p335
        %p878 = pneg %p332
        %p879 = pneg %p356
        %p880 = pneg %p353
        %p881 = pneg %p377
        %p882 = pneg %p374
        %p883 = pneg %p398
        %p884 = pneg %p395
        %p885 = pneg %p419
        %p886 = pneg %p416
        %p887 = pneg %p440
        %p888 = pneg %p437
        %p889 = pneg %p461
        %p890 = pneg %p458
        %p891 = pneg %p482
        %p892 = pneg %p479
        %p893 = pneg %p503
        %p894 = pneg %p500
        %p895 = pneg %p524
        %p896 = pneg %p521
        %p897 = pneg %p545
        %p898 = pneg %p542
        %p899 = pneg %p566
        %p900 = pneg %p563
        %p901 = pneg %p587
        %p902 = pneg %p584
        %p903 = pneg %p608
        %p904 = pneg %p605
        %p905 = pneg %p629
        %p906 = pneg %p626
        %p907 = pneg %p650
        %p908 = pneg %p647
        %p909 = pneg %p671
        %p910 = pneg %p668
        %p911 = pneg %p692
        %p912 = pneg %p689
        %p913 = pneg %p718
        %p914 = pneg %p715
        %s915 = sand.u32 %s705, 1
        %s916 = scalar_lea.sflag [#allocation3], %s915
        %s917 = sand.u32 %s705, 1
        %s918 = smul.addr %s917, 8
        %s919 = scalar_lea.vmem [#allocation2], %s918
        %p920 = scmp.lt.s32.totalorder %s73, 1
        %s921 = scalar_select %p920, %s73, 1
        %s922 = smul.addr %s921, 8
        %s923 = scalar_lea.vmem %s1, %s922
        %p924 = scmp.lt.s32.totalorder %s73, 1
        %s925 = scalar_select %p924, %s73, 1
        %s926 = smul.addr %s925, 8
        %s927 = scalar_lea.vmem %s3, %s926
        %p928 = scmp.lt.s32.totalorder %s73, 1
        %s929 = scalar_select %p928, %s73, 1
        %s930 = smul.addr %s929, 8
        %s931 = scalar_lea.vmem %s5, %s930
        %v932 = vld [vmem:[%s923] sm:$0xff]
        %v933 = vld [vmem:[%s931] sm:$0xff]
        %vm934 = vcmp.eq.f32.partialorder %v933, 0.0
        %v935 = vsel %vm934, -1e+09, 0.0
        %v936 = vld [vmem:[%s927] sm:$0xff]
        %vm937 = vcmp.eq.f32.partialorder %v936, 0.0
        %v938 = vsel %vm937, -1e+09, 0.0
        %v939 = vld [vmem:[%s47] sm:$0x1]
        %v940 = vld [vmem:[%s49] sm:$0x1]
        %vm941 = vcmask 261120
        %v942 = vsel %vm941, %v932, 0.0
        %943 = vadd.xlane.f32.xlu0 %v942
        %v944 = vpop.xlane.xlu0 %943
        %v945 = vrcp.pop 32.0
        %v946 = vmul.f32 32.0, %v945
        %v947 = vsub.f32 1.0, %v946
        %v948 = vmul.f32 %v945, %v947
        %v949 = vadd.f32 %v945, %v948
        %vm950 = vweird.f32 %v945
        %v951 = vsel %vm950, %v945, %v949
        %v952 = vmul.f32 %v944, %v951
        %v953 = vsub.f32 %v932, %v952
        %v954 = vmul.f32 %v953, %v953
        %v955 = vsel %vm941, %v954, 0.0
        %956 = vadd.xlane.f32.xlu0 %v955
        %v957 = vpop.xlane.xlu0 %956
        %v958 = vmul.f32 %v957, 0.032258064
        %v959 = vrsqrt.pop %v958
        %v960 = vmul.f32 %v959, %v958
        %v961 = vmul.f32 %v960, %v959
        %v962 = vmul.f32 0.5, %v961
        %v963 = vsub.f32 1.5, %v962
        %v964 = vmul.f32 %v959, %v963
        %v965 = vmul.f32 %v958, %v964
        %vm966 = vcmp.eq.f32.partialorder %v958, inf
        %v967 = vsel %vm966, %v958, %v965
        %vm968 = vcmp.eq.f32.partialorder %v958, 0.0
        %v969 = vand.u32 %v958, 2147483648
        %v970 = vsel %vm968, %v969, %v967
        %v971 = vadd.f32 %v970, 1e-06
        %v972 = vrcp.pop %v971
        %v973 = vmul.f32 %v971, %v972
        %v974 = vsub.f32 1.0, %v973
        %v975 = vmul.f32 %v972, %v974
        %v976 = vadd.f32 %v972, %v975
        %vm977 = vweird.f32 %v971
        %vm978 = vweird.f32 %v972
        %vm979 = vmor %vm977, %vm978
        %v980 = vsel %vm979, %v972, %v976
        %v981 = vand.u32 2147483647, %v971
        %vm982 = vcmp.eq.f32.partialorder %v981, 8.507059e+37
        %v983 = vand.u32 %v971, 2147483648
        %v984 = vor.u32 1.1754944e-38, %v983
        %v985 = vsel %vm982, %v984, %v980
        %v986 = vmul.f32 1.0, %v985
        %v988 = vperm.slane %v939, 0
        %v990 = vmul.f32 %v988, %v953
        %v991 = vmul.f32 %v990, %v986
        %v993 = vperm.slane %v940, 0
        %v995 = vadd.f32 %v991, %v993
        %v996 = vld [vmem:[%s7] sm:$0xff]
        %v997 = vld [vmem:[%s7 + $0x8] sm:$0xff]
        %v998 = vld [vmem:[%s7 + $0x10] sm:$0xff]
        %v999 = vld [vmem:[%s7 + $0x18] sm:$0xff]
        %v1000 = vld [vmem:[%s7 + $0x20] sm:$0xff]
        %v1001 = vld [vmem:[%s7 + $0x28] sm:$0xff]
        %v1002 = vld [vmem:[%s7 + $0x30] sm:$0xff]
        %v1003 = vld [vmem:[%s7 + $0x38] sm:$0xff]
        %v1004 = vld [vmem:[%s7 + $0x40] sm:$0xff]
        %v1005 = vld [vmem:[%s7 + $0x48] sm:$0xff]
        %v1006 = vld [vmem:[%s7 + $0x50] sm:$0xff]
        %v1007 = vld [vmem:[%s7 + $0x58] sm:$0xff]
        %v1008 = vld [vmem:[%s7 + $0x60] sm:$0xff]
        %v1009 = vld [vmem:[%s7 + $0x68] sm:$0xff]
        %v1010 = vld [vmem:[%s7 + $0x70] sm:$0xff]
        %v1011 = vld [vmem:[%s7 + $0x78] sm:$0xff]
        %v1012 = vld [vmem:[%s9] sm:$0x1]
        %v1013 = vld [vmem:[%s9 + $0x1] sm:$0x1]
        %v1014 = vld [vmem:[%s9 + $0x2] sm:$0x1]
        %v1015 = vld [vmem:[%s9 + $0x3] sm:$0x1]
        %v1016 = vld [vmem:[%s11] sm:$0xff]
        %v1017 = vld [vmem:[%s11 + $0x8] sm:$0xff]
        %v1018 = vld [vmem:[%s11 + $0x10] sm:$0xff]
        %v1019 = vld [vmem:[%s11 + $0x18] sm:$0xff]
        %v1020 = vld [vmem:[%s11 + $0x20] sm:$0xff]
        %v1021 = vld [vmem:[%s11 + $0x28] sm:$0xff]
        %v1022 = vld [vmem:[%s11 + $0x30] sm:$0xff]
        %v1023 = vld [vmem:[%s11 + $0x38] sm:$0xff]
        %v1024 = vld [vmem:[%s11 + $0x40] sm:$0xff]
        %v1025 = vld [vmem:[%s11 + $0x48] sm:$0xff]
        %v1026 = vld [vmem:[%s11 + $0x50] sm:$0xff]
        %v1027 = vld [vmem:[%s11 + $0x58] sm:$0xff]
        %v1028 = vld [vmem:[%s11 + $0x60] sm:$0xff]
        %v1029 = vld [vmem:[%s11 + $0x68] sm:$0xff]
        %v1030 = vld [vmem:[%s11 + $0x70] sm:$0xff]
        %v1031 = vld [vmem:[%s11 + $0x78] sm:$0xff]
        %v1032 = vld [vmem:[%s13] sm:$0x1]
        %v1033 = vld [vmem:[%s13 + $0x1] sm:$0x1]
        %v1034 = vld [vmem:[%s13 + $0x2] sm:$0x1]
        %v1035 = vld [vmem:[%s13 + $0x3] sm:$0x1]
        %v1036 = vld [vmem:[%s15] sm:$0xff]
        %v1037 = vld [vmem:[%s15 + $0x8] sm:$0xff]
        %v1038 = vld [vmem:[%s15 + $0x10] sm:$0xff]
        %v1039 = vld [vmem:[%s15 + $0x18] sm:$0xff]
        %v1040 = vld [vmem:[%s15 + $0x20] sm:$0xff]
        %v1041 = vld [vmem:[%s15 + $0x28] sm:$0xff]
        %v1042 = vld [vmem:[%s15 + $0x30] sm:$0xff]
        %v1043 = vld [vmem:[%s15 + $0x38] sm:$0xff]
        %v1044 = vld [vmem:[%s15 + $0x40] sm:$0xff]
        %v1045 = vld [vmem:[%s15 + $0x48] sm:$0xff]
        %v1046 = vld [vmem:[%s15 + $0x50] sm:$0xff]
        %v1047 = vld [vmem:[%s15 + $0x58] sm:$0xff]
        %v1048 = vld [vmem:[%s15 + $0x60] sm:$0xff]
        %v1049 = vld [vmem:[%s15 + $0x68] sm:$0xff]
        %v1050 = vld [vmem:[%s15 + $0x70] sm:$0xff]
        %v1051 = vld [vmem:[%s15 + $0x78] sm:$0xff]
        %v1052 = vld [vmem:[%s17] sm:$0x1]
        %v1053 = vld [vmem:[%s17 + $0x1] sm:$0x1]
        %v1054 = vld [vmem:[%s17 + $0x2] sm:$0x1]
        %v1055 = vld [vmem:[%s17 + $0x3] sm:$0x1]
        %v1056 = vld [vmem:[%s19] sm:$0xff]
        %v1057 = vld [vmem:[%s19 + $0x8] sm:$0xff]
        %v1058 = vld [vmem:[%s19 + $0x10] sm:$0xff]
        %v1059 = vld [vmem:[%s19 + $0x18] sm:$0xff]
        %v1060 = vld [vmem:[%s21] sm:$0x1]
        %v1065 = vperm.slane %v1012, 0
        %v1066 = vperm.slane %v1013, 0
        %v1067 = vperm.slane %v1014, 0
        %v1068 = vperm.slane %v1015, 0
        %v1074 = vsel %vm941, %v995, 0
        %1076 = vmatpush.msra.mxu0 0.0
        %1077 = vmatpush.msra.mxu0 0.0
        %1078 = vmatpush.msra.mxu0 0.0
        %1079 = vmatpush.msra.mxu0 0.0
        %1080 = vmatpush.msra.mxu0 0.0
        %1081 = vmatpush.msra.mxu0 0.0
        %1082 = vmatpush.msra.mxu0 0.0
        %1083 = vmatpush.msra.mxu0 0.0
        %1084 = vmatpush.msra.mxu0 0.0
        %1085 = vmatpush.msra.mxu0 0.0
        %1086 = vmatpush.msra.mxu0 0.0
        %1087 = vmatpush.msra.mxu0 0.0
        %1088 = vmatpush.msra.mxu0 %v999
        %1089 = vmatpush.msra.mxu0 %v998
        %1090 = vmatpush.msra.mxu0 %v997
        %1091 = vmatpush.msra.mxu0 %v996
        %1092 = vmatmul.f32.gmra.mxu0 %v1074
        %v1093 = vpop.f32.mrf.mxu0
        %v1094 = vadd.f32 %v1065, %v1093
        %1095 = vdwg.mxu0
        %1096 = vmatpush.msra.mxu0 0.0
        %1097 = vmatpush.msra.mxu0 0.0
        %1098 = vmatpush.msra.mxu0 0.0
        %1099 = vmatpush.msra.mxu0 0.0
        %1100 = vmatpush.msra.mxu0 0.0
        %1101 = vmatpush.msra.mxu0 0.0
        %1102 = vmatpush.msra.mxu0 0.0
        %1103 = vmatpush.msra.mxu0 0.0
        %1104 = vmatpush.msra.mxu0 0.0
        %1105 = vmatpush.msra.mxu0 0.0
        %1106 = vmatpush.msra.mxu0 0.0
        %1107 = vmatpush.msra.mxu0 0.0
        %1108 = vmatpush.msra.mxu0 %v1003
        %1109 = vmatpush.msra.mxu0 %v1002
        %1110 = vmatpush.msra.mxu0 %v1001
        %1111 = vmatpush.msra.mxu0 %v1000
        %1112 = vmatmul.f32.gmra.mxu0 %v1074
        %v1113 = vpop.f32.mrf.mxu0
        %v1114 = vadd.f32 %v1066, %v1113
        %1115 = vdwg.mxu0
        %1116 = vmatpush.msra.mxu0 0.0
        %1117 = vmatpush.msra.mxu0 0.0
        %1118 = vmatpush.msra.mxu0 0.0
        %1119 = vmatpush.msra.mxu0 0.0
        %1120 = vmatpush.msra.mxu0 0.0
        %1121 = vmatpush.msra.mxu0 0.0
        %1122 = vmatpush.msra.mxu0 0.0
        %1123 = vmatpush.msra.mxu0 0.0
        %1124 = vmatpush.msra.mxu0 0.0
        %1125 = vmatpush.msra.mxu0 0.0
        %1126 = vmatpush.msra.mxu0 0.0
        %1127 = vmatpush.msra.mxu0 0.0
        %1128 = vmatpush.msra.mxu0 %v1007
        %1129 = vmatpush.msra.mxu0 %v1006
        %1130 = vmatpush.msra.mxu0 %v1005
        %1131 = vmatpush.msra.mxu0 %v1004
        %1132 = vmatmul.f32.gmra.mxu0 %v1074
        %v1133 = vpop.f32.mrf.mxu0
        %v1134 = vadd.f32 %v1067, %v1133
        %1135 = vdwg.mxu0
        %1136 = vmatpush.msra.mxu0 0.0
        %1137 = vmatpush.msra.mxu0 0.0
        %1138 = vmatpush.msra.mxu0 0.0
        %1139 = vmatpush.msra.mxu0 0.0
        %1140 = vmatpush.msra.mxu0 0.0
        %1141 = vmatpush.msra.mxu0 0.0
        %1142 = vmatpush.msra.mxu0 0.0
        %1143 = vmatpush.msra.mxu0 0.0
        %1144 = vmatpush.msra.mxu0 0.0
        %1145 = vmatpush.msra.mxu0 0.0
        %1146 = vmatpush.msra.mxu0 0.0
        %1147 = vmatpush.msra.mxu0 0.0
        %1148 = vmatpush.msra.mxu0 %v1011
        %1149 = vmatpush.msra.mxu0 %v1010
        %1150 = vmatpush.msra.mxu0 %v1009
        %1151 = vmatpush.msra.mxu0 %v1008
        %1152 = vmatmul.f32.gmra.mxu0 %v1074
        %v1153 = vpop.f32.mrf.mxu0
        %v1154 = vadd.f32 %v1068, %v1153
        %1155 = vdwg.mxu0
        %v1160 = vperm.slane %v1032, 0
        %v1161 = vperm.slane %v1033, 0
        %v1162 = vperm.slane %v1034, 0
        %v1163 = vperm.slane %v1035, 0
        %1168 = vmatpush.msra.mxu0 0.0
        %1169 = vmatpush.msra.mxu0 0.0
        %1170 = vmatpush.msra.mxu0 0.0
        %1171 = vmatpush.msra.mxu0 0.0
        %1172 = vmatpush.msra.mxu0 0.0
        %1173 = vmatpush.msra.mxu0 0.0
        %1174 = vmatpush.msra.mxu0 0.0
        %1175 = vmatpush.msra.mxu0 0.0
        %1176 = vmatpush.msra.mxu0 0.0
        %1177 = vmatpush.msra.mxu0 0.0
        %1178 = vmatpush.msra.mxu0 0.0
        %1179 = vmatpush.msra.mxu0 0.0
        %1180 = vmatpush.msra.mxu0 %v1019
        %1181 = vmatpush.msra.mxu0 %v1018
        %1182 = vmatpush.msra.mxu0 %v1017
        %1183 = vmatpush.msra.mxu0 %v1016
        %1184 = vmatmul.f32.gmra.mxu0 %v1074
        %v1185 = vpop.f32.mrf.mxu0
        %v1186 = vadd.f32 %v1160, %v1185
        %1187 = vdwg.mxu0
        %1188 = vmatpush.msra.mxu0 0.0
        %1189 = vmatpush.msra.mxu0 0.0
        %1190 = vmatpush.msra.mxu0 0.0
        %1191 = vmatpush.msra.mxu0 0.0
        %1192 = vmatpush.msra.mxu0 0.0
        %1193 = vmatpush.msra.mxu0 0.0
        %1194 = vmatpush.msra.mxu0 0.0
        %1195 = vmatpush.msra.mxu0 0.0
        %1196 = vmatpush.msra.mxu0 0.0
        %1197 = vmatpush.msra.mxu0 0.0
        %1198 = vmatpush.msra.mxu0 0.0
        %1199 = vmatpush.msra.mxu0 0.0
        %1200 = vmatpush.msra.mxu0 %v1023
        %1201 = vmatpush.msra.mxu0 %v1022
        %1202 = vmatpush.msra.mxu0 %v1021
        %1203 = vmatpush.msra.mxu0 %v1020
        %1204 = vmatmul.f32.gmra.mxu0 %v1074
        %v1205 = vpop.f32.mrf.mxu0
        %v1206 = vadd.f32 %v1161, %v1205
        %1207 = vdwg.mxu0
        %1208 = vmatpush.msra.mxu0 0.0
        %1209 = vmatpush.msra.mxu0 0.0
        %1210 = vmatpush.msra.mxu0 0.0
        %1211 = vmatpush.msra.mxu0 0.0
        %1212 = vmatpush.msra.mxu0 0.0
        %1213 = vmatpush.msra.mxu0 0.0
        %1214 = vmatpush.msra.mxu0 0.0
        %1215 = vmatpush.msra.mxu0 0.0
        %1216 = vmatpush.msra.mxu0 0.0
        %1217 = vmatpush.msra.mxu0 0.0
        %1218 = vmatpush.msra.mxu0 0.0
        %1219 = vmatpush.msra.mxu0 0.0
        %1220 = vmatpush.msra.mxu0 %v1027
        %1221 = vmatpush.msra.mxu0 %v1026
        %1222 = vmatpush.msra.mxu0 %v1025
        %1223 = vmatpush.msra.mxu0 %v1024
        %1224 = vmatmul.f32.gmra.mxu0 %v1074
        %v1225 = vpop.f32.mrf.mxu0
        %v1226 = vadd.f32 %v1162, %v1225
        %1227 = vdwg.mxu0
        %1228 = vmatpush.msra.mxu0 0.0
        %1229 = vmatpush.msra.mxu0 0.0
        %1230 = vmatpush.msra.mxu0 0.0
        %1231 = vmatpush.msra.mxu0 0.0
        %1232 = vmatpush.msra.mxu0 0.0
        %1233 = vmatpush.msra.mxu0 0.0
        %1234 = vmatpush.msra.mxu0 0.0
        %1235 = vmatpush.msra.mxu0 0.0
        %1236 = vmatpush.msra.mxu0 0.0
        %1237 = vmatpush.msra.mxu0 0.0
        %1238 = vmatpush.msra.mxu0 0.0
        %1239 = vmatpush.msra.mxu0 0.0
        %1240 = vmatpush.msra.mxu0 %v1031
        %1241 = vmatpush.msra.mxu0 %v1030
        %1242 = vmatpush.msra.mxu0 %v1029
        %1243 = vmatpush.msra.mxu0 %v1028
        %1244 = vmatmul.f32.gmra.mxu0 %v1074
        %v1245 = vpop.f32.mrf.mxu0
        %v1246 = vadd.f32 %v1163, %v1245
        %1247 = vdwg.mxu0
        %v1252 = vperm.slane %v1052, 0
        %v1253 = vperm.slane %v1053, 0
        %v1254 = vperm.slane %v1054, 0
        %v1255 = vperm.slane %v1055, 0
        %1260 = vmatpush.msra.mxu0 0.0
        %1261 = vmatpush.msra.mxu0 0.0
        %1262 = vmatpush.msra.mxu0 0.0
        %1263 = vmatpush.msra.mxu0 0.0
        %1264 = vmatpush.msra.mxu0 0.0
        %1265 = vmatpush.msra.mxu0 0.0
        %1266 = vmatpush.msra.mxu0 0.0
        %1267 = vmatpush.msra.mxu0 0.0
        %1268 = vmatpush.msra.mxu0 0.0
        %1269 = vmatpush.msra.mxu0 0.0
        %1270 = vmatpush.msra.mxu0 0.0
        %1271 = vmatpush.msra.mxu0 0.0
        %1272 = vmatpush.msra.mxu0 %v1039
        %1273 = vmatpush.msra.mxu0 %v1038
        %1274 = vmatpush.msra.mxu0 %v1037
        %1275 = vmatpush.msra.mxu0 %v1036
        %1276 = vmatmul.f32.gmra.mxu0 %v1074
        %v1277 = vpop.f32.mrf.mxu0
        %v1278 = vadd.f32 %v1252, %v1277
        %1279 = vdwg.mxu0
        %1280 = vmatpush.msra.mxu0 0.0
        %1281 = vmatpush.msra.mxu0 0.0
        %1282 = vmatpush.msra.mxu0 0.0
        %1283 = vmatpush.msra.mxu0 0.0
        %1284 = vmatpush.msra.mxu0 0.0
        %1285 = vmatpush.msra.mxu0 0.0
        %1286 = vmatpush.msra.mxu0 0.0
        %1287 = vmatpush.msra.mxu0 0.0
        %1288 = vmatpush.msra.mxu0 0.0
        %1289 = vmatpush.msra.mxu0 0.0
        %1290 = vmatpush.msra.mxu0 0.0
        %1291 = vmatpush.msra.mxu0 0.0
        %1292 = vmatpush.msra.mxu0 %v1043
        %1293 = vmatpush.msra.mxu0 %v1042
        %1294 = vmatpush.msra.mxu0 %v1041
        %1295 = vmatpush.msra.mxu0 %v1040
        %1296 = vmatmul.f32.gmra.mxu0 %v1074
        %v1297 = vpop.f32.mrf.mxu0
        %v1298 = vadd.f32 %v1253, %v1297
        %1299 = vdwg.mxu0
        %1300 = vmatpush.msra.mxu0 0.0
        %1301 = vmatpush.msra.mxu0 0.0
        %1302 = vmatpush.msra.mxu0 0.0
        %1303 = vmatpush.msra.mxu0 0.0
        %1304 = vmatpush.msra.mxu0 0.0
        %1305 = vmatpush.msra.mxu0 0.0
        %1306 = vmatpush.msra.mxu0 0.0
        %1307 = vmatpush.msra.mxu0 0.0
        %1308 = vmatpush.msra.mxu0 0.0
        %1309 = vmatpush.msra.mxu0 0.0
        %1310 = vmatpush.msra.mxu0 0.0
        %1311 = vmatpush.msra.mxu0 0.0
        %1312 = vmatpush.msra.mxu0 %v1047
        %1313 = vmatpush.msra.mxu0 %v1046
        %1314 = vmatpush.msra.mxu0 %v1045
        %1315 = vmatpush.msra.mxu0 %v1044
        %1316 = vmatmul.f32.gmra.mxu0 %v1074
        %v1317 = vpop.f32.mrf.mxu0
        %v1318 = vadd.f32 %v1254, %v1317
        %1319 = vdwg.mxu0
        %1320 = vmatpush.msra.mxu0 0.0
        %1321 = vmatpush.msra.mxu0 0.0
        %1322 = vmatpush.msra.mxu0 0.0
        %1323 = vmatpush.msra.mxu0 0.0
        %1324 = vmatpush.msra.mxu0 0.0
        %1325 = vmatpush.msra.mxu0 0.0
        %1326 = vmatpush.msra.mxu0 0.0
        %1327 = vmatpush.msra.mxu0 0.0
        %1328 = vmatpush.msra.mxu0 0.0
        %1329 = vmatpush.msra.mxu0 0.0
        %1330 = vmatpush.msra.mxu0 0.0
        %1331 = vmatpush.msra.mxu0 0.0
        %1332 = vmatpush.msra.mxu0 %v1051
        %1333 = vmatpush.msra.mxu0 %v1050
        %1334 = vmatpush.msra.mxu0 %v1049
        %1335 = vmatpush.msra.mxu0 %v1048
        %1336 = vmatmul.f32.gmra.mxu0 %v1074
        %v1337 = vpop.f32.mrf.mxu0
        %v1338 = vadd.f32 %v1255, %v1337
        %1339 = vdwg.mxu0
        %vm1340 = vcmask 64512
        %v1342 = vsel %vm1340, %v1094, 0
        %v1345 = vsel %vm1340, %v1186, 0
        %1347 = vmatpush.xpose.msra.mxu0 0.0
        %1348 = vmatpush.xpose.msra.mxu0 0.0
        %1349 = vmatpush.xpose.msra.mxu0 0.0
        %1350 = vmatpush.xpose.msra.mxu0 0.0
        %1351 = vmatpush.xpose.msra.mxu0 0.0
        %1352 = vmatpush.xpose.msra.mxu0 0.0
        %1353 = vmatpush.xpose.msra.mxu0 0.0
        %1354 = vmatpush.xpose.msra.mxu0 0.0
        %1355 = vmatpush.xpose.msra.mxu0 0.0
        %1356 = vmatpush.xpose.msra.mxu0 0.0
        %1357 = vmatpush.xpose.msra.mxu0 0.0
        %1358 = vmatpush.xpose.msra.mxu0 0.0
        %1359 = vmatpush.xpose.msra.mxu0 0.0
        %1360 = vmatpush.xpose.msra.mxu0 0.0
        %1361 = vmatpush.xpose.msra.mxu0 0.0
        %1362 = vmatpush.xpose.msra.mxu0 %v1345
        %1363 = vmatmul.f32.gmra.mxu0 %v1342
        %v1364 = vpop.f32.mrf.mxu0
        %v1365 = vadd.f32 0.0, %v1364
        %1366 = vdwg.mxu0
        %v1368 = vsel %vm1340, %v1114, 0
        %v1371 = vsel %vm1340, %v1206, 0
        %1373 = vmatpush.xpose.msra.mxu0 0.0
        %1374 = vmatpush.xpose.msra.mxu0 0.0
        %1375 = vmatpush.xpose.msra.mxu0 0.0
        %1376 = vmatpush.xpose.msra.mxu0 0.0
        %1377 = vmatpush.xpose.msra.mxu0 0.0
        %1378 = vmatpush.xpose.msra.mxu0 0.0
        %1379 = vmatpush.xpose.msra.mxu0 0.0
        %1380 = vmatpush.xpose.msra.mxu0 0.0
        %1381 = vmatpush.xpose.msra.mxu0 0.0
        %1382 = vmatpush.xpose.msra.mxu0 0.0
        %1383 = vmatpush.xpose.msra.mxu0 0.0
        %1384 = vmatpush.xpose.msra.mxu0 0.0
        %1385 = vmatpush.xpose.msra.mxu0 0.0
        %1386 = vmatpush.xpose.msra.mxu0 0.0
        %1387 = vmatpush.xpose.msra.mxu0 0.0
        %1388 = vmatpush.xpose.msra.mxu0 %v1371
        %1389 = vmatmul.f32.gmra.mxu0 %v1368
        %v1390 = vpop.f32.mrf.mxu0
        %v1391 = vadd.f32 0.0, %v1390
        %1392 = vdwg.mxu0
        %v1394 = vsel %vm1340, %v1134, 0
        %v1397 = vsel %vm1340, %v1226, 0
        %1399 = vmatpush.xpose.msra.mxu0 0.0
        %1400 = vmatpush.xpose.msra.mxu0 0.0
        %1401 = vmatpush.xpose.msra.mxu0 0.0
        %1402 = vmatpush.xpose.msra.mxu0 0.0
        %1403 = vmatpush.xpose.msra.mxu0 0.0
        %1404 = vmatpush.xpose.msra.mxu0 0.0
        %1405 = vmatpush.xpose.msra.mxu0 0.0
        %1406 = vmatpush.xpose.msra.mxu0 0.0
        %1407 = vmatpush.xpose.msra.mxu0 0.0
        %1408 = vmatpush.xpose.msra.mxu0 0.0
        %1409 = vmatpush.xpose.msra.mxu0 0.0
        %1410 = vmatpush.xpose.msra.mxu0 0.0
        %1411 = vmatpush.xpose.msra.mxu0 0.0
        %1412 = vmatpush.xpose.msra.mxu0 0.0
        %1413 = vmatpush.xpose.msra.mxu0 0.0
        %1414 = vmatpush.xpose.msra.mxu0 %v1397
        %1415 = vmatmul.f32.gmra.mxu0 %v1394
        %v1416 = vpop.f32.mrf.mxu0
        %v1417 = vadd.f32 0.0, %v1416
        %1418 = vdwg.mxu0
        %v1420 = vsel %vm1340, %v1154, 0
        %v1423 = vsel %vm1340, %v1246, 0
        %1425 = vmatpush.xpose.msra.mxu0 0.0
        %1426 = vmatpush.xpose.msra.mxu0 0.0
        %1427 = vmatpush.xpose.msra.mxu0 0.0
        %1428 = vmatpush.xpose.msra.mxu0 0.0
        %1429 = vmatpush.xpose.msra.mxu0 0.0
        %1430 = vmatpush.xpose.msra.mxu0 0.0
        %1431 = vmatpush.xpose.msra.mxu0 0.0
        %1432 = vmatpush.xpose.msra.mxu0 0.0
        %1433 = vmatpush.xpose.msra.mxu0 0.0
        %1434 = vmatpush.xpose.msra.mxu0 0.0
        %1435 = vmatpush.xpose.msra.mxu0 0.0
        %1436 = vmatpush.xpose.msra.mxu0 0.0
        %1437 = vmatpush.xpose.msra.mxu0 0.0
        %1438 = vmatpush.xpose.msra.mxu0 0.0
        %1439 = vmatpush.xpose.msra.mxu0 0.0
        %1440 = vmatpush.xpose.msra.mxu0 %v1423
        %1441 = vmatmul.f32.gmra.mxu0 %v1420
        %v1442 = vpop.f32.mrf.mxu0
        %v1443 = vadd.f32 0.0, %v1442
        %1444 = vdwg.mxu0
        %v1445 = vmul.f32 %v1365, 0.35355338
        %v1446 = vmul.f32 %v1391, 0.35355338
        %v1447 = vmul.f32 %v1417, 0.35355338
        %v1448 = vmul.f32 %v1443, 0.35355338
        %v1449 = vadd.f32 %v1445, %v935
        %v1450 = vadd.f32 %v1446, %v935
        %v1451 = vadd.f32 %v1447, %v935
        %v1452 = vadd.f32 %v1448, %v935
        %v1453 = vsel %vm1340, %v1449, -inf
        %1454 = vmax.xlane.f32.xlu0 %v1453
        %v1455 = vpop.xlane.xlu0 %1454
        %v1456 = vsel %vm1340, %v1450, -inf
        %1457 = vmax.xlane.f32.xlu0 %v1456
        %v1458 = vpop.xlane.xlu0 %1457
        %v1459 = vsel %vm1340, %v1451, -inf
        %1460 = vmax.xlane.f32.xlu0 %v1459
        %v1461 = vpop.xlane.xlu0 %1460
        %v1462 = vsel %vm1340, %v1452, -inf
        %1463 = vmax.xlane.f32.xlu0 %v1462
        %v1464 = vpop.xlane.xlu0 %1463
        %v1465 = vsub.f32 %v1449, %v1455
        %v1466 = vsub.f32 %v1450, %v1458
        %v1467 = vsub.f32 %v1451, %v1461
        %v1468 = vsub.f32 %v1452, %v1464
        %v1469 = vmul.f32 %v1465, 1.442695
        %v1470 = vpow.pop %v1469
        %v1471 = vmul.f32 %v1466, 1.442695
        %v1472 = vpow.pop %v1471
        %v1473 = vmul.f32 %v1467, 1.442695
        %v1474 = vpow.pop %v1473
        %v1475 = vmul.f32 %v1468, 1.442695
        %v1476 = vpow.pop %v1475
        %v1477 = vsel %vm1340, %v1470, 0.0
        %1478 = vadd.xlane.f32.xlu0 %v1477
        %v1479 = vpop.xlane.xlu0 %1478
        %v1480 = vsel %vm1340, %v1472, 0.0
        %1481 = vadd.xlane.f32.xlu0 %v1480
        %v1482 = vpop.xlane.xlu0 %1481
        %v1483 = vsel %vm1340, %v1474, 0.0
        %1484 = vadd.xlane.f32.xlu0 %v1483
        %v1485 = vpop.xlane.xlu0 %1484
        %v1486 = vsel %vm1340, %v1476, 0.0
        %1487 = vadd.xlane.f32.xlu0 %v1486
        %v1488 = vpop.xlane.xlu0 %1487
        %v1489 = vrcp.pop %v1479
        %v1490 = vmul.f32 %v1479, %v1489
        %v1491 = vsub.f32 1.0, %v1490
        %v1492 = vmul.f32 %v1489, %v1491
        %v1493 = vadd.f32 %v1489, %v1492
        %vm1494 = vweird.f32 %v1479
        %vm1495 = vweird.f32 %v1489
        %vm1496 = vmor %vm1494, %vm1495
        %v1497 = vsel %vm1496, %v1489, %v1493
        %v1498 = vand.u32 2147483647, %v1479
        %vm1499 = vcmp.eq.f32.partialorder %v1498, 8.507059e+37
        %v1500 = vand.u32 %v1479, 2147483648
        %v1501 = vor.u32 1.1754944e-38, %v1500
        %v1502 = vsel %vm1499, %v1501, %v1497
        %v1503 = vmul.f32 1.0, %v1502
        %v1504 = vrcp.pop %v1482
        %v1505 = vmul.f32 %v1482, %v1504
        %v1506 = vsub.f32 1.0, %v1505
        %v1507 = vmul.f32 %v1504, %v1506
        %v1508 = vadd.f32 %v1504, %v1507
        %vm1509 = vweird.f32 %v1482
        %vm1510 = vweird.f32 %v1504
        %vm1511 = vmor %vm1509, %vm1510
        %v1512 = vsel %vm1511, %v1504, %v1508
        %v1513 = vand.u32 2147483647, %v1482
        %vm1514 = vcmp.eq.f32.partialorder %v1513, 8.507059e+37
        %v1515 = vand.u32 %v1482, 2147483648
        %v1516 = vor.u32 1.1754944e-38, %v1515
        %v1517 = vsel %vm1514, %v1516, %v1512
        %v1518 = vmul.f32 1.0, %v1517
        %v1519 = vrcp.pop %v1485
        %v1520 = vmul.f32 %v1485, %v1519
        %v1521 = vsub.f32 1.0, %v1520
        %v1522 = vmul.f32 %v1519, %v1521
        %v1523 = vadd.f32 %v1519, %v1522
        %vm1524 = vweird.f32 %v1485
        %vm1525 = vweird.f32 %v1519
        %vm1526 = vmor %vm1524, %vm1525
        %v1527 = vsel %vm1526, %v1519, %v1523
        %v1528 = vand.u32 2147483647, %v1485
        %vm1529 = vcmp.eq.f32.partialorder %v1528, 8.507059e+37
        %v1530 = vand.u32 %v1485, 2147483648
        %v1531 = vor.u32 1.1754944e-38, %v1530
        %v1532 = vsel %vm1529, %v1531, %v1527
        %v1533 = vmul.f32 1.0, %v1532
        %v1534 = vrcp.pop %v1488
        %v1535 = vmul.f32 %v1488, %v1534
        %v1536 = vsub.f32 1.0, %v1535
        %v1537 = vmul.f32 %v1534, %v1536
        %v1538 = vadd.f32 %v1534, %v1537
        %vm1539 = vweird.f32 %v1488
        %vm1540 = vweird.f32 %v1534
        %vm1541 = vmor %vm1539, %vm1540
        %v1542 = vsel %vm1541, %v1534, %v1538
        %v1543 = vand.u32 2147483647, %v1488
        %vm1544 = vcmp.eq.f32.partialorder %v1543, 8.507059e+37
        %v1545 = vand.u32 %v1488, 2147483648
        %v1546 = vor.u32 1.1754944e-38, %v1545
        %v1547 = vsel %vm1544, %v1546, %v1542
        %v1548 = vmul.f32 1.0, %v1547
        %v1549 = vmul.f32 %v1470, %v1503
        %v1550 = vmul.f32 %v1472, %v1518
        %v1551 = vmul.f32 %v1474, %v1533
        %v1552 = vmul.f32 %v1476, %v1548
        %v1554 = vsel %vm1340, %v1549, 0
        %1556 = vmatpush.msra.mxu0 0.0
        %1557 = vmatpush.msra.mxu0 0.0
        %1558 = vmatpush.msra.mxu0 0.0
        %1559 = vmatpush.msra.mxu0 0.0
        %1560 = vmatpush.msra.mxu0 0.0
        %1561 = vmatpush.msra.mxu0 0.0
        %1562 = vmatpush.msra.mxu0 0.0
        %1563 = vmatpush.msra.mxu0 0.0
        %1564 = vmatpush.msra.mxu0 0.0
        %1565 = vmatpush.msra.mxu0 0.0
        %1566 = vmatpush.msra.mxu0 0.0
        %1567 = vmatpush.msra.mxu0 0.0
        %1568 = vmatpush.msra.mxu0 0.0
        %1569 = vmatpush.msra.mxu0 0.0
        %1570 = vmatpush.msra.mxu0 0.0
        %1571 = vmatpush.msra.mxu0 %v1278
        %1572 = vmatmul.f32.gmra.mxu0 %v1554
        %v1573 = vpop.f32.mrf.mxu0
        %v1574 = vadd.f32 0.0, %v1573
        %1575 = vdwg.mxu0
        %v1577 = vsel %vm1340, %v1550, 0
        %1579 = vmatpush.msra.mxu0 0.0
        %1580 = vmatpush.msra.mxu0 0.0
        %1581 = vmatpush.msra.mxu0 0.0
        %1582 = vmatpush.msra.mxu0 0.0
        %1583 = vmatpush.msra.mxu0 0.0
        %1584 = vmatpush.msra.mxu0 0.0
        %1585 = vmatpush.msra.mxu0 0.0
        %1586 = vmatpush.msra.mxu0 0.0
        %1587 = vmatpush.msra.mxu0 0.0
        %1588 = vmatpush.msra.mxu0 0.0
        %1589 = vmatpush.msra.mxu0 0.0
        %1590 = vmatpush.msra.mxu0 0.0
        %1591 = vmatpush.msra.mxu0 0.0
        %1592 = vmatpush.msra.mxu0 0.0
        %1593 = vmatpush.msra.mxu0 0.0
        %1594 = vmatpush.msra.mxu0 %v1298
        %1595 = vmatmul.f32.gmra.mxu0 %v1577
        %v1596 = vpop.f32.mrf.mxu0
        %v1597 = vadd.f32 0.0, %v1596
        %1598 = vdwg.mxu0
        %v1600 = vsel %vm1340, %v1551, 0
        %1602 = vmatpush.msra.mxu0 0.0
        %1603 = vmatpush.msra.mxu0 0.0
        %1604 = vmatpush.msra.mxu0 0.0
        %1605 = vmatpush.msra.mxu0 0.0
        %1606 = vmatpush.msra.mxu0 0.0
        %1607 = vmatpush.msra.mxu0 0.0
        %1608 = vmatpush.msra.mxu0 0.0
        %1609 = vmatpush.msra.mxu0 0.0
        %1610 = vmatpush.msra.mxu0 0.0
        %1611 = vmatpush.msra.mxu0 0.0
        %1612 = vmatpush.msra.mxu0 0.0
        %1613 = vmatpush.msra.mxu0 0.0
        %1614 = vmatpush.msra.mxu0 0.0
        %1615 = vmatpush.msra.mxu0 0.0
        %1616 = vmatpush.msra.mxu0 0.0
        %1617 = vmatpush.msra.mxu0 %v1318
        %1618 = vmatmul.f32.gmra.mxu0 %v1600
        %v1619 = vpop.f32.mrf.mxu0
        %v1620 = vadd.f32 0.0, %v1619
        %1621 = vdwg.mxu0
        %v1623 = vsel %vm1340, %v1552, 0
        %1625 = vmatpush.msra.mxu0 0.0
        %1626 = vmatpush.msra.mxu0 0.0
        %1627 = vmatpush.msra.mxu0 0.0
        %1628 = vmatpush.msra.mxu0 0.0
        %1629 = vmatpush.msra.mxu0 0.0
        %1630 = vmatpush.msra.mxu0 0.0
        %1631 = vmatpush.msra.mxu0 0.0
        %1632 = vmatpush.msra.mxu0 0.0
        %1633 = vmatpush.msra.mxu0 0.0
        %1634 = vmatpush.msra.mxu0 0.0
        %1635 = vmatpush.msra.mxu0 0.0
        %1636 = vmatpush.msra.mxu0 0.0
        %1637 = vmatpush.msra.mxu0 0.0
        %1638 = vmatpush.msra.mxu0 0.0
        %1639 = vmatpush.msra.mxu0 0.0
        %1640 = vmatpush.msra.mxu0 %v1338
        %1641 = vmatmul.f32.gmra.mxu0 %v1623
        %v1642 = vpop.f32.mrf.mxu0
        %v1643 = vadd.f32 0.0, %v1642
        %1644 = vdwg.mxu0
        %v1646 = vsel %vm1340, %v1574, 0
        %1648 = vmatpush.msra.mxu0 0.0
        %1649 = vmatpush.msra.mxu0 0.0
        %1650 = vmatpush.msra.mxu0 0.0
        %1651 = vmatpush.msra.mxu0 0.0
        %1652 = vmatpush.msra.mxu0 0.0
        %1653 = vmatpush.msra.mxu0 0.0
        %1654 = vmatpush.msra.mxu0 0.0
        %1655 = vmatpush.msra.mxu0 0.0
        %1656 = vmatpush.msra.mxu0 0.0
        %1657 = vmatpush.msra.mxu0 0.0
        %1658 = vmatpush.msra.mxu0 0.0
        %1659 = vmatpush.msra.mxu0 0.0
        %1660 = vmatpush.msra.mxu0 0.0
        %1661 = vmatpush.msra.mxu0 0.0
        %1662 = vmatpush.msra.mxu0 0.0
        %1663 = vmatpush.msra.mxu0 %v1056
        %1664 = vmatmul.f32.gmra.mxu0 %v1646
        %v1665 = vpop.f32.mrf.mxu0
        %v1666 = vadd.f32 0.0, %v1665
        %1667 = vdwg.mxu0
        %v1669 = vsel %vm1340, %v1597, 0
        %1671 = vmatpush.msra.mxu0 0.0
        %1672 = vmatpush.msra.mxu0 0.0
        %1673 = vmatpush.msra.mxu0 0.0
        %1674 = vmatpush.msra.mxu0 0.0
        %1675 = vmatpush.msra.mxu0 0.0
        %1676 = vmatpush.msra.mxu0 0.0
        %1677 = vmatpush.msra.mxu0 0.0
        %1678 = vmatpush.msra.mxu0 0.0
        %1679 = vmatpush.msra.mxu0 0.0
        %1680 = vmatpush.msra.mxu0 0.0
        %1681 = vmatpush.msra.mxu0 0.0
        %1682 = vmatpush.msra.mxu0 0.0
        %1683 = vmatpush.msra.mxu0 0.0
        %1684 = vmatpush.msra.mxu0 0.0
        %1685 = vmatpush.msra.mxu0 0.0
        %1686 = vmatpush.msra.mxu0 %v1057
        %1687 = vmatmul.f32.gmra.mxu0 %v1669
        %v1688 = vpop.f32.mrf.mxu0
        %v1689 = vadd.f32 0.0, %v1688
        %1690 = vdwg.mxu0
        %v1692 = vsel %vm1340, %v1620, 0
        %1694 = vmatpush.msra.mxu0 0.0
        %1695 = vmatpush.msra.mxu0 0.0
        %1696 = vmatpush.msra.mxu0 0.0
        %1697 = vmatpush.msra.mxu0 0.0
        %1698 = vmatpush.msra.mxu0 0.0
        %1699 = vmatpush.msra.mxu0 0.0
        %1700 = vmatpush.msra.mxu0 0.0
        %1701 = vmatpush.msra.mxu0 0.0
        %1702 = vmatpush.msra.mxu0 0.0
        %1703 = vmatpush.msra.mxu0 0.0
        %1704 = vmatpush.msra.mxu0 0.0
        %1705 = vmatpush.msra.mxu0 0.0
        %1706 = vmatpush.msra.mxu0 0.0
        %1707 = vmatpush.msra.mxu0 0.0
        %1708 = vmatpush.msra.mxu0 0.0
        %1709 = vmatpush.msra.mxu0 %v1058
        %1710 = vmatmul.f32.gmra.mxu0 %v1692
        %v1711 = vpop.f32.mrf.mxu0
        %v1712 = vadd.f32 0.0, %v1711
        %1713 = vdwg.mxu0
        %v1715 = vsel %vm1340, %v1643, 0
        %1717 = vmatpush.msra.mxu0 0.0
        %1718 = vmatpush.msra.mxu0 0.0
        %1719 = vmatpush.msra.mxu0 0.0
        %1720 = vmatpush.msra.mxu0 0.0
        %1721 = vmatpush.msra.mxu0 0.0
        %1722 = vmatpush.msra.mxu0 0.0
        %1723 = vmatpush.msra.mxu0 0.0
        %1724 = vmatpush.msra.mxu0 0.0
        %1725 = vmatpush.msra.mxu0 0.0
        %1726 = vmatpush.msra.mxu0 0.0
        %1727 = vmatpush.msra.mxu0 0.0
        %1728 = vmatpush.msra.mxu0 0.0
        %1729 = vmatpush.msra.mxu0 0.0
        %1730 = vmatpush.msra.mxu0 0.0
        %1731 = vmatpush.msra.mxu0 0.0
        %1732 = vmatpush.msra.mxu0 %v1059
        %1733 = vmatmul.f32.gmra.mxu0 %v1715
        %v1734 = vpop.f32.mrf.mxu0
        %v1735 = vadd.f32 0.0, %v1734
        %1736 = vdwg.mxu0
        %v1737 = vsel %vm941, %v1666, 0.0
        %v1738 = vsel %vm941, %v1689, 0.0
        %v1739 = vadd.f32 %v1737, %v1738
        %v1740 = vsel %vm941, %v1712, 0.0
        %v1741 = vadd.f32 %v1739, %v1740
        %v1742 = vsel %vm941, %v1735, 0.0
        %v1743 = vadd.f32 %v1741, %v1742
        %v1745 = vperm.slane %v1060, 0
        %v1747 = vadd.f32 %v1743, %v1745
        %v1748 = vadd.f32 %v1747, %v932
        %v1749 = vld [vmem:[%s51] sm:$0x1]
        %v1750 = vld [vmem:[%s53] sm:$0x1]
        %v1751 = vsel %vm941, %v1748, 0.0
        %1752 = vadd.xlane.f32.xlu0 %v1751
        %v1753 = vpop.xlane.xlu0 %1752
        %v1754 = vmul.f32 %v1753, %v951
        %v1755 = vsub.f32 %v1748, %v1754
        %v1756 = vmul.f32 %v1755, %v1755
        %v1757 = vsel %vm941, %v1756, 0.0
        %1758 = vadd.xlane.f32.xlu0 %v1757
        %v1759 = vpop.xlane.xlu0 %1758
        %v1760 = vmul.f32 %v1759, 0.032258064
        %v1761 = vrsqrt.pop %v1760
        %v1762 = vmul.f32 %v1761, %v1760
        %v1763 = vmul.f32 %v1762, %v1761
        %v1764 = vmul.f32 0.5, %v1763
        %v1765 = vsub.f32 1.5, %v1764
        %v1766 = vmul.f32 %v1761, %v1765
        %v1767 = vmul.f32 %v1760, %v1766
        %vm1768 = vcmp.eq.f32.partialorder %v1760, inf
        %v1769 = vsel %vm1768, %v1760, %v1767
        %vm1770 = vcmp.eq.f32.partialorder %v1760, 0.0
        %v1771 = vand.u32 %v1760, 2147483648
        %v1772 = vsel %vm1770, %v1771, %v1769
        %v1773 = vadd.f32 %v1772, 1e-06
        %v1774 = vrcp.pop %v1773
        %v1775 = vmul.f32 %v1773, %v1774
        %v1776 = vsub.f32 1.0, %v1775
        %v1777 = vmul.f32 %v1774, %v1776
        %v1778 = vadd.f32 %v1774, %v1777
        %vm1779 = vweird.f32 %v1773
        %vm1780 = vweird.f32 %v1774
        %vm1781 = vmor %vm1779, %vm1780
        %v1782 = vsel %vm1781, %v1774, %v1778
        %v1783 = vand.u32 2147483647, %v1773
        %vm1784 = vcmp.eq.f32.partialorder %v1783, 8.507059e+37
        %v1785 = vand.u32 %v1773, 2147483648
        %v1786 = vor.u32 1.1754944e-38, %v1785
        %v1787 = vsel %vm1784, %v1786, %v1782
        %v1788 = vmul.f32 1.0, %v1787
        %v1790 = vperm.slane %v1749, 0
        %v1792 = vmul.f32 %v1790, %v1755
        %v1793 = vmul.f32 %v1792, %v1788
        %v1795 = vperm.slane %v1750, 0
        %v1797 = vadd.f32 %v1793, %v1795
        %v1798 = vld [vmem:[%s23] sm:$0xff]
        %v1799 = vld [vmem:[%s23 + $0x8] sm:$0xff]
        %v1800 = vld [vmem:[%s23 + $0x10] sm:$0xff]
        %v1801 = vld [vmem:[%s23 + $0x18] sm:$0xff]
        %v1802 = vld [vmem:[%s23 + $0x20] sm:$0xff]
        %v1803 = vld [vmem:[%s23 + $0x28] sm:$0xff]
        %v1804 = vld [vmem:[%s23 + $0x30] sm:$0xff]
        %v1805 = vld [vmem:[%s23 + $0x38] sm:$0xff]
        %v1806 = vld [vmem:[%s23 + $0x40] sm:$0xff]
        %v1807 = vld [vmem:[%s23 + $0x48] sm:$0xff]
        %v1808 = vld [vmem:[%s23 + $0x50] sm:$0xff]
        %v1809 = vld [vmem:[%s23 + $0x58] sm:$0xff]
        %v1810 = vld [vmem:[%s23 + $0x60] sm:$0xff]
        %v1811 = vld [vmem:[%s23 + $0x68] sm:$0xff]
        %v1812 = vld [vmem:[%s23 + $0x70] sm:$0xff]
        %v1813 = vld [vmem:[%s23 + $0x78] sm:$0xff]
        %v1814 = vld [vmem:[%s25] sm:$0x1]
        %v1815 = vld [vmem:[%s25 + $0x1] sm:$0x1]
        %v1816 = vld [vmem:[%s25 + $0x2] sm:$0x1]
        %v1817 = vld [vmem:[%s25 + $0x3] sm:$0x1]
        %v1818 = vld [vmem:[%s27] sm:$0xff]
        %v1819 = vld [vmem:[%s27 + $0x8] sm:$0xff]
        %v1820 = vld [vmem:[%s27 + $0x10] sm:$0xff]
        %v1821 = vld [vmem:[%s27 + $0x18] sm:$0xff]
        %v1822 = vld [vmem:[%s27 + $0x20] sm:$0xff]
        %v1823 = vld [vmem:[%s27 + $0x28] sm:$0xff]
        %v1824 = vld [vmem:[%s27 + $0x30] sm:$0xff]
        %v1825 = vld [vmem:[%s27 + $0x38] sm:$0xff]
        %v1826 = vld [vmem:[%s27 + $0x40] sm:$0xff]
        %v1827 = vld [vmem:[%s27 + $0x48] sm:$0xff]
        %v1828 = vld [vmem:[%s27 + $0x50] sm:$0xff]
        %v1829 = vld [vmem:[%s27 + $0x58] sm:$0xff]
        %v1830 = vld [vmem:[%s27 + $0x60] sm:$0xff]
        %v1831 = vld [vmem:[%s27 + $0x68] sm:$0xff]
        %v1832 = vld [vmem:[%s27 + $0x70] sm:$0xff]
        %v1833 = vld [vmem:[%s27 + $0x78] sm:$0xff]
        %v1834 = vld [vmem:[%s29] sm:$0x1]
        %v1835 = vld [vmem:[%s29 + $0x1] sm:$0x1]
        %v1836 = vld [vmem:[%s29 + $0x2] sm:$0x1]
        %v1837 = vld [vmem:[%s29 + $0x3] sm:$0x1]
        %v1838 = vld [vmem:[%s31] sm:$0xff]
        %v1839 = vld [vmem:[%s31 + $0x8] sm:$0xff]
        %v1840 = vld [vmem:[%s31 + $0x10] sm:$0xff]
        %v1841 = vld [vmem:[%s31 + $0x18] sm:$0xff]
        %v1842 = vld [vmem:[%s31 + $0x20] sm:$0xff]
        %v1843 = vld [vmem:[%s31 + $0x28] sm:$0xff]
        %v1844 = vld [vmem:[%s31 + $0x30] sm:$0xff]
        %v1845 = vld [vmem:[%s31 + $0x38] sm:$0xff]
        %v1846 = vld [vmem:[%s31 + $0x40] sm:$0xff]
        %v1847 = vld [vmem:[%s31 + $0x48] sm:$0xff]
        %v1848 = vld [vmem:[%s31 + $0x50] sm:$0xff]
        %v1849 = vld [vmem:[%s31 + $0x58] sm:$0xff]
        %v1850 = vld [vmem:[%s31 + $0x60] sm:$0xff]
        %v1851 = vld [vmem:[%s31 + $0x68] sm:$0xff]
        %v1852 = vld [vmem:[%s31 + $0x70] sm:$0xff]
        %v1853 = vld [vmem:[%s31 + $0x78] sm:$0xff]
        %v1854 = vld [vmem:[%s33] sm:$0x1]
        %v1855 = vld [vmem:[%s33 + $0x1] sm:$0x1]
        %v1856 = vld [vmem:[%s33 + $0x2] sm:$0x1]
        %v1857 = vld [vmem:[%s33 + $0x3] sm:$0x1]
        %v1858 = vld [vmem:[%s35] sm:$0xff]
        %v1859 = vld [vmem:[%s35 + $0x8] sm:$0xff]
        %v1860 = vld [vmem:[%s35 + $0x10] sm:$0xff]
        %v1861 = vld [vmem:[%s35 + $0x18] sm:$0xff]
        %v1862 = vld [vmem:[%s37] sm:$0x1]
        %v1867 = vperm.slane %v1814, 0
        %v1868 = vperm.slane %v1815, 0
        %v1869 = vperm.slane %v1816, 0
        %v1870 = vperm.slane %v1817, 0
        %v1876 = vsel %vm941, %v1797, 0
        %1878 = vmatpush.msra.mxu0 0.0
        %1879 = vmatpush.msra.mxu0 0.0
        %1880 = vmatpush.msra.mxu0 0.0
        %1881 = vmatpush.msra.mxu0 0.0
        %1882 = vmatpush.msra.mxu0 0.0
        %1883 = vmatpush.msra.mxu0 0.0
        %1884 = vmatpush.msra.mxu0 0.0
        %1885 = vmatpush.msra.mxu0 0.0
        %1886 = vmatpush.msra.mxu0 0.0
        %1887 = vmatpush.msra.mxu0 0.0
        %1888 = vmatpush.msra.mxu0 0.0
        %1889 = vmatpush.msra.mxu0 0.0
        %1890 = vmatpush.msra.mxu0 %v1801
        %1891 = vmatpush.msra.mxu0 %v1800
        %1892 = vmatpush.msra.mxu0 %v1799
        %1893 = vmatpush.msra.mxu0 %v1798
        %1894 = vmatmul.f32.gmra.mxu0 %v1876
        %v1895 = vpop.f32.mrf.mxu0
        %v1896 = vadd.f32 %v1867, %v1895
        %1897 = vdwg.mxu0
        %1898 = vmatpush.msra.mxu0 0.0
        %1899 = vmatpush.msra.mxu0 0.0
        %1900 = vmatpush.msra.mxu0 0.0
        %1901 = vmatpush.msra.mxu0 0.0
        %1902 = vmatpush.msra.mxu0 0.0
        %1903 = vmatpush.msra.mxu0 0.0
        %1904 = vmatpush.msra.mxu0 0.0
        %1905 = vmatpush.msra.mxu0 0.0
        %1906 = vmatpush.msra.mxu0 0.0
        %1907 = vmatpush.msra.mxu0 0.0
        %1908 = vmatpush.msra.mxu0 0.0
        %1909 = vmatpush.msra.mxu0 0.0
        %1910 = vmatpush.msra.mxu0 %v1805
        %1911 = vmatpush.msra.mxu0 %v1804
        %1912 = vmatpush.msra.mxu0 %v1803
        %1913 = vmatpush.msra.mxu0 %v1802
        %1914 = vmatmul.f32.gmra.mxu0 %v1876
        %v1915 = vpop.f32.mrf.mxu0
        %v1916 = vadd.f32 %v1868, %v1915
        %1917 = vdwg.mxu0
        %1918 = vmatpush.msra.mxu0 0.0
        %1919 = vmatpush.msra.mxu0 0.0
        %1920 = vmatpush.msra.mxu0 0.0
        %1921 = vmatpush.msra.mxu0 0.0
        %1922 = vmatpush.msra.mxu0 0.0
        %1923 = vmatpush.msra.mxu0 0.0
        %1924 = vmatpush.msra.mxu0 0.0
        %1925 = vmatpush.msra.mxu0 0.0
        %1926 = vmatpush.msra.mxu0 0.0
        %1927 = vmatpush.msra.mxu0 0.0
        %1928 = vmatpush.msra.mxu0 0.0
        %1929 = vmatpush.msra.mxu0 0.0
        %1930 = vmatpush.msra.mxu0 %v1809
        %1931 = vmatpush.msra.mxu0 %v1808
        %1932 = vmatpush.msra.mxu0 %v1807
        %1933 = vmatpush.msra.mxu0 %v1806
        %1934 = vmatmul.f32.gmra.mxu0 %v1876
        %v1935 = vpop.f32.mrf.mxu0
        %v1936 = vadd.f32 %v1869, %v1935
        %1937 = vdwg.mxu0
        %1938 = vmatpush.msra.mxu0 0.0
        %1939 = vmatpush.msra.mxu0 0.0
        %1940 = vmatpush.msra.mxu0 0.0
        %1941 = vmatpush.msra.mxu0 0.0
        %1942 = vmatpush.msra.mxu0 0.0
        %1943 = vmatpush.msra.mxu0 0.0
        %1944 = vmatpush.msra.mxu0 0.0
        %1945 = vmatpush.msra.mxu0 0.0
        %1946 = vmatpush.msra.mxu0 0.0
        %1947 = vmatpush.msra.mxu0 0.0
        %1948 = vmatpush.msra.mxu0 0.0
        %1949 = vmatpush.msra.mxu0 0.0
        %1950 = vmatpush.msra.mxu0 %v1813
        %1951 = vmatpush.msra.mxu0 %v1812
        %1952 = vmatpush.msra.mxu0 %v1811
        %1953 = vmatpush.msra.mxu0 %v1810
        %1954 = vmatmul.f32.gmra.mxu0 %v1876
        %v1955 = vpop.f32.mrf.mxu0
        %v1956 = vadd.f32 %v1870, %v1955
        %1957 = vdwg.mxu0
        %v1962 = vperm.slane %v1834, 0
        %v1963 = vperm.slane %v1835, 0
        %v1964 = vperm.slane %v1836, 0
        %v1965 = vperm.slane %v1837, 0
        %1970 = vmatpush.msra.mxu0 0.0
        %1971 = vmatpush.msra.mxu0 0.0
        %1972 = vmatpush.msra.mxu0 0.0
        %1973 = vmatpush.msra.mxu0 0.0
        %1974 = vmatpush.msra.mxu0 0.0
        %1975 = vmatpush.msra.mxu0 0.0
        %1976 = vmatpush.msra.mxu0 0.0
        %1977 = vmatpush.msra.mxu0 0.0
        %1978 = vmatpush.msra.mxu0 0.0
        %1979 = vmatpush.msra.mxu0 0.0
        %1980 = vmatpush.msra.mxu0 0.0
        %1981 = vmatpush.msra.mxu0 0.0
        %1982 = vmatpush.msra.mxu0 %v1821
        %1983 = vmatpush.msra.mxu0 %v1820
        %1984 = vmatpush.msra.mxu0 %v1819
        %1985 = vmatpush.msra.mxu0 %v1818
        %1986 = vmatmul.f32.gmra.mxu0 %v1876
        %v1987 = vpop.f32.mrf.mxu0
        %v1988 = vadd.f32 %v1962, %v1987
        %1989 = vdwg.mxu0
        %1990 = vmatpush.msra.mxu0 0.0
        %1991 = vmatpush.msra.mxu0 0.0
        %1992 = vmatpush.msra.mxu0 0.0
        %1993 = vmatpush.msra.mxu0 0.0
        %1994 = vmatpush.msra.mxu0 0.0
        %1995 = vmatpush.msra.mxu0 0.0
        %1996 = vmatpush.msra.mxu0 0.0
        %1997 = vmatpush.msra.mxu0 0.0
        %1998 = vmatpush.msra.mxu0 0.0
        %1999 = vmatpush.msra.mxu0 0.0
        %2000 = vmatpush.msra.mxu0 0.0
        %2001 = vmatpush.msra.mxu0 0.0
        %2002 = vmatpush.msra.mxu0 %v1825
        %2003 = vmatpush.msra.mxu0 %v1824
        %2004 = vmatpush.msra.mxu0 %v1823
        %2005 = vmatpush.msra.mxu0 %v1822
        %2006 = vmatmul.f32.gmra.mxu0 %v1876
        %v2007 = vpop.f32.mrf.mxu0
        %v2008 = vadd.f32 %v1963, %v2007
        %2009 = vdwg.mxu0
        %2010 = vmatpush.msra.mxu0 0.0
        %2011 = vmatpush.msra.mxu0 0.0
        %2012 = vmatpush.msra.mxu0 0.0
        %2013 = vmatpush.msra.mxu0 0.0
        %2014 = vmatpush.msra.mxu0 0.0
        %2015 = vmatpush.msra.mxu0 0.0
        %2016 = vmatpush.msra.mxu0 0.0
        %2017 = vmatpush.msra.mxu0 0.0
        %2018 = vmatpush.msra.mxu0 0.0
        %2019 = vmatpush.msra.mxu0 0.0
        %2020 = vmatpush.msra.mxu0 0.0
        %2021 = vmatpush.msra.mxu0 0.0
        %2022 = vmatpush.msra.mxu0 %v1829
        %2023 = vmatpush.msra.mxu0 %v1828
        %2024 = vmatpush.msra.mxu0 %v1827
        %2025 = vmatpush.msra.mxu0 %v1826
        %2026 = vmatmul.f32.gmra.mxu0 %v1876
        %v2027 = vpop.f32.mrf.mxu0
        %v2028 = vadd.f32 %v1964, %v2027
        %2029 = vdwg.mxu0
        %2030 = vmatpush.msra.mxu0 0.0
        %2031 = vmatpush.msra.mxu0 0.0
        %2032 = vmatpush.msra.mxu0 0.0
        %2033 = vmatpush.msra.mxu0 0.0
        %2034 = vmatpush.msra.mxu0 0.0
        %2035 = vmatpush.msra.mxu0 0.0
        %2036 = vmatpush.msra.mxu0 0.0
        %2037 = vmatpush.msra.mxu0 0.0
        %2038 = vmatpush.msra.mxu0 0.0
        %2039 = vmatpush.msra.mxu0 0.0
        %2040 = vmatpush.msra.mxu0 0.0
        %2041 = vmatpush.msra.mxu0 0.0
        %2042 = vmatpush.msra.mxu0 %v1833
        %2043 = vmatpush.msra.mxu0 %v1832
        %2044 = vmatpush.msra.mxu0 %v1831
        %2045 = vmatpush.msra.mxu0 %v1830
        %2046 = vmatmul.f32.gmra.mxu0 %v1876
        %v2047 = vpop.f32.mrf.mxu0
        %v2048 = vadd.f32 %v1965, %v2047
        %2049 = vdwg.mxu0
        %v2054 = vperm.slane %v1854, 0
        %v2055 = vperm.slane %v1855, 0
        %v2056 = vperm.slane %v1856, 0
        %v2057 = vperm.slane %v1857, 0
        %2062 = vmatpush.msra.mxu0 0.0
        %2063 = vmatpush.msra.mxu0 0.0
        %2064 = vmatpush.msra.mxu0 0.0
        %2065 = vmatpush.msra.mxu0 0.0
        %2066 = vmatpush.msra.mxu0 0.0
        %2067 = vmatpush.msra.mxu0 0.0
        %2068 = vmatpush.msra.mxu0 0.0
        %2069 = vmatpush.msra.mxu0 0.0
        %2070 = vmatpush.msra.mxu0 0.0
        %2071 = vmatpush.msra.mxu0 0.0
        %2072 = vmatpush.msra.mxu0 0.0
        %2073 = vmatpush.msra.mxu0 0.0
        %2074 = vmatpush.msra.mxu0 %v1841
        %2075 = vmatpush.msra.mxu0 %v1840
        %2076 = vmatpush.msra.mxu0 %v1839
        %2077 = vmatpush.msra.mxu0 %v1838
        %2078 = vmatmul.f32.gmra.mxu0 %v1876
        %v2079 = vpop.f32.mrf.mxu0
        %v2080 = vadd.f32 %v2054, %v2079
        %2081 = vdwg.mxu0
        %2082 = vmatpush.msra.mxu0 0.0
        %2083 = vmatpush.msra.mxu0 0.0
        %2084 = vmatpush.msra.mxu0 0.0
        %2085 = vmatpush.msra.mxu0 0.0
        %2086 = vmatpush.msra.mxu0 0.0
        %2087 = vmatpush.msra.mxu0 0.0
        %2088 = vmatpush.msra.mxu0 0.0
        %2089 = vmatpush.msra.mxu0 0.0
        %2090 = vmatpush.msra.mxu0 0.0
        %2091 = vmatpush.msra.mxu0 0.0
        %2092 = vmatpush.msra.mxu0 0.0
        %2093 = vmatpush.msra.mxu0 0.0
        %2094 = vmatpush.msra.mxu0 %v1845
        %2095 = vmatpush.msra.mxu0 %v1844
        %2096 = vmatpush.msra.mxu0 %v1843
        %2097 = vmatpush.msra.mxu0 %v1842
        %2098 = vmatmul.f32.gmra.mxu0 %v1876
        %v2099 = vpop.f32.mrf.mxu0
        %v2100 = vadd.f32 %v2055, %v2099
        %2101 = vdwg.mxu0
        %2102 = vmatpush.msra.mxu0 0.0
        %2103 = vmatpush.msra.mxu0 0.0
        %2104 = vmatpush.msra.mxu0 0.0
        %2105 = vmatpush.msra.mxu0 0.0
        %2106 = vmatpush.msra.mxu0 0.0
        %2107 = vmatpush.msra.mxu0 0.0
        %2108 = vmatpush.msra.mxu0 0.0
        %2109 = vmatpush.msra.mxu0 0.0
        %2110 = vmatpush.msra.mxu0 0.0
        %2111 = vmatpush.msra.mxu0 0.0
        %2112 = vmatpush.msra.mxu0 0.0
        %2113 = vmatpush.msra.mxu0 0.0
        %2114 = vmatpush.msra.mxu0 %v1849
        %2115 = vmatpush.msra.mxu0 %v1848
        %2116 = vmatpush.msra.mxu0 %v1847
        %2117 = vmatpush.msra.mxu0 %v1846
        %2118 = vmatmul.f32.gmra.mxu0 %v1876
        %v2119 = vpop.f32.mrf.mxu0
        %v2120 = vadd.f32 %v2056, %v2119
        %2121 = vdwg.mxu0
        %2122 = vmatpush.msra.mxu0 0.0
        %2123 = vmatpush.msra.mxu0 0.0
        %2124 = vmatpush.msra.mxu0 0.0
        %2125 = vmatpush.msra.mxu0 0.0
        %2126 = vmatpush.msra.mxu0 0.0
        %2127 = vmatpush.msra.mxu0 0.0
        %2128 = vmatpush.msra.mxu0 0.0
        %2129 = vmatpush.msra.mxu0 0.0
        %2130 = vmatpush.msra.mxu0 0.0
        %2131 = vmatpush.msra.mxu0 0.0
        %2132 = vmatpush.msra.mxu0 0.0
        %2133 = vmatpush.msra.mxu0 0.0
        %2134 = vmatpush.msra.mxu0 %v1853
        %2135 = vmatpush.msra.mxu0 %v1852
        %2136 = vmatpush.msra.mxu0 %v1851
        %2137 = vmatpush.msra.mxu0 %v1850
        %2138 = vmatmul.f32.gmra.mxu0 %v1876
        %v2139 = vpop.f32.mrf.mxu0
        %v2140 = vadd.f32 %v2057, %v2139
        %2141 = vdwg.mxu0
        %v2143 = vsel %vm1340, %v1896, 0
        %v2146 = vsel %vm1340, %v1988, 0
        %2148 = vmatpush.xpose.msra.mxu0 0.0
        %2149 = vmatpush.xpose.msra.mxu0 0.0
        %2150 = vmatpush.xpose.msra.mxu0 0.0
        %2151 = vmatpush.xpose.msra.mxu0 0.0
        %2152 = vmatpush.xpose.msra.mxu0 0.0
        %2153 = vmatpush.xpose.msra.mxu0 0.0
        %2154 = vmatpush.xpose.msra.mxu0 0.0
        %2155 = vmatpush.xpose.msra.mxu0 0.0
        %2156 = vmatpush.xpose.msra.mxu0 0.0
        %2157 = vmatpush.xpose.msra.mxu0 0.0
        %2158 = vmatpush.xpose.msra.mxu0 0.0
        %2159 = vmatpush.xpose.msra.mxu0 0.0
        %2160 = vmatpush.xpose.msra.mxu0 0.0
        %2161 = vmatpush.xpose.msra.mxu0 0.0
        %2162 = vmatpush.xpose.msra.mxu0 0.0
        %2163 = vmatpush.xpose.msra.mxu0 %v2146
        %2164 = vmatmul.f32.gmra.mxu0 %v2143
        %v2165 = vpop.f32.mrf.mxu0
        %v2166 = vadd.f32 0.0, %v2165
        %2167 = vdwg.mxu0
        %v2169 = vsel %vm1340, %v1916, 0
        %v2172 = vsel %vm1340, %v2008, 0
        %2174 = vmatpush.xpose.msra.mxu0 0.0
        %2175 = vmatpush.xpose.msra.mxu0 0.0
        %2176 = vmatpush.xpose.msra.mxu0 0.0
        %2177 = vmatpush.xpose.msra.mxu0 0.0
        %2178 = vmatpush.xpose.msra.mxu0 0.0
        %2179 = vmatpush.xpose.msra.mxu0 0.0
        %2180 = vmatpush.xpose.msra.mxu0 0.0
        %2181 = vmatpush.xpose.msra.mxu0 0.0
        %2182 = vmatpush.xpose.msra.mxu0 0.0
        %2183 = vmatpush.xpose.msra.mxu0 0.0
        %2184 = vmatpush.xpose.msra.mxu0 0.0
        %2185 = vmatpush.xpose.msra.mxu0 0.0
        %2186 = vmatpush.xpose.msra.mxu0 0.0
        %2187 = vmatpush.xpose.msra.mxu0 0.0
        %2188 = vmatpush.xpose.msra.mxu0 0.0
        %2189 = vmatpush.xpose.msra.mxu0 %v2172
        %2190 = vmatmul.f32.gmra.mxu0 %v2169
        %v2191 = vpop.f32.mrf.mxu0
        %v2192 = vadd.f32 0.0, %v2191
        %2193 = vdwg.mxu0
        %v2195 = vsel %vm1340, %v1936, 0
        %v2198 = vsel %vm1340, %v2028, 0
        %2200 = vmatpush.xpose.msra.mxu0 0.0
        %2201 = vmatpush.xpose.msra.mxu0 0.0
        %2202 = vmatpush.xpose.msra.mxu0 0.0
        %2203 = vmatpush.xpose.msra.mxu0 0.0
        %2204 = vmatpush.xpose.msra.mxu0 0.0
        %2205 = vmatpush.xpose.msra.mxu0 0.0
        %2206 = vmatpush.xpose.msra.mxu0 0.0
        %2207 = vmatpush.xpose.msra.mxu0 0.0
        %2208 = vmatpush.xpose.msra.mxu0 0.0
        %2209 = vmatpush.xpose.msra.mxu0 0.0
        %2210 = vmatpush.xpose.msra.mxu0 0.0
        %2211 = vmatpush.xpose.msra.mxu0 0.0
        %2212 = vmatpush.xpose.msra.mxu0 0.0
        %2213 = vmatpush.xpose.msra.mxu0 0.0
        %2214 = vmatpush.xpose.msra.mxu0 0.0
        %2215 = vmatpush.xpose.msra.mxu0 %v2198
        %2216 = vmatmul.f32.gmra.mxu0 %v2195
        %v2217 = vpop.f32.mrf.mxu0
        %v2218 = vadd.f32 0.0, %v2217
        %2219 = vdwg.mxu0
        %v2221 = vsel %vm1340, %v1956, 0
        %v2224 = vsel %vm1340, %v2048, 0
        %2226 = vmatpush.xpose.msra.mxu0 0.0
        %2227 = vmatpush.xpose.msra.mxu0 0.0
        %2228 = vmatpush.xpose.msra.mxu0 0.0
        %2229 = vmatpush.xpose.msra.mxu0 0.0
        %2230 = vmatpush.xpose.msra.mxu0 0.0
        %2231 = vmatpush.xpose.msra.mxu0 0.0
        %2232 = vmatpush.xpose.msra.mxu0 0.0
        %2233 = vmatpush.xpose.msra.mxu0 0.0
        %2234 = vmatpush.xpose.msra.mxu0 0.0
        %2235 = vmatpush.xpose.msra.mxu0 0.0
        %2236 = vmatpush.xpose.msra.mxu0 0.0
        %2237 = vmatpush.xpose.msra.mxu0 0.0
        %2238 = vmatpush.xpose.msra.mxu0 0.0
        %2239 = vmatpush.xpose.msra.mxu0 0.0
        %2240 = vmatpush.xpose.msra.mxu0 0.0
        %2241 = vmatpush.xpose.msra.mxu0 %v2224
        %2242 = vmatmul.f32.gmra.mxu0 %v2221
        %v2243 = vpop.f32.mrf.mxu0
        %v2244 = vadd.f32 0.0, %v2243
        %2245 = vdwg.mxu0
        %v2246 = vmul.f32 %v2166, 0.35355338
        %v2247 = vmul.f32 %v2192, 0.35355338
        %v2248 = vmul.f32 %v2218, 0.35355338
        %v2249 = vmul.f32 %v2244, 0.35355338
        %v2250 = vadd.f32 %v2246, %v938
        %v2251 = vadd.f32 %v2247, %v938
        %v2252 = vadd.f32 %v2248, %v938
        %v2253 = vadd.f32 %v2249, %v938
        %v2254 = vsel %vm1340, %v2250, -inf
        %2255 = vmax.xlane.f32.xlu0 %v2254
        %v2256 = vpop.xlane.xlu0 %2255
        %v2257 = vsel %vm1340, %v2251, -inf
        %2258 = vmax.xlane.f32.xlu0 %v2257
        %v2259 = vpop.xlane.xlu0 %2258
        %v2260 = vsel %vm1340, %v2252, -inf
        %2261 = vmax.xlane.f32.xlu0 %v2260
        %v2262 = vpop.xlane.xlu0 %2261
        %v2263 = vsel %vm1340, %v2253, -inf
        %2264 = vmax.xlane.f32.xlu0 %v2263
        %v2265 = vpop.xlane.xlu0 %2264
        %v2266 = vsub.f32 %v2250, %v2256
        %v2267 = vsub.f32 %v2251, %v2259
        %v2268 = vsub.f32 %v2252, %v2262
        %v2269 = vsub.f32 %v2253, %v2265
        %v2270 = vmul.f32 %v2266, 1.442695
        %v2271 = vpow.pop %v2270
        %v2272 = vmul.f32 %v2267, 1.442695
        %v2273 = vpow.pop %v2272
        %v2274 = vmul.f32 %v2268, 1.442695
        %v2275 = vpow.pop %v2274
        %v2276 = vmul.f32 %v2269, 1.442695
        %v2277 = vpow.pop %v2276
        %v2278 = vsel %vm1340, %v2271, 0.0
        %2279 = vadd.xlane.f32.xlu0 %v2278
        %v2280 = vpop.xlane.xlu0 %2279
        %v2281 = vsel %vm1340, %v2273, 0.0
        %2282 = vadd.xlane.f32.xlu0 %v2281
        %v2283 = vpop.xlane.xlu0 %2282
        %v2284 = vsel %vm1340, %v2275, 0.0
        %2285 = vadd.xlane.f32.xlu0 %v2284
        %v2286 = vpop.xlane.xlu0 %2285
        %v2287 = vsel %vm1340, %v2277, 0.0
        %2288 = vadd.xlane.f32.xlu0 %v2287
        %v2289 = vpop.xlane.xlu0 %2288
        %v2290 = vrcp.pop %v2280
        %v2291 = vmul.f32 %v2280, %v2290
        %v2292 = vsub.f32 1.0, %v2291
        %v2293 = vmul.f32 %v2290, %v2292
        %v2294 = vadd.f32 %v2290, %v2293
        %vm2295 = vweird.f32 %v2280
        %vm2296 = vweird.f32 %v2290
        %vm2297 = vmor %vm2295, %vm2296
        %v2298 = vsel %vm2297, %v2290, %v2294
        %v2299 = vand.u32 2147483647, %v2280
        %vm2300 = vcmp.eq.f32.partialorder %v2299, 8.507059e+37
        %v2301 = vand.u32 %v2280, 2147483648
        %v2302 = vor.u32 1.1754944e-38, %v2301
        %v2303 = vsel %vm2300, %v2302, %v2298
        %v2304 = vmul.f32 1.0, %v2303
        %v2305 = vrcp.pop %v2283
        %v2306 = vmul.f32 %v2283, %v2305
        %v2307 = vsub.f32 1.0, %v2306
        %v2308 = vmul.f32 %v2305, %v2307
        %v2309 = vadd.f32 %v2305, %v2308
        %vm2310 = vweird.f32 %v2283
        %vm2311 = vweird.f32 %v2305
        %vm2312 = vmor %vm2310, %vm2311
        %v2313 = vsel %vm2312, %v2305, %v2309
        %v2314 = vand.u32 2147483647, %v2283
        %vm2315 = vcmp.eq.f32.partialorder %v2314, 8.507059e+37
        %v2316 = vand.u32 %v2283, 2147483648
        %v2317 = vor.u32 1.1754944e-38, %v2316
        %v2318 = vsel %vm2315, %v2317, %v2313
        %v2319 = vmul.f32 1.0, %v2318
        %v2320 = vrcp.pop %v2286
        %v2321 = vmul.f32 %v2286, %v2320
        %v2322 = vsub.f32 1.0, %v2321
        %v2323 = vmul.f32 %v2320, %v2322
        %v2324 = vadd.f32 %v2320, %v2323
        %vm2325 = vweird.f32 %v2286
        %vm2326 = vweird.f32 %v2320
        %vm2327 = vmor %vm2325, %vm2326
        %v2328 = vsel %vm2327, %v2320, %v2324
        %v2329 = vand.u32 2147483647, %v2286
        %vm2330 = vcmp.eq.f32.partialorder %v2329, 8.507059e+37
        %v2331 = vand.u32 %v2286, 2147483648
        %v2332 = vor.u32 1.1754944e-38, %v2331
        %v2333 = vsel %vm2330, %v2332, %v2328
        %v2334 = vmul.f32 1.0, %v2333
        %v2335 = vrcp.pop %v2289
        %v2336 = vmul.f32 %v2289, %v2335
        %v2337 = vsub.f32 1.0, %v2336
        %v2338 = vmul.f32 %v2335, %v2337
        %v2339 = vadd.f32 %v2335, %v2338
        %vm2340 = vweird.f32 %v2289
        %vm2341 = vweird.f32 %v2335
        %vm2342 = vmor %vm2340, %vm2341
        %v2343 = vsel %vm2342, %v2335, %v2339
        %v2344 = vand.u32 2147483647, %v2289
        %vm2345 = vcmp.eq.f32.partialorder %v2344, 8.507059e+37
        %v2346 = vand.u32 %v2289, 2147483648
        %v2347 = vor.u32 1.1754944e-38, %v2346
        %v2348 = vsel %vm2345, %v2347, %v2343
        %v2349 = vmul.f32 1.0, %v2348
        %v2350 = vmul.f32 %v2271, %v2304
        %v2351 = vmul.f32 %v2273, %v2319
        %v2352 = vmul.f32 %v2275, %v2334
        %v2353 = vmul.f32 %v2277, %v2349
        %v2355 = vsel %vm1340, %v2350, 0
        %2357 = vmatpush.msra.mxu0 0.0
        %2358 = vmatpush.msra.mxu0 0.0
        %2359 = vmatpush.msra.mxu0 0.0
        %2360 = vmatpush.msra.mxu0 0.0
        %2361 = vmatpush.msra.mxu0 0.0
        %2362 = vmatpush.msra.mxu0 0.0
        %2363 = vmatpush.msra.mxu0 0.0
        %2364 = vmatpush.msra.mxu0 0.0
        %2365 = vmatpush.msra.mxu0 0.0
        %2366 = vmatpush.msra.mxu0 0.0
        %2367 = vmatpush.msra.mxu0 0.0
        %2368 = vmatpush.msra.mxu0 0.0
        %2369 = vmatpush.msra.mxu0 0.0
        %2370 = vmatpush.msra.mxu0 0.0
        %2371 = vmatpush.msra.mxu0 0.0
        %2372 = vmatpush.msra.mxu0 %v2080
        %2373 = vmatmul.f32.gmra.mxu0 %v2355
        %v2374 = vpop.f32.mrf.mxu0
        %v2375 = vadd.f32 0.0, %v2374
        %2376 = vdwg.mxu0
        %v2378 = vsel %vm1340, %v2351, 0
        %2380 = vmatpush.msra.mxu0 0.0
        %2381 = vmatpush.msra.mxu0 0.0
        %2382 = vmatpush.msra.mxu0 0.0
        %2383 = vmatpush.msra.mxu0 0.0
        %2384 = vmatpush.msra.mxu0 0.0
        %2385 = vmatpush.msra.mxu0 0.0
        %2386 = vmatpush.msra.mxu0 0.0
        %2387 = vmatpush.msra.mxu0 0.0
        %2388 = vmatpush.msra.mxu0 0.0
        %2389 = vmatpush.msra.mxu0 0.0
        %2390 = vmatpush.msra.mxu0 0.0
        %2391 = vmatpush.msra.mxu0 0.0
        %2392 = vmatpush.msra.mxu0 0.0
        %2393 = vmatpush.msra.mxu0 0.0
        %2394 = vmatpush.msra.mxu0 0.0
        %2395 = vmatpush.msra.mxu0 %v2100
        %2396 = vmatmul.f32.gmra.mxu0 %v2378
        %v2397 = vpop.f32.mrf.mxu0
        %v2398 = vadd.f32 0.0, %v2397
        %2399 = vdwg.mxu0
        %v2401 = vsel %vm1340, %v2352, 0
        %2403 = vmatpush.msra.mxu0 0.0
        %2404 = vmatpush.msra.mxu0 0.0
        %2405 = vmatpush.msra.mxu0 0.0
        %2406 = vmatpush.msra.mxu0 0.0
        %2407 = vmatpush.msra.mxu0 0.0
        %2408 = vmatpush.msra.mxu0 0.0
        %2409 = vmatpush.msra.mxu0 0.0
        %2410 = vmatpush.msra.mxu0 0.0
        %2411 = vmatpush.msra.mxu0 0.0
        %2412 = vmatpush.msra.mxu0 0.0
        %2413 = vmatpush.msra.mxu0 0.0
        %2414 = vmatpush.msra.mxu0 0.0
        %2415 = vmatpush.msra.mxu0 0.0
        %2416 = vmatpush.msra.mxu0 0.0
        %2417 = vmatpush.msra.mxu0 0.0
        %2418 = vmatpush.msra.mxu0 %v2120
        %2419 = vmatmul.f32.gmra.mxu0 %v2401
        %v2420 = vpop.f32.mrf.mxu0
        %v2421 = vadd.f32 0.0, %v2420
        %2422 = vdwg.mxu0
        %v2424 = vsel %vm1340, %v2353, 0
        %2426 = vmatpush.msra.mxu0 0.0
        %2427 = vmatpush.msra.mxu0 0.0
        %2428 = vmatpush.msra.mxu0 0.0
        %2429 = vmatpush.msra.mxu0 0.0
        %2430 = vmatpush.msra.mxu0 0.0
        %2431 = vmatpush.msra.mxu0 0.0
        %2432 = vmatpush.msra.mxu0 0.0
        %2433 = vmatpush.msra.mxu0 0.0
        %2434 = vmatpush.msra.mxu0 0.0
        %2435 = vmatpush.msra.mxu0 0.0
        %2436 = vmatpush.msra.mxu0 0.0
        %2437 = vmatpush.msra.mxu0 0.0
        %2438 = vmatpush.msra.mxu0 0.0
        %2439 = vmatpush.msra.mxu0 0.0
        %2440 = vmatpush.msra.mxu0 0.0
        %2441 = vmatpush.msra.mxu0 %v2140
        %2442 = vmatmul.f32.gmra.mxu0 %v2424
        %v2443 = vpop.f32.mrf.mxu0
        %v2444 = vadd.f32 0.0, %v2443
        %2445 = vdwg.mxu0
        %v2447 = vsel %vm1340, %v2375, 0
        %2449 = vmatpush.msra.mxu0 0.0
        %2450 = vmatpush.msra.mxu0 0.0
        %2451 = vmatpush.msra.mxu0 0.0
        %2452 = vmatpush.msra.mxu0 0.0
        %2453 = vmatpush.msra.mxu0 0.0
        %2454 = vmatpush.msra.mxu0 0.0
        %2455 = vmatpush.msra.mxu0 0.0
        %2456 = vmatpush.msra.mxu0 0.0
        %2457 = vmatpush.msra.mxu0 0.0
        %2458 = vmatpush.msra.mxu0 0.0
        %2459 = vmatpush.msra.mxu0 0.0
        %2460 = vmatpush.msra.mxu0 0.0
        %2461 = vmatpush.msra.mxu0 0.0
        %2462 = vmatpush.msra.mxu0 0.0
        %2463 = vmatpush.msra.mxu0 0.0
        %2464 = vmatpush.msra.mxu0 %v1858
        %2465 = vmatmul.f32.gmra.mxu0 %v2447
        %v2466 = vpop.f32.mrf.mxu0
        %v2467 = vadd.f32 0.0, %v2466
        %2468 = vdwg.mxu0
        %v2470 = vsel %vm1340, %v2398, 0
        %2472 = vmatpush.msra.mxu0 0.0
        %2473 = vmatpush.msra.mxu0 0.0
        %2474 = vmatpush.msra.mxu0 0.0
        %2475 = vmatpush.msra.mxu0 0.0
        %2476 = vmatpush.msra.mxu0 0.0
        %2477 = vmatpush.msra.mxu0 0.0
        %2478 = vmatpush.msra.mxu0 0.0
        %2479 = vmatpush.msra.mxu0 0.0
        %2480 = vmatpush.msra.mxu0 0.0
        %2481 = vmatpush.msra.mxu0 0.0
        %2482 = vmatpush.msra.mxu0 0.0
        %2483 = vmatpush.msra.mxu0 0.0
        %2484 = vmatpush.msra.mxu0 0.0
        %2485 = vmatpush.msra.mxu0 0.0
        %2486 = vmatpush.msra.mxu0 0.0
        %2487 = vmatpush.msra.mxu0 %v1859
        %2488 = vmatmul.f32.gmra.mxu0 %v2470
        %v2489 = vpop.f32.mrf.mxu0
        %v2490 = vadd.f32 0.0, %v2489
        %2491 = vdwg.mxu0
        %v2493 = vsel %vm1340, %v2421, 0
        %2495 = vmatpush.msra.mxu0 0.0
        %2496 = vmatpush.msra.mxu0 0.0
        %2497 = vmatpush.msra.mxu0 0.0
        %2498 = vmatpush.msra.mxu0 0.0
        %2499 = vmatpush.msra.mxu0 0.0
        %2500 = vmatpush.msra.mxu0 0.0
        %2501 = vmatpush.msra.mxu0 0.0
        %2502 = vmatpush.msra.mxu0 0.0
        %2503 = vmatpush.msra.mxu0 0.0
        %2504 = vmatpush.msra.mxu0 0.0
        %2505 = vmatpush.msra.mxu0 0.0
        %2506 = vmatpush.msra.mxu0 0.0
        %2507 = vmatpush.msra.mxu0 0.0
        %2508 = vmatpush.msra.mxu0 0.0
        %2509 = vmatpush.msra.mxu0 0.0
        %2510 = vmatpush.msra.mxu0 %v1860
        %2511 = vmatmul.f32.gmra.mxu0 %v2493
        %v2512 = vpop.f32.mrf.mxu0
        %v2513 = vadd.f32 0.0, %v2512
        %2514 = vdwg.mxu0
        %v2516 = vsel %vm1340, %v2444, 0
        %2518 = vmatpush.msra.mxu0 0.0
        %2519 = vmatpush.msra.mxu0 0.0
        %2520 = vmatpush.msra.mxu0 0.0
        %2521 = vmatpush.msra.mxu0 0.0
        %2522 = vmatpush.msra.mxu0 0.0
        %2523 = vmatpush.msra.mxu0 0.0
        %2524 = vmatpush.msra.mxu0 0.0
        %2525 = vmatpush.msra.mxu0 0.0
        %2526 = vmatpush.msra.mxu0 0.0
        %2527 = vmatpush.msra.mxu0 0.0
        %2528 = vmatpush.msra.mxu0 0.0
        %2529 = vmatpush.msra.mxu0 0.0
        %2530 = vmatpush.msra.mxu0 0.0
        %2531 = vmatpush.msra.mxu0 0.0
        %2532 = vmatpush.msra.mxu0 0.0
        %2533 = vmatpush.msra.mxu0 %v1861
        %2534 = vmatmul.f32.gmra.mxu0 %v2516
        %v2535 = vpop.f32.mrf.mxu0
        %v2536 = vadd.f32 0.0, %v2535
        %2537 = vdwg.mxu0
        %v2538 = vsel %vm941, %v2467, 0.0
        %v2539 = vsel %vm941, %v2490, 0.0
        %v2540 = vadd.f32 %v2538, %v2539
        %v2541 = vsel %vm941, %v2513, 0.0
        %v2542 = vadd.f32 %v2540, %v2541
        %v2543 = vsel %vm941, %v2536, 0.0
        %v2544 = vadd.f32 %v2542, %v2543
        %v2546 = vperm.slane %v1862, 0
        %v2548 = vadd.f32 %v2544, %v2546
        %v2549 = vadd.f32 %v2548, %v1748
        %v2550 = vld [vmem:[%s55] sm:$0x1]
        %v2551 = vld [vmem:[%s57] sm:$0x1]
        %v2552 = vsel %vm941, %v2549, 0.0
        %2553 = vadd.xlane.f32.xlu0 %v2552
        %v2554 = vpop.xlane.xlu0 %2553
        %v2555 = vmul.f32 %v2554, %v951
        %v2556 = vsub.f32 %v2549, %v2555
        %v2557 = vmul.f32 %v2556, %v2556
        %v2558 = vsel %vm941, %v2557, 0.0
        %2559 = vadd.xlane.f32.xlu0 %v2558
        %v2560 = vpop.xlane.xlu0 %2559
        %v2561 = vmul.f32 %v2560, 0.032258064
        %v2562 = vrsqrt.pop %v2561
        %v2563 = vmul.f32 %v2562, %v2561
        %v2564 = vmul.f32 %v2563, %v2562
        %v2565 = vmul.f32 0.5, %v2564
        %v2566 = vsub.f32 1.5, %v2565
        %v2567 = vmul.f32 %v2562, %v2566
        %v2568 = vmul.f32 %v2561, %v2567
        %vm2569 = vcmp.eq.f32.partialorder %v2561, inf
        %v2570 = vsel %vm2569, %v2561, %v2568
        %vm2571 = vcmp.eq.f32.partialorder %v2561, 0.0
        %v2572 = vand.u32 %v2561, 2147483648
        %v2573 = vsel %vm2571, %v2572, %v2570
        %v2574 = vadd.f32 %v2573, 1e-06
        %v2575 = vrcp.pop %v2574
        %v2576 = vmul.f32 %v2574, %v2575
        %v2577 = vsub.f32 1.0, %v2576
        %v2578 = vmul.f32 %v2575, %v2577
        %v2579 = vadd.f32 %v2575, %v2578
        %vm2580 = vweird.f32 %v2574
        %vm2581 = vweird.f32 %v2575
        %vm2582 = vmor %vm2580, %vm2581
        %v2583 = vsel %vm2582, %v2575, %v2579
        %v2584 = vand.u32 2147483647, %v2574
        %vm2585 = vcmp.eq.f32.partialorder %v2584, 8.507059e+37
        %v2586 = vand.u32 %v2574, 2147483648
        %v2587 = vor.u32 1.1754944e-38, %v2586
        %v2588 = vsel %vm2585, %v2587, %v2583
        %v2589 = vmul.f32 1.0, %v2588
        %v2591 = vperm.slane %v2550, 0
        %v2593 = vmul.f32 %v2591, %v2556
        %v2594 = vmul.f32 %v2593, %v2589
        %v2596 = vperm.slane %v2551, 0
        %v2598 = vadd.f32 %v2594, %v2596
        %v2599 = vld [vmem:[%s39] sm:$0xff]
        %v2600 = vld [vmem:[%s39 + $0x8] sm:$0xff]
        %v2601 = vld [vmem:[%s39 + $0x10] sm:$0xff]
        %v2602 = vld [vmem:[%s39 + $0x18] sm:$0xff]
        %v2603 = vld [vmem:[%s41] sm:$0x1]
        %v2605 = vperm.slane %v2603, 0
        %v2608 = vsel %vm941, %v2598, 0
        %2610 = vmatpush.msra.mxu0 0.0
        %2611 = vmatpush.msra.mxu0 0.0
        %2612 = vmatpush.msra.mxu0 0.0
        %2613 = vmatpush.msra.mxu0 0.0
        %2614 = vmatpush.msra.mxu0 0.0
        %2615 = vmatpush.msra.mxu0 0.0
        %2616 = vmatpush.msra.mxu0 0.0
        %2617 = vmatpush.msra.mxu0 0.0
        %2618 = vmatpush.msra.mxu0 0.0
        %2619 = vmatpush.msra.mxu0 0.0
        %2620 = vmatpush.msra.mxu0 0.0
        %2621 = vmatpush.msra.mxu0 0.0
        %2622 = vmatpush.msra.mxu0 %v2602
        %2623 = vmatpush.msra.mxu0 %v2601
        %2624 = vmatpush.msra.mxu0 %v2600
        %2625 = vmatpush.msra.mxu0 %v2599
        %2626 = vmatmul.f32.gmra.mxu0 %v2608
        %v2627 = vpop.f32.mrf.mxu0
        %v2628 = vadd.f32 %v2605, %v2627
        %2629 = vdwg.mxu0
        %v2630 = vmax.f32 %v2628, 0.0
        %v2631 = vld [vmem:[%s43] sm:$0xff]
        %v2632 = vld [vmem:[%s43 + $0x8] sm:$0xff]
        %v2633 = vld [vmem:[%s43 + $0x10] sm:$0xff]
        %v2634 = vld [vmem:[%s43 + $0x18] sm:$0xff]
        %v2635 = vld [vmem:[%s43 + $0x20] sm:$0xff]
        %v2636 = vld [vmem:[%s43 + $0x28] sm:$0xff]
        %v2637 = vld [vmem:[%s43 + $0x30] sm:$0xff]
        %v2638 = vld [vmem:[%s43 + $0x38] sm:$0xff]
        %v2639 = vld [vmem:[%s45] sm:$0x1]
        %v2641 = vperm.slane %v2639, 0
        %vm2643 = vcmask 523264
        %v2645 = vsel %vm2643, %v2630, 0
        %2647 = vmatpush.msra.mxu0 0.0
        %2648 = vmatpush.msra.mxu0 0.0
        %2649 = vmatpush.msra.mxu0 0.0
        %2650 = vmatpush.msra.mxu0 0.0
        %2651 = vmatpush.msra.mxu0 0.0
        %2652 = vmatpush.msra.mxu0 0.0
        %2653 = vmatpush.msra.mxu0 0.0
        %2654 = vmatpush.msra.mxu0 0.0
        %2655 = vmatpush.msra.mxu0 %v2638
        %2656 = vmatpush.msra.mxu0 %v2637
        %2657 = vmatpush.msra.mxu0 %v2636
        %2658 = vmatpush.msra.mxu0 %v2635
        %2659 = vmatpush.msra.mxu0 %v2634
        %2660 = vmatpush.msra.mxu0 %v2633
        %2661 = vmatpush.msra.mxu0 %v2632
        %2662 = vmatpush.msra.mxu0 %v2631
        %2663 = vmatmul.f32.gmra.mxu0 %v2645
        %v2664 = vpop.f32.mrf.mxu0
        %v2665 = vadd.f32 %v2641, %v2664
        %2666 = vdwg.mxu0
        %v2667 = vadd.f32 %v2665, %v2549
        %2668 = vst.msk [vmem:[%s919] sm:$0xff] %vm941, %v2667
        %s2669 = sand.u32 %s705, 1
        %s2670 = scalar_lea.sflag [#allocation3], %s2669
        %s2671 = sand.u32 %s705, 1
        %s2672 = smul.addr %s2671, 8
        %s2673 = scalar_lea.vmem [#allocation2], %s2672
        // Predicated region
        $region137: #{tpu_custom_call.1} parent=135 // pred_check
          %p2674 = pneg %p715
        $region138: #{tpu_custom_call.1} parent=135 // pred_check_branch
          %2676 = sbr.rel (%p2674) target = $region140
        $region139: #{tpu_custom_call.1} parent=135 // pred_region
          %2678 = vsyncadd %s2670, 0
          %s2679 = smul.addr %s73, 8
          %s2680 = scalar_lea.hbm %s59, %s2679
          %s2682 = sshll.u32 %s2673, 4
          %s2683 = int_to_ptr.vmem [resolvable:$true] %s2682
          %s2684 = sshll.u32 %s2680, 4
          %s2685 = int_to_ptr.hbm [resolvable:$true] %s2684
          %2687 = dma.vmem_to_hbm [thread:$0]  %s2683, 128, %s2685, %s2670
        $region140: #{tpu_custom_call.1} parent=135 // pred_fallthru
          _
      $region136: #{tpu_custom_call.1} parent=5 // pred_fallthru
        _
      %p2688 = scmp.le.s32.totalorder 2, %s68
      // Predicated region
      $region141: #{tpu_custom_call.1} parent=5 // pred_check
        %p2689 = pneg %p2688
      $region142: #{tpu_custom_call.1} parent=5 // pred_check_branch
        %2691 = sbr.rel (%p2689) target = $region144
      $region143: #{tpu_custom_call.1} parent=5 // pred_region
        %s2692 = ssub.s32 %s68, 2
        // Predicated region
        $region145: #{tpu_custom_call.1} parent=143 // pred_check
          %p2693 = pneg %p721
        $region146: #{tpu_custom_call.1} parent=143 // pred_check_branch
          %2695 = sbr.rel (%p2693) target = $region148
        $region147: #{tpu_custom_call.1} parent=143 // pred_region
          %s2696 = sand.u32 %s706, 1
          %s2697 = scalar_lea.sflag [#allocation3], %s2696
          %s2698 = sand.u32 %s706, 1
          %s2699 = smul.addr %s2698, 8
          %s2700 = scalar_lea.vmem [#allocation2], %s2699
          %2702 = dma.done %s2697, 128
        $region148: #{tpu_custom_call.1} parent=143 // pred_fallthru
          _
      $region144: #{tpu_custom_call.1} parent=5 // pred_fallthru
        _
    $region6: #{tpu_custom_call.1} parent=1 // loop_footer
      %s72 = sadd.s32 1, %s68
    $region7: #{tpu_custom_call.1} parent=1 // loop_footer_branch
      %67 = sbr.rel target = $region3
    $region8: #{tpu_custom_call.1} parent=1 // loop_exit
      _
    %2703 = vsyncpa [#allocation3], 1
    %s2704 = scalar_lea.sflag [#allocation3], 1
    %2705 = vsyncpa %s2704, 1

</llo_original>
